<compile_context>
chip_gen: v7x
topology: tpu7x:2x2x1
jax: 0.10.0
libtpu: 0.0.40
codegen_flags: <defaults>
</compile_context>

<pallas_src>
import jax
import jax.numpy as jnp
from jax.experimental import pallas as pl
from jax.experimental.pallas import tpu as pltpu


def convnet_kernel(x_ref, wc_ref, bc_ref, wf_ref, bf_ref, out_ref):
    # x_ref : (TB, 768) bf16   rows = images, lanes = flattened 26x26 crop
    #                          (pixel (p,q) at lane p*26+q; lanes 676..767 = 0)
    # wc_ref: (9, 768, 192) bf16  folded conv weight per pool offset k = pr*3+pc
    # bc_ref: (1, 192) f32        conv bias tiled per column (col = s*3 + c)
    # wf_ref: (192, 10) bf16      fc weight permuted to feature order s*3 + c
    # bf_ref: (1, 10)  f32
    # out   : (TB, 10) f32        log-probabilities
    x = x_ref[...]

    # conv + 3x3/stride-3 max-pool: running max over the 9 pool offsets.
    acc = jnp.dot(x, wc_ref[0], preferred_element_type=jnp.float32)
    for k in range(1, 9):
        acc = jnp.maximum(
            acc, jnp.dot(x, wc_ref[k], preferred_element_type=jnp.float32))

    # bias + ReLU (both commute with the pooling max).
    feat = jnp.maximum(acc + bc_ref[...], 0.0)                    # (TB,192) f32

    logits = jnp.dot(feat.astype(jnp.bfloat16), wf_ref[...],
                     preferred_element_type=jnp.float32) + bf_ref[...]
    mx = jnp.max(logits, axis=-1, keepdims=True)
    z = logits - mx
    lse = jnp.log(jnp.sum(jnp.exp(z), axis=-1, keepdims=True))
    out_ref[...] = z - lse


def _build_folded_conv_weights(conv_w):
    """(3,1,3,3) conv weight -> (9, 768, 192) bf16 im2col-folded weights."""
    w = conv_w.astype(jnp.float32)
    A  = jnp.arange(8).reshape(8, 1, 1, 1, 1)   # pooled row   a
    Bb = jnp.arange(8).reshape(1, 8, 1, 1, 1)   # pooled col   bb
    Di = jnp.arange(3).reshape(1, 1, 3, 1, 1)   # conv tap row di
    Dj = jnp.arange(3).reshape(1, 1, 1, 3, 1)   # conv tap col dj
    C  = jnp.arange(3).reshape(1, 1, 1, 1, 3)   # output channel c
    full = (8, 8, 3, 3, 3)
    cols = jnp.broadcast_to((A * 8 + Bb) * 3 + C, full).reshape(-1)
    vals = jnp.broadcast_to(w[C, 0, Di, Dj], full).reshape(-1)
    blocks = []
    for k in range(9):
        pr, pc = k // 3, k % 3
        rows = (3 * A + pr + Di) * 26 + (3 * Bb + pc + Dj)
        rows = jnp.broadcast_to(rows, full).reshape(-1)
        wk = jnp.zeros((768, 192), jnp.float32).at[rows, cols].set(vals)
        blocks.append(wk)
    return jnp.stack(blocks, axis=0).astype(jnp.bfloat16)


def prepare_params(conv_w, conv_b, fc_w, fc_b):
    """One-time parameter prep (hoisted out of the per-call hot path)."""
    wc = _build_folded_conv_weights(conv_w)                      # (9, 768, 192)
    # kernel feature column order is s*3 + c -> conv bias tiles per position.
    bc = jnp.tile(conv_b.astype(jnp.float32), 64).reshape(1, 192)
    # PyTorch flatten order is [c*64 + s]; our features are [s*3 + c] -> permute
    # the fc weight columns instead of relayouting features in the kernel.
    wf = (fc_w.astype(jnp.float32).reshape(10, 3, 64)
          .transpose(2, 1, 0).reshape(192, 10)).astype(jnp.bfloat16)
    bf = fc_b.astype(jnp.float32).reshape(1, 10)
    return wc, bc, wf, bf


def _round_up(v, m):
    return ((v + m - 1) // m) * m


@jax.jit
def convnet_forward(x, wc, bc, wf, bf):
    B = x.shape[0]
    # Rows per grid step: multiple of 8 (sublane), capped at 512, and clamped so
    # large batches keep >= 4 grid steps (v7x megacore split + per-core
    # double-buffering); tiny batches get a single padded step.
    TB = max(8, min(512, _round_up(B, 32) // 4))
    Bp = _round_up(B, TB)

    # Only the top-left 26x26 crop is ever read by conv positions that survive
    # the 8x8 pool; flatten it, cast to bf16, lane-pad 676 -> 768.
    x26 = x[:, 0, :26, :26].astype(jnp.bfloat16).reshape(B, 676)
    xflat = jnp.pad(x26, ((0, Bp - B), (0, 768 - 676)))

    cost = pl.CostEstimate(
        flops=2 * Bp * 192 * (9 * 768 + 10),
        transcendentals=Bp * 10,
        bytes_accessed=(Bp * 768 * 2) + (9 * 768 * 192 * 2) + (Bp * 10 * 4),
    )

    out = pl.pallas_call(
        convnet_kernel,
        out_shape=jax.ShapeDtypeStruct((Bp, 10), jnp.float32),
        grid=(Bp // TB,),
        in_specs=[
            pl.BlockSpec((TB, 768), lambda i: (i, 0)),
            pl.BlockSpec((9, 768, 192), lambda i: (0, 0, 0)),
            pl.BlockSpec((1, 192), lambda i: (0, 0)),
            pl.BlockSpec((192, 10), lambda i: (0, 0)),
            pl.BlockSpec((1, 10), lambda i: (0, 0)),
        ],
        out_specs=pl.BlockSpec((TB, 10), lambda i: (i, 0)),
        compiler_params=pltpu.CompilerParams(
            dimension_semantics=("parallel",)),
        cost_estimate=cost,
    )(xflat, wc, bc, wf, bf)
    return out[:B]


def reference_forward(x, conv_w, conv_b, fc_w, fc_b):
    # Pure-JAX f32 reference matching PyTorch semantics.
    y = jax.lax.conv_general_dilated(
        x, conv_w, window_strides=(1, 1), padding="VALID",
        dimension_numbers=("NCHW", "OIHW", "NCHW"))
    y = y + conv_b.reshape(1, 3, 1, 1)
    y = jax.lax.reduce_window(y, -jnp.inf, jax.lax.max,
                              (1, 1, 3, 3), (1, 1, 3, 3), "VALID")
    y = jnp.maximum(y, 0.0)
    y = y.reshape(y.shape[0], -1)            # (B, 192), order [c*64 + spatial]
    y = y @ fc_w.T + fc_b
    return jax.nn.log_softmax(y, axis=1)


if __name__ == "__main__":
    key = jax.random.PRNGKey(0)
    k1, k2, k3, k4, k5 = jax.random.split(key, 5)

    # Deterministic synthetic parameters (shapes from ConvNet.__init__).
    conv_w = jax.random.normal(k1, (3, 1, 3, 3), jnp.float32) * 0.3
    conv_b = jax.random.normal(k2, (3,), jnp.float32) * 0.1
    fc_w = jax.random.normal(k3, (10, 192), jnp.float32) * 0.05
    fc_b = jax.random.normal(k4, (10,), jnp.float32) * 0.05

    # MNIST-shaped input (28x28 is required by the 192-feature flatten).
    x = jax.random.normal(k5, (2, 1, 28, 28), jnp.float32)

    params = prepare_params(conv_w, conv_b, fc_w, fc_b)   # one-time prep
    out = jax.block_until_ready(convnet_forward(x, *params))
    ref = jax.block_until_ready(reference_forward(x, conv_w, conv_b, fc_w, fc_b))

    assert out.shape == (2, 10), out.shape
    # bf16 image/weight streams -> slightly looser tolerance than pure f32.
    assert jnp.allclose(out, ref, atol=2e-2, rtol=2e-2), (out, ref)
    print("KERNEL_OK")
</pallas_src>

<mosaic_0001>
module attributes {stable_mosaic.version = 11 : i64} {
  func.func @convnet_kernel(%arg0: i32, %arg1: memref<8x768xbf16, #tpu.memory_space<vmem>>, %arg2: memref<9x768x192xbf16, #tpu.memory_space<vmem>>, %arg3: memref<1x192xf32, #tpu.memory_space<vmem>>, %arg4: memref<192x10xbf16, #tpu.memory_space<vmem>>, %arg5: memref<1x10xf32, #tpu.memory_space<vmem>>, %arg6: memref<8x10xf32, #tpu.memory_space<vmem>>) attributes {dimension_semantics = [#tpu.dimension_semantics<parallel>], iteration_bounds = array<i64: 1>, scalar_prefetch = 0 : i64, scratch_operands = 0 : i64, tpu.core_type = #tpu.core_type<tc>, window_params = [{transform_indices = @transform_0, window_bounds = array<i64: 8, 768>}, {pipeline_mode = #tpu.pipeline_mode<synchronous>, transform_indices = @transform_1, window_bounds = array<i64: 9, 768, 192>}, {pipeline_mode = #tpu.pipeline_mode<synchronous>, transform_indices = @transform_2, window_bounds = array<i64: 1, 192>}, {pipeline_mode = #tpu.pipeline_mode<synchronous>, transform_indices = @transform_3, window_bounds = array<i64: 192, 10>}, {pipeline_mode = #tpu.pipeline_mode<synchronous>, transform_indices = @transform_4, window_bounds = array<i64: 1, 10>}, {transform_indices = @transform_5, window_bounds = array<i64: 8, 10>}]} {
    %c0 = arith.constant 0 : index
    %c0_0 = arith.constant 0 : index
    %0 = vector.load %arg1[%c0, %c0_0] : memref<8x768xbf16, #tpu.memory_space<vmem>>, vector<8x768xbf16>
    %c0_1 = arith.constant 0 : index
    %c0_2 = arith.constant 0 : index
    %c0_3 = arith.constant 0 : index
    %1 = vector.load %arg2[%c0_1, %c0_2, %c0_3] : memref<9x768x192xbf16, #tpu.memory_space<vmem>>, vector<1x768x192xbf16>
    %2 = vector.shape_cast %1 : vector<1x768x192xbf16> to vector<768x192xbf16>
    %cst = arith.constant dense<0.000000e+00> : vector<8x192xf32>
    %3 = tpu.matmul %0, %2, %cst {dimension_numbers = #tpu.dot_dimension_numbers<[1], [0], [0], [1], [0, 0, 1, 1], [], []>} : vector<8x768xbf16>, vector<768x192xbf16>, vector<8x192xf32> -> vector<8x192xf32>
    %c1 = arith.constant 1 : index
    %c0_4 = arith.constant 0 : index
    %c0_5 = arith.constant 0 : index
    %4 = vector.load %arg2[%c1, %c0_4, %c0_5] : memref<9x768x192xbf16, #tpu.memory_space<vmem>>, vector<1x768x192xbf16>
    %5 = vector.shape_cast %4 : vector<1x768x192xbf16> to vector<768x192xbf16>
    %cst_6 = arith.constant dense<0.000000e+00> : vector<8x192xf32>
    %6 = tpu.matmul %0, %5, %cst_6 {dimension_numbers = #tpu.dot_dimension_numbers<[1], [0], [0], [1], [0, 0, 1, 1], [], []>} : vector<8x768xbf16>, vector<768x192xbf16>, vector<8x192xf32> -> vector<8x192xf32>
    %7 = arith.maximumf %3, %6 : vector<8x192xf32>
    %c2 = arith.constant 2 : index
    %c0_7 = arith.constant 0 : index
    %c0_8 = arith.constant 0 : index
    %8 = vector.load %arg2[%c2, %c0_7, %c0_8] : memref<9x768x192xbf16, #tpu.memory_space<vmem>>, vector<1x768x192xbf16>
    %9 = vector.shape_cast %8 : vector<1x768x192xbf16> to vector<768x192xbf16>
    %cst_9 = arith.constant dense<0.000000e+00> : vector<8x192xf32>
    %10 = tpu.matmul %0, %9, %cst_9 {dimension_numbers = #tpu.dot_dimension_numbers<[1], [0], [0], [1], [0, 0, 1, 1], [], []>} : vector<8x768xbf16>, vector<768x192xbf16>, vector<8x192xf32> -> vector<8x192xf32>
    %11 = arith.maximumf %7, %10 : vector<8x192xf32>
    %c3 = arith.constant 3 : index
    %c0_10 = arith.constant 0 : index
    %c0_11 = arith.constant 0 : index
    %12 = vector.load %arg2[%c3, %c0_10, %c0_11] : memref<9x768x192xbf16, #tpu.memory_space<vmem>>, vector<1x768x192xbf16>
    %13 = vector.shape_cast %12 : vector<1x768x192xbf16> to vector<768x192xbf16>
    %cst_12 = arith.constant dense<0.000000e+00> : vector<8x192xf32>
    %14 = tpu.matmul %0, %13, %cst_12 {dimension_numbers = #tpu.dot_dimension_numbers<[1], [0], [0], [1], [0, 0, 1, 1], [], []>} : vector<8x768xbf16>, vector<768x192xbf16>, vector<8x192xf32> -> vector<8x192xf32>
    %15 = arith.maximumf %11, %14 : vector<8x192xf32>
    %c4 = arith.constant 4 : index
    %c0_13 = arith.constant 0 : index
    %c0_14 = arith.constant 0 : index
    %16 = vector.load %arg2[%c4, %c0_13, %c0_14] : memref<9x768x192xbf16, #tpu.memory_space<vmem>>, vector<1x768x192xbf16>
    %17 = vector.shape_cast %16 : vector<1x768x192xbf16> to vector<768x192xbf16>
    %cst_15 = arith.constant dense<0.000000e+00> : vector<8x192xf32>
    %18 = tpu.matmul %0, %17, %cst_15 {dimension_numbers = #tpu.dot_dimension_numbers<[1], [0], [0], [1], [0, 0, 1, 1], [], []>} : vector<8x768xbf16>, vector<768x192xbf16>, vector<8x192xf32> -> vector<8x192xf32>
    %19 = arith.maximumf %15, %18 : vector<8x192xf32>
    %c5 = arith.constant 5 : index
    %c0_16 = arith.constant 0 : index
    %c0_17 = arith.constant 0 : index
    %20 = vector.load %arg2[%c5, %c0_16, %c0_17] : memref<9x768x192xbf16, #tpu.memory_space<vmem>>, vector<1x768x192xbf16>
    %21 = vector.shape_cast %20 : vector<1x768x192xbf16> to vector<768x192xbf16>
    %cst_18 = arith.constant dense<0.000000e+00> : vector<8x192xf32>
    %22 = tpu.matmul %0, %21, %cst_18 {dimension_numbers = #tpu.dot_dimension_numbers<[1], [0], [0], [1], [0, 0, 1, 1], [], []>} : vector<8x768xbf16>, vector<768x192xbf16>, vector<8x192xf32> -> vector<8x192xf32>
    %23 = arith.maximumf %19, %22 : vector<8x192xf32>
    %c6 = arith.constant 6 : index
    %c0_19 = arith.constant 0 : index
    %c0_20 = arith.constant 0 : index
    %24 = vector.load %arg2[%c6, %c0_19, %c0_20] : memref<9x768x192xbf16, #tpu.memory_space<vmem>>, vector<1x768x192xbf16>
    %25 = vector.shape_cast %24 : vector<1x768x192xbf16> to vector<768x192xbf16>
    %cst_21 = arith.constant dense<0.000000e+00> : vector<8x192xf32>
    %26 = tpu.matmul %0, %25, %cst_21 {dimension_numbers = #tpu.dot_dimension_numbers<[1], [0], [0], [1], [0, 0, 1, 1], [], []>} : vector<8x768xbf16>, vector<768x192xbf16>, vector<8x192xf32> -> vector<8x192xf32>
    %27 = arith.maximumf %23, %26 : vector<8x192xf32>
    %c7 = arith.constant 7 : index
    %c0_22 = arith.constant 0 : index
    %c0_23 = arith.constant 0 : index
    %28 = vector.load %arg2[%c7, %c0_22, %c0_23] : memref<9x768x192xbf16, #tpu.memory_space<vmem>>, vector<1x768x192xbf16>
    %29 = vector.shape_cast %28 : vector<1x768x192xbf16> to vector<768x192xbf16>
    %cst_24 = arith.constant dense<0.000000e+00> : vector<8x192xf32>
    %30 = tpu.matmul %0, %29, %cst_24 {dimension_numbers = #tpu.dot_dimension_numbers<[1], [0], [0], [1], [0, 0, 1, 1], [], []>} : vector<8x768xbf16>, vector<768x192xbf16>, vector<8x192xf32> -> vector<8x192xf32>
    %31 = arith.maximumf %27, %30 : vector<8x192xf32>
    %c8 = arith.constant 8 : index
    %c0_25 = arith.constant 0 : index
    %c0_26 = arith.constant 0 : index
    %32 = vector.load %arg2[%c8, %c0_25, %c0_26] : memref<9x768x192xbf16, #tpu.memory_space<vmem>>, vector<1x768x192xbf16>
    %33 = vector.shape_cast %32 : vector<1x768x192xbf16> to vector<768x192xbf16>
    %cst_27 = arith.constant dense<0.000000e+00> : vector<8x192xf32>
    %34 = tpu.matmul %0, %33, %cst_27 {dimension_numbers = #tpu.dot_dimension_numbers<[1], [0], [0], [1], [0, 0, 1, 1], [], []>} : vector<8x768xbf16>, vector<768x192xbf16>, vector<8x192xf32> -> vector<8x192xf32>
    %35 = arith.maximumf %31, %34 : vector<8x192xf32>
    %c0_28 = arith.constant 0 : index
    %c0_29 = arith.constant 0 : index
    %36 = vector.load %arg3[%c0_28, %c0_29] : memref<1x192xf32, #tpu.memory_space<vmem>>, vector<1x192xf32>
    %37 = vector.broadcast %36 : vector<1x192xf32> to vector<8x192xf32>
    %38 = arith.addf %35, %37 : vector<8x192xf32>
    %cst_30 = arith.constant 0.000000e+00 : f32
    %39 = vector.broadcast %cst_30 : f32 to vector<8x192xf32>
    %40 = arith.maximumf %38, %39 : vector<8x192xf32>
    %41 = arith.truncf %40 : vector<8x192xf32> to vector<8x192xbf16>
    %c0_31 = arith.constant 0 : index
    %c0_32 = arith.constant 0 : index
    %42 = vector.load %arg4[%c0_31, %c0_32] : memref<192x10xbf16, #tpu.memory_space<vmem>>, vector<192x10xbf16>
    %cst_33 = arith.constant dense<0.000000e+00> : vector<8x10xf32>
    %43 = tpu.matmul %41, %42, %cst_33 {dimension_numbers = #tpu.dot_dimension_numbers<[1], [0], [0], [1], [0, 0, 1, 1], [], []>} : vector<8x192xbf16>, vector<192x10xbf16>, vector<8x10xf32> -> vector<8x10xf32>
    %c0_34 = arith.constant 0 : index
    %c0_35 = arith.constant 0 : index
    %44 = vector.load %arg5[%c0_34, %c0_35] : memref<1x10xf32, #tpu.memory_space<vmem>>, vector<1x10xf32>
    %45 = vector.broadcast %44 : vector<1x10xf32> to vector<8x10xf32>
    %46 = arith.addf %43, %45 : vector<8x10xf32>
    %cst_36 = arith.constant dense<0xFF800000> : vector<8xf32>
    %47 = vector.multi_reduction <maximumf>, %46, %cst_36 [1] : vector<8x10xf32> to vector<8xf32>
    %48 = vector.shape_cast %47 : vector<8xf32> to vector<8x1xf32>
    %49 = vector.broadcast %48 : vector<8x1xf32> to vector<8x10xf32>
    %50 = arith.subf %46, %49 : vector<8x10xf32>
    %51 = math.exp %50 : vector<8x10xf32>
    %cst_37 = arith.constant dense<0.000000e+00> : vector<8xf32>
    %52 = vector.multi_reduction <add>, %51, %cst_37 [1] : vector<8x10xf32> to vector<8xf32>
    %53 = vector.shape_cast %52 : vector<8xf32> to vector<8x1xf32>
    %54 = math.log %53 : vector<8x1xf32>
    %55 = vector.broadcast %54 : vector<8x1xf32> to vector<8x10xf32>
    %56 = arith.subf %50, %55 : vector<8x10xf32>
    %c0_38 = arith.constant 0 : index
    %c0_39 = arith.constant 0 : index
    %57 = vector.load %arg6[%c0_38, %c0_39] : memref<8x10xf32, #tpu.memory_space<vmem>>, vector<8x10xf32>
    tpu.vector_store %arg6[%c0_38, %c0_39], %56 {strides = array<i32>} : memref<8x10xf32, #tpu.memory_space<vmem>>, vector<8x10xf32>,
    return
  }
  func.func @transform_0(%arg0: i32) -> (i32, i32) {
    %c0_i32 = arith.constant 0 : i32
    %c0_i32_0 = arith.constant 0 : i32
    return %arg0, %c0_i32 : i32, i32
  }
  func.func @transform_1(%arg0: i32) -> (i32, i32, i32) {
    %c0_i32 = arith.constant 0 : i32
    %c0_i32_0 = arith.constant 0 : i32
    %c0_i32_1 = arith.constant 0 : i32
    %c0_i32_2 = arith.constant 0 : i32
    return %c0_i32, %c0_i32_0, %c0_i32_1 : i32, i32, i32
  }
  func.func @transform_2(%arg0: i32) -> (i32, i32) {
    %c0_i32 = arith.constant 0 : i32
    %c0_i32_0 = arith.constant 0 : i32
    %c0_i32_1 = arith.constant 0 : i32
    return %c0_i32, %c0_i32_0 : i32, i32
  }
  func.func @transform_3(%arg0: i32) -> (i32, i32) {
    %c0_i32 = arith.constant 0 : i32
    %c0_i32_0 = arith.constant 0 : i32
    %c0_i32_1 = arith.constant 0 : i32
    return %c0_i32, %c0_i32_0 : i32, i32
  }
  func.func @transform_4(%arg0: i32) -> (i32, i32) {
    %c0_i32 = arith.constant 0 : i32
    %c0_i32_0 = arith.constant 0 : i32
    %c0_i32_1 = arith.constant 0 : i32
    return %c0_i32, %c0_i32_0 : i32, i32
  }
  func.func @transform_5(%arg0: i32) -> (i32, i32) {
    %c0_i32 = arith.constant 0 : i32
    %c0_i32_0 = arith.constant 0 : i32
    return %arg0, %c0_i32 : i32, i32
  }
}

</mosaic_0001>

<llo_original>
// kernel: convnet_forward.1
$region0: #{convnet_forward.1}
  #allocation0 [shape = 'u32[]', space=smem, size = 0x4, offset = 0x4, fixed_abs, tag = 'smem constant byte address 0x4 - core index']
  #allocation1 [shape = 'u32[144,128]{1,0:T(1,128)}', space=vmem, size = 0x12000, scoped, tag = 'internal scratch']
  %s0 = inlined_call_operand.vmem [shape: bf16[8,768], index: 0, kind: input, shape index: {}]
  %s1 = inlined_call_operand.vmem [shape: bf16[9,768,192], index: 1, kind: input, shape index: {}]
  %s2 = inlined_call_operand.vmem [shape: f32[1,192], index: 2, kind: input, shape index: {}]
  %s3 = inlined_call_operand.vmem [shape: bf16[192,10], index: 3, kind: input, shape index: {}]
  %s4 = inlined_call_operand.vmem [shape: f32[1,10], index: 4, kind: input, shape index: {}]
  %s5 = inlined_call_operand.vmem [shape: f32[8,10], index: 5, kind: output, shape index: {}]
  %s6 = sld [smem:[#allocation0]]
  $region30: #{convnet_forward.1} parent=0
    _
  %s8 = ssub.s32 1, %s6
  %s9 = scalar_select 0, %s8, %s6
  // Predicated region
  $region2: #{convnet_forward.1} parent=0 // pred_check
    _
  $region3: #{convnet_forward.1} parent=0 // pred_check_branch
    %11 = sbr.rel (0) target = $region5
  $region4: #{convnet_forward.1} parent=0 // pred_region
    _
  $region5: #{convnet_forward.1} parent=0 // pred_fallthru
    _
  // Predicated region
  $region6: #{convnet_forward.1} parent=0 // pred_check
    _
  $region7: #{convnet_forward.1} parent=0 // pred_check_branch
    %13 = sbr.rel (0) target = $region9
  $region8: #{convnet_forward.1} parent=0 // pred_region
    _
  $region9: #{convnet_forward.1} parent=0 // pred_fallthru
    _
  // Predicated region
  $region10: #{convnet_forward.1} parent=0 // pred_check
    _
  $region11: #{convnet_forward.1} parent=0 // pred_check_branch
    %15 = sbr.rel (0) target = $region13
  $region12: #{convnet_forward.1} parent=0 // pred_region
    _
  $region13: #{convnet_forward.1} parent=0 // pred_fallthru
    _
  // Predicated region
  $region14: #{convnet_forward.1} parent=0 // pred_check
    _
  $region15: #{convnet_forward.1} parent=0 // pred_check_branch
    %17 = sbr.rel (0) target = $region17
  $region16: #{convnet_forward.1} parent=0 // pred_region
    _
  $region17: #{convnet_forward.1} parent=0 // pred_fallthru
    _
  // Predicated region
  $region18: #{convnet_forward.1} parent=0 // pred_check
    _
  $region19: #{convnet_forward.1} parent=0 // pred_check_branch
    %19 = sbr.rel (0) target = $region21
  $region20: #{convnet_forward.1} parent=0 // pred_region
    _
  $region21: #{convnet_forward.1} parent=0 // pred_fallthru
    _
  %v21 = vld [vmem:[%s0] sm:$0xff]
  %v22 = vld [vmem:[%s0 + $0x8] sm:$0xff]
  %v23 = vld [vmem:[%s0 + $0x10] sm:$0xff]
  %v24 = vld [vmem:[%s1] sm:$0xff]
  %v25 = vld [vmem:[%s1 + $0x8] sm:$0xff]
  %v26 = vld [vmem:[%s1 + $0x10] sm:$0xff]
  %v27 = vld [vmem:[%s1 + $0x18] sm:$0xff]
  %v28 = vld [vmem:[%s1 + $0x20] sm:$0xff]
  %v29 = vld [vmem:[%s1 + $0x28] sm:$0xff]
  %v30 = vld [vmem:[%s1 + $0x30] sm:$0xff]
  %v31 = vld [vmem:[%s1 + $0x38] sm:$0xff]
  %v32 = vld [vmem:[%s1 + $0x40] sm:$0xff]
  %v33 = vld [vmem:[%s1 + $0x48] sm:$0xff]
  %v34 = vld [vmem:[%s1 + $0x50] sm:$0xff]
  %v35 = vld [vmem:[%s1 + $0x58] sm:$0xff]
  %v36 = vld [vmem:[%s1 + $0x60] sm:$0xff]
  %v37 = vld [vmem:[%s1 + $0x68] sm:$0xff]
  %v38 = vld [vmem:[%s1 + $0x70] sm:$0xff]
  %v39 = vld [vmem:[%s1 + $0x78] sm:$0xff]
  %v40 = vld [vmem:[%s1 + $0x80] sm:$0xff]
  %v41 = vld [vmem:[%s1 + $0x88] sm:$0xff]
  %v42 = vld [vmem:[%s1 + $0x90] sm:$0xff]
  %v43 = vld [vmem:[%s1 + $0x98] sm:$0xff]
  %v44 = vld [vmem:[%s1 + $0xa0] sm:$0xff]
  %v45 = vld [vmem:[%s1 + $0xa8] sm:$0xff]
  %v46 = vld [vmem:[%s1 + $0xb0] sm:$0xff]
  %v47 = vld [vmem:[%s1 + $0xb8] sm:$0xff]
  %v48 = vld [vmem:[%s1 + $0xc0] sm:$0xff]
  %v49 = vld [vmem:[%s1 + $0xc8] sm:$0xff]
  %v50 = vld [vmem:[%s1 + $0xd0] sm:$0xff]
  %v51 = vld [vmem:[%s1 + $0xd8] sm:$0xff]
  %v52 = vld [vmem:[%s1 + $0xe0] sm:$0xff]
  %v53 = vld [vmem:[%s1 + $0xe8] sm:$0xff]
  %v54 = vld [vmem:[%s1 + $0xf0] sm:$0xff]
  %v55 = vld [vmem:[%s1 + $0xf8] sm:$0xff]
  %v56 = vld [vmem:[%s1 + $0x100] sm:$0xff]
  %v57 = vld [vmem:[%s1 + $0x108] sm:$0xff]
  %v58 = vld [vmem:[%s1 + $0x110] sm:$0xff]
  %v59 = vld [vmem:[%s1 + $0x118] sm:$0xff]
  %v60 = vld [vmem:[%s1 + $0x120] sm:$0xff]
  %v61 = vld [vmem:[%s1 + $0x128] sm:$0xff]
  %v62 = vld [vmem:[%s1 + $0x130] sm:$0xff]
  %v63 = vld [vmem:[%s1 + $0x138] sm:$0xff]
  %v64 = vld [vmem:[%s1 + $0x140] sm:$0xff]
  %v65 = vld [vmem:[%s1 + $0x148] sm:$0xff]
  %v66 = vld [vmem:[%s1 + $0x150] sm:$0xff]
  %v67 = vld [vmem:[%s1 + $0x158] sm:$0xff]
  %v68 = vld [vmem:[%s1 + $0x160] sm:$0xff]
  %v69 = vld [vmem:[%s1 + $0x168] sm:$0xff]
  %v70 = vld [vmem:[%s1 + $0x170] sm:$0xff]
  %v71 = vld [vmem:[%s1 + $0x178] sm:$0xff]
  %v72 = vld [vmem:[%s1 + $0x180] sm:$0xff]
  %v73 = vld [vmem:[%s1 + $0x188] sm:$0xff]
  %v74 = vld [vmem:[%s1 + $0x190] sm:$0xff]
  %v75 = vld [vmem:[%s1 + $0x198] sm:$0xff]
  %v76 = vld [vmem:[%s1 + $0x1a0] sm:$0xff]
  %v77 = vld [vmem:[%s1 + $0x1a8] sm:$0xff]
  %v78 = vld [vmem:[%s1 + $0x1b0] sm:$0xff]
  %v79 = vld [vmem:[%s1 + $0x1b8] sm:$0xff]
  %v80 = vld [vmem:[%s1 + $0x1c0] sm:$0xff]
  %v81 = vld [vmem:[%s1 + $0x1c8] sm:$0xff]
  %v82 = vld [vmem:[%s1 + $0x1d0] sm:$0xff]
  %v83 = vld [vmem:[%s1 + $0x1d8] sm:$0xff]
  %v84 = vld [vmem:[%s1 + $0x1e0] sm:$0xff]
  %v85 = vld [vmem:[%s1 + $0x1e8] sm:$0xff]
  %v86 = vld [vmem:[%s1 + $0x1f0] sm:$0xff]
  %v87 = vld [vmem:[%s1 + $0x1f8] sm:$0xff]
  %v88 = vld [vmem:[%s1 + $0x200] sm:$0xff]
  %v89 = vld [vmem:[%s1 + $0x208] sm:$0xff]
  %v90 = vld [vmem:[%s1 + $0x210] sm:$0xff]
  %v91 = vld [vmem:[%s1 + $0x218] sm:$0xff]
  %v92 = vld [vmem:[%s1 + $0x220] sm:$0xff]
  %v93 = vld [vmem:[%s1 + $0x228] sm:$0xff]
  %v94 = vld [vmem:[%s1 + $0x230] sm:$0xff]
  %v95 = vld [vmem:[%s1 + $0x238] sm:$0xff]
  %v96 = vld [vmem:[%s1 + $0x240] sm:$0xff]
  %v97 = vld [vmem:[%s1 + $0x248] sm:$0xff]
  %v98 = vld [vmem:[%s1 + $0x250] sm:$0xff]
  %v99 = vld [vmem:[%s1 + $0x258] sm:$0xff]
  %v100 = vld [vmem:[%s1 + $0x260] sm:$0xff]
  %v101 = vld [vmem:[%s1 + $0x268] sm:$0xff]
  %v102 = vld [vmem:[%s1 + $0x270] sm:$0xff]
  %v103 = vld [vmem:[%s1 + $0x278] sm:$0xff]
  %v104 = vld [vmem:[%s1 + $0x280] sm:$0xff]
  %v105 = vld [vmem:[%s1 + $0x288] sm:$0xff]
  %v106 = vld [vmem:[%s1 + $0x290] sm:$0xff]
  %v107 = vld [vmem:[%s1 + $0x298] sm:$0xff]
  %v108 = vld [vmem:[%s1 + $0x2a0] sm:$0xff]
  %v109 = vld [vmem:[%s1 + $0x2a8] sm:$0xff]
  %v110 = vld [vmem:[%s1 + $0x2b0] sm:$0xff]
  %v111 = vld [vmem:[%s1 + $0x2b8] sm:$0xff]
  %v112 = vld [vmem:[%s1 + $0x2c0] sm:$0xff]
  %v113 = vld [vmem:[%s1 + $0x2c8] sm:$0xff]
  %v114 = vld [vmem:[%s1 + $0x2d0] sm:$0xff]
  %v115 = vld [vmem:[%s1 + $0x2d8] sm:$0xff]
  %v116 = vld [vmem:[%s1 + $0x2e0] sm:$0xff]
  %v117 = vld [vmem:[%s1 + $0x2e8] sm:$0xff]
  %v118 = vld [vmem:[%s1 + $0x2f0] sm:$0xff]
  %v119 = vld [vmem:[%s1 + $0x2f8] sm:$0xff]
  %v123 = vunpack.c.l.b16 %v21
  %v124 = vunpack.c.h.b16 %v21
  %v125 = vunpack.c.l.b16 %v22
  %v126 = vunpack.c.h.b16 %v22
  %v127 = vunpack.c.l.b16 %v23
  %v128 = vunpack.c.h.b16 %v23
  %v129 = vpack.c.b16 %v123, %v123
  %v130 = vpack.c.b16 %v124, %v124
  %v131 = vpack.c.b16 %v125, %v125
  %v132 = vpack.c.b16 %v126, %v126
  %v133 = vpack.c.b16 %v127, %v127
  %v134 = vpack.c.b16 %v128, %v128
  %v237 = vunpack.c.l.b16 %v24
  %v238 = vunpack.c.h.b16 %v24
  %v239 = vunpack.c.l.b16 %v25
  %v240 = vunpack.c.h.b16 %v25
  %v241 = vunpack.c.l.b16 %v26
  %v242 = vunpack.c.h.b16 %v26
  %v243 = vunpack.c.l.b16 %v27
  %v244 = vunpack.c.h.b16 %v27
  %v245 = vunpack.c.l.b16 %v28
  %v246 = vunpack.c.h.b16 %v28
  %v247 = vunpack.c.l.b16 %v29
  %v248 = vunpack.c.h.b16 %v29
  %v249 = vunpack.c.l.b16 %v30
  %v250 = vunpack.c.h.b16 %v30
  %v251 = vunpack.c.l.b16 %v31
  %v252 = vunpack.c.h.b16 %v31
  %v253 = vunpack.c.l.b16 %v32
  %v254 = vunpack.c.h.b16 %v32
  %v255 = vunpack.c.l.b16 %v33
  %v256 = vunpack.c.h.b16 %v33
  %v257 = vunpack.c.l.b16 %v34
  %v258 = vunpack.c.h.b16 %v34
  %v259 = vunpack.c.l.b16 %v35
  %v260 = vunpack.c.h.b16 %v35
  %v261 = vunpack.c.l.b16 %v36
  %v262 = vunpack.c.h.b16 %v36
  %v263 = vunpack.c.l.b16 %v37
  %v264 = vunpack.c.h.b16 %v37
  %v265 = vunpack.c.l.b16 %v38
  %v266 = vunpack.c.h.b16 %v38
  %v267 = vunpack.c.l.b16 %v39
  %v268 = vunpack.c.h.b16 %v39
  %v269 = vunpack.c.l.b16 %v40
  %v270 = vunpack.c.h.b16 %v40
  %v271 = vunpack.c.l.b16 %v41
  %v272 = vunpack.c.h.b16 %v41
  %v273 = vunpack.c.l.b16 %v42
  %v274 = vunpack.c.h.b16 %v42
  %v275 = vunpack.c.l.b16 %v43
  %v276 = vunpack.c.h.b16 %v43
  %v277 = vunpack.c.l.b16 %v44
  %v278 = vunpack.c.h.b16 %v44
  %v279 = vunpack.c.l.b16 %v45
  %v280 = vunpack.c.h.b16 %v45
  %v281 = vunpack.c.l.b16 %v46
  %v282 = vunpack.c.h.b16 %v46
  %v283 = vunpack.c.l.b16 %v47
  %v284 = vunpack.c.h.b16 %v47
  %v285 = vunpack.c.l.b16 %v48
  %v286 = vunpack.c.h.b16 %v48
  %v287 = vunpack.c.l.b16 %v49
  %v288 = vunpack.c.h.b16 %v49
  %v289 = vunpack.c.l.b16 %v50
  %v290 = vunpack.c.h.b16 %v50
  %v291 = vunpack.c.l.b16 %v51
  %v292 = vunpack.c.h.b16 %v51
  %v293 = vunpack.c.l.b16 %v52
  %v294 = vunpack.c.h.b16 %v52
  %v295 = vunpack.c.l.b16 %v53
  %v296 = vunpack.c.h.b16 %v53
  %v297 = vunpack.c.l.b16 %v54
  %v298 = vunpack.c.h.b16 %v54
  %v299 = vunpack.c.l.b16 %v55
  %v300 = vunpack.c.h.b16 %v55
  %v301 = vunpack.c.l.b16 %v56
  %v302 = vunpack.c.h.b16 %v56
  %v303 = vunpack.c.l.b16 %v57
  %v304 = vunpack.c.h.b16 %v57
  %v305 = vunpack.c.l.b16 %v58
  %v306 = vunpack.c.h.b16 %v58
  %v307 = vunpack.c.l.b16 %v59
  %v308 = vunpack.c.h.b16 %v59
  %v309 = vunpack.c.l.b16 %v60
  %v310 = vunpack.c.h.b16 %v60
  %v311 = vunpack.c.l.b16 %v61
  %v312 = vunpack.c.h.b16 %v61
  %v313 = vunpack.c.l.b16 %v62
  %v314 = vunpack.c.h.b16 %v62
  %v315 = vunpack.c.l.b16 %v63
  %v316 = vunpack.c.h.b16 %v63
  %v317 = vunpack.c.l.b16 %v64
  %v318 = vunpack.c.h.b16 %v64
  %v319 = vunpack.c.l.b16 %v65
  %v320 = vunpack.c.h.b16 %v65
  %v321 = vunpack.c.l.b16 %v66
  %v322 = vunpack.c.h.b16 %v66
  %v323 = vunpack.c.l.b16 %v67
  %v324 = vunpack.c.h.b16 %v67
  %v325 = vunpack.c.l.b16 %v68
  %v326 = vunpack.c.h.b16 %v68
  %v327 = vunpack.c.l.b16 %v69
  %v328 = vunpack.c.h.b16 %v69
  %v329 = vunpack.c.l.b16 %v70
  %v330 = vunpack.c.h.b16 %v70
  %v331 = vunpack.c.l.b16 %v71
  %v332 = vunpack.c.h.b16 %v71
  %v333 = vunpack.c.l.b16 %v72
  %v334 = vunpack.c.h.b16 %v72
  %v335 = vunpack.c.l.b16 %v73
  %v336 = vunpack.c.h.b16 %v73
  %v337 = vunpack.c.l.b16 %v74
  %v338 = vunpack.c.h.b16 %v74
  %v339 = vunpack.c.l.b16 %v75
  %v340 = vunpack.c.h.b16 %v75
  %v341 = vunpack.c.l.b16 %v76
  %v342 = vunpack.c.h.b16 %v76
  %v343 = vunpack.c.l.b16 %v77
  %v344 = vunpack.c.h.b16 %v77
  %v345 = vunpack.c.l.b16 %v78
  %v346 = vunpack.c.h.b16 %v78
  %v347 = vunpack.c.l.b16 %v79
  %v348 = vunpack.c.h.b16 %v79
  %v349 = vunpack.c.l.b16 %v80
  %v350 = vunpack.c.h.b16 %v80
  %v351 = vunpack.c.l.b16 %v81
  %v352 = vunpack.c.h.b16 %v81
  %v353 = vunpack.c.l.b16 %v82
  %v354 = vunpack.c.h.b16 %v82
  %v355 = vunpack.c.l.b16 %v83
  %v356 = vunpack.c.h.b16 %v83
  %v357 = vunpack.c.l.b16 %v84
  %v358 = vunpack.c.h.b16 %v84
  %v359 = vunpack.c.l.b16 %v85
  %v360 = vunpack.c.h.b16 %v85
  %v361 = vunpack.c.l.b16 %v86
  %v362 = vunpack.c.h.b16 %v86
  %v363 = vunpack.c.l.b16 %v87
  %v364 = vunpack.c.h.b16 %v87
  %v365 = vunpack.c.l.b16 %v88
  %v366 = vunpack.c.h.b16 %v88
  %v367 = vunpack.c.l.b16 %v89
  %v368 = vunpack.c.h.b16 %v89
  %v369 = vunpack.c.l.b16 %v90
  %v370 = vunpack.c.h.b16 %v90
  %v371 = vunpack.c.l.b16 %v91
  %v372 = vunpack.c.h.b16 %v91
  %v373 = vunpack.c.l.b16 %v92
  %v374 = vunpack.c.h.b16 %v92
  %v375 = vunpack.c.l.b16 %v93
  %v376 = vunpack.c.h.b16 %v93
  %v377 = vunpack.c.l.b16 %v94
  %v378 = vunpack.c.h.b16 %v94
  %v379 = vunpack.c.l.b16 %v95
  %v380 = vunpack.c.h.b16 %v95
  %v381 = vunpack.c.l.b16 %v96
  %v382 = vunpack.c.h.b16 %v96
  %v383 = vunpack.c.l.b16 %v97
  %v384 = vunpack.c.h.b16 %v97
  %v385 = vunpack.c.l.b16 %v98
  %v386 = vunpack.c.h.b16 %v98
  %v387 = vunpack.c.l.b16 %v99
  %v388 = vunpack.c.h.b16 %v99
  %v389 = vunpack.c.l.b16 %v100
  %v390 = vunpack.c.h.b16 %v100
  %v391 = vunpack.c.l.b16 %v101
  %v392 = vunpack.c.h.b16 %v101
  %v393 = vunpack.c.l.b16 %v102
  %v394 = vunpack.c.h.b16 %v102
  %v395 = vunpack.c.l.b16 %v103
  %v396 = vunpack.c.h.b16 %v103
  %v397 = vunpack.c.l.b16 %v104
  %v398 = vunpack.c.h.b16 %v104
  %v399 = vunpack.c.l.b16 %v105
  %v400 = vunpack.c.h.b16 %v105
  %v401 = vunpack.c.l.b16 %v106
  %v402 = vunpack.c.h.b16 %v106
  %v403 = vunpack.c.l.b16 %v107
  %v404 = vunpack.c.h.b16 %v107
  %v405 = vunpack.c.l.b16 %v108
  %v406 = vunpack.c.h.b16 %v108
  %v407 = vunpack.c.l.b16 %v109
  %v408 = vunpack.c.h.b16 %v109
  %v409 = vunpack.c.l.b16 %v110
  %v410 = vunpack.c.h.b16 %v110
  %v411 = vunpack.c.l.b16 %v111
  %v412 = vunpack.c.h.b16 %v111
  %v413 = vunpack.c.l.b16 %v112
  %v414 = vunpack.c.h.b16 %v112
  %v415 = vunpack.c.l.b16 %v113
  %v416 = vunpack.c.h.b16 %v113
  %v417 = vunpack.c.l.b16 %v114
  %v418 = vunpack.c.h.b16 %v114
  %v419 = vunpack.c.l.b16 %v115
  %v420 = vunpack.c.h.b16 %v115
  %v421 = vunpack.c.l.b16 %v116
  %v422 = vunpack.c.h.b16 %v116
  %v423 = vunpack.c.l.b16 %v117
  %v424 = vunpack.c.h.b16 %v117
  %v425 = vunpack.c.l.b16 %v118
  %v426 = vunpack.c.h.b16 %v118
  %v427 = vunpack.c.l.b16 %v119
  %v428 = vunpack.c.h.b16 %v119
  %v429 = vpack.c.b16 %v239, %v237
  %v430 = vpack.c.b16 %v240, %v238
  %v431 = vpack.c.b16 %v243, %v241
  %v432 = vpack.c.b16 %v244, %v242
  %v433 = vpack.c.b16 %v247, %v245
  %v434 = vpack.c.b16 %v248, %v246
  %v435 = vpack.c.b16 %v251, %v249
  %v436 = vpack.c.b16 %v252, %v250
  %v437 = vpack.c.b16 %v255, %v253
  %v438 = vpack.c.b16 %v256, %v254
  %v439 = vpack.c.b16 %v259, %v257
  %v440 = vpack.c.b16 %v260, %v258
  %v441 = vpack.c.b16 %v263, %v261
  %v442 = vpack.c.b16 %v264, %v262
  %v443 = vpack.c.b16 %v267, %v265
  %v444 = vpack.c.b16 %v268, %v266
  %v445 = vpack.c.b16 %v271, %v269
  %v446 = vpack.c.b16 %v272, %v270
  %v447 = vpack.c.b16 %v275, %v273
  %v448 = vpack.c.b16 %v276, %v274
  %v449 = vpack.c.b16 %v279, %v277
  %v450 = vpack.c.b16 %v280, %v278
  %v451 = vpack.c.b16 %v283, %v281
  %v452 = vpack.c.b16 %v284, %v282
  %v453 = vpack.c.b16 %v287, %v285
  %v454 = vpack.c.b16 %v288, %v286
  %v455 = vpack.c.b16 %v291, %v289
  %v456 = vpack.c.b16 %v292, %v290
  %v457 = vpack.c.b16 %v295, %v293
  %v458 = vpack.c.b16 %v296, %v294
  %v459 = vpack.c.b16 %v299, %v297
  %v460 = vpack.c.b16 %v300, %v298
  %v461 = vpack.c.b16 %v303, %v301
  %v462 = vpack.c.b16 %v304, %v302
  %v463 = vpack.c.b16 %v307, %v305
  %v464 = vpack.c.b16 %v308, %v306
  %v465 = vpack.c.b16 %v311, %v309
  %v466 = vpack.c.b16 %v312, %v310
  %v467 = vpack.c.b16 %v315, %v313
  %v468 = vpack.c.b16 %v316, %v314
  %v469 = vpack.c.b16 %v319, %v317
  %v470 = vpack.c.b16 %v320, %v318
  %v471 = vpack.c.b16 %v323, %v321
  %v472 = vpack.c.b16 %v324, %v322
  %v473 = vpack.c.b16 %v327, %v325
  %v474 = vpack.c.b16 %v328, %v326
  %v475 = vpack.c.b16 %v331, %v329
  %v476 = vpack.c.b16 %v332, %v330
  %v477 = vpack.c.b16 %v335, %v333
  %v478 = vpack.c.b16 %v336, %v334
  %v479 = vpack.c.b16 %v339, %v337
  %v480 = vpack.c.b16 %v340, %v338
  %v481 = vpack.c.b16 %v343, %v341
  %v482 = vpack.c.b16 %v344, %v342
  %v483 = vpack.c.b16 %v347, %v345
  %v484 = vpack.c.b16 %v348, %v346
  %v485 = vpack.c.b16 %v351, %v349
  %v486 = vpack.c.b16 %v352, %v350
  %v487 = vpack.c.b16 %v355, %v353
  %v488 = vpack.c.b16 %v356, %v354
  %v489 = vpack.c.b16 %v359, %v357
  %v490 = vpack.c.b16 %v360, %v358
  %v491 = vpack.c.b16 %v363, %v361
  %v492 = vpack.c.b16 %v364, %v362
  %v493 = vpack.c.b16 %v367, %v365
  %v494 = vpack.c.b16 %v368, %v366
  %v495 = vpack.c.b16 %v371, %v369
  %v496 = vpack.c.b16 %v372, %v370
  %v497 = vpack.c.b16 %v375, %v373
  %v498 = vpack.c.b16 %v376, %v374
  %v499 = vpack.c.b16 %v379, %v377
  %v500 = vpack.c.b16 %v380, %v378
  %v501 = vpack.c.b16 %v383, %v381
  %v502 = vpack.c.b16 %v384, %v382
  %v503 = vpack.c.b16 %v387, %v385
  %v504 = vpack.c.b16 %v388, %v386
  %v505 = vpack.c.b16 %v391, %v389
  %v506 = vpack.c.b16 %v392, %v390
  %v507 = vpack.c.b16 %v395, %v393
  %v508 = vpack.c.b16 %v396, %v394
  %v509 = vpack.c.b16 %v399, %v397
  %v510 = vpack.c.b16 %v400, %v398
  %v511 = vpack.c.b16 %v403, %v401
  %v512 = vpack.c.b16 %v404, %v402
  %v513 = vpack.c.b16 %v407, %v405
  %v514 = vpack.c.b16 %v408, %v406
  %v515 = vpack.c.b16 %v411, %v409
  %v516 = vpack.c.b16 %v412, %v410
  %v517 = vpack.c.b16 %v415, %v413
  %v518 = vpack.c.b16 %v416, %v414
  %v519 = vpack.c.b16 %v419, %v417
  %v520 = vpack.c.b16 %v420, %v418
  %v521 = vpack.c.b16 %v423, %v421
  %v522 = vpack.c.b16 %v424, %v422
  %v523 = vpack.c.b16 %v427, %v425
  %v524 = vpack.c.b16 %v428, %v426
  %621 = vmatprep.subr.bf16.mxu0 %v430
  %622 = vmatpush1.bf16.msra.mxu0 %v429
  %623 = vmatprep.subr.bf16.mxu0 %v432
  %624 = vmatpush1.bf16.msra.mxu0 %v431
  %625 = vmatprep.subr.bf16.mxu0 %v434
  %626 = vmatpush1.bf16.msra.mxu0 %v433
  %627 = vmatprep.subr.bf16.mxu0 %v436
  %628 = vmatpush1.bf16.msra.mxu0 %v435
  %629 = vmatprep.subr.bf16.mxu0 %v438
  %630 = vmatpush1.bf16.msra.mxu0 %v437
  %631 = vmatprep.subr.bf16.mxu0 %v440
  %632 = vmatpush1.bf16.msra.mxu0 %v439
  %633 = vmatprep.subr.bf16.mxu0 %v442
  %634 = vmatpush1.bf16.msra.mxu0 %v441
  %635 = vmatprep.subr.bf16.mxu0 %v444
  %636 = vmatpush1.bf16.msra.mxu0 %v443
  %637 = vmatprep.subr.bf16.mxu0 %v446
  %638 = vmatpush1.bf16.msra.mxu0 %v445
  %639 = vmatprep.subr.bf16.mxu0 %v448
  %640 = vmatpush1.bf16.msra.mxu0 %v447
  %641 = vmatprep.subr.bf16.mxu0 %v450
  %642 = vmatpush1.bf16.msra.mxu0 %v449
  %643 = vmatprep.subr.bf16.mxu0 %v452
  %644 = vmatpush1.bf16.msra.mxu0 %v451
  %645 = vmatprep.subr.bf16.mxu0 %v454
  %646 = vmatpush1.bf16.msra.mxu0 %v453
  %647 = vmatprep.subr.bf16.mxu0 %v456
  %648 = vmatpush1.bf16.msra.mxu0 %v455
  %649 = vmatprep.subr.bf16.mxu0 %v458
  %650 = vmatpush1.bf16.msra.mxu0 %v457
  %651 = vmatprep.subr.bf16.mxu0 %v460
  %652 = vmatpush1.bf16.msra.mxu0 %v459
  %653 = vmatprep.mubr.bf16.mxu0 %v130
  %654 = vmatmul.mubr.bf16.gmra.mrb[0].mxu0 %v129
  %v655 = vpop.f32.mrb[0].mxu0
  %v656 = vadd.f32 0.0, %v655
  %v657 = vpop.f32.mrb[0].mxu0
  %v658 = vadd.f32 0.0, %v657
  %v659 = vpop.f32.mrb[0].mxu0
  %v660 = vpop.f32.mrb[0].mxu0
  %661 = vdwg.mxu0
  %662 = vmatprep.subr.bf16.mxu0 %v462
  %663 = vmatpush1.bf16.msra.mxu0 %v461
  %664 = vmatprep.subr.bf16.mxu0 %v464
  %665 = vmatpush1.bf16.msra.mxu0 %v463
  %666 = vmatprep.subr.bf16.mxu0 %v466
  %667 = vmatpush1.bf16.msra.mxu0 %v465
  %668 = vmatprep.subr.bf16.mxu0 %v468
  %669 = vmatpush1.bf16.msra.mxu0 %v467
  %670 = vmatprep.subr.bf16.mxu0 %v470
  %671 = vmatpush1.bf16.msra.mxu0 %v469
  %672 = vmatprep.subr.bf16.mxu0 %v472
  %673 = vmatpush1.bf16.msra.mxu0 %v471
  %674 = vmatprep.subr.bf16.mxu0 %v474
  %675 = vmatpush1.bf16.msra.mxu0 %v473
  %676 = vmatprep.subr.bf16.mxu0 %v476
  %677 = vmatpush1.bf16.msra.mxu0 %v475
  %678 = vmatprep.subr.bf16.mxu0 %v478
  %679 = vmatpush1.bf16.msra.mxu0 %v477
  %680 = vmatprep.subr.bf16.mxu0 %v480
  %681 = vmatpush1.bf16.msra.mxu0 %v479
  %682 = vmatprep.subr.bf16.mxu0 %v482
  %683 = vmatpush1.bf16.msra.mxu0 %v481
  %684 = vmatprep.subr.bf16.mxu0 %v484
  %685 = vmatpush1.bf16.msra.mxu0 %v483
  %686 = vmatprep.subr.bf16.mxu0 %v486
  %687 = vmatpush1.bf16.msra.mxu0 %v485
  %688 = vmatprep.subr.bf16.mxu0 %v488
  %689 = vmatpush1.bf16.msra.mxu0 %v487
  %690 = vmatprep.subr.bf16.mxu0 %v490
  %691 = vmatpush1.bf16.msra.mxu0 %v489
  %692 = vmatprep.subr.bf16.mxu0 %v492
  %693 = vmatpush1.bf16.msra.mxu0 %v491
  %694 = vmatprep.mubr.bf16.mxu0 %v132
  %695 = vmatmul.mubr.bf16.gmra.mrb[0].mxu0 %v131
  %v696 = vpop.f32.mrb[0].mxu0
  %v697 = vadd.f32 %v656, %v696
  %v698 = vpop.f32.mrb[0].mxu0
  %v699 = vadd.f32 %v658, %v698
  %v700 = vpop.f32.mrb[0].mxu0
  %v701 = vpop.f32.mrb[0].mxu0
  %702 = vdwg.mxu0
  %703 = vmatprep.subr.bf16.mxu0 %v494
  %704 = vmatpush1.bf16.msra.mxu0 %v493
  %705 = vmatprep.subr.bf16.mxu0 %v496
  %706 = vmatpush1.bf16.msra.mxu0 %v495
  %707 = vmatprep.subr.bf16.mxu0 %v498
  %708 = vmatpush1.bf16.msra.mxu0 %v497
  %709 = vmatprep.subr.bf16.mxu0 %v500
  %710 = vmatpush1.bf16.msra.mxu0 %v499
  %711 = vmatprep.subr.bf16.mxu0 %v502
  %712 = vmatpush1.bf16.msra.mxu0 %v501
  %713 = vmatprep.subr.bf16.mxu0 %v504
  %714 = vmatpush1.bf16.msra.mxu0 %v503
  %715 = vmatprep.subr.bf16.mxu0 %v506
  %716 = vmatpush1.bf16.msra.mxu0 %v505
  %717 = vmatprep.subr.bf16.mxu0 %v508
  %718 = vmatpush1.bf16.msra.mxu0 %v507
  %719 = vmatprep.subr.bf16.mxu0 %v510
  %720 = vmatpush1.bf16.msra.mxu0 %v509
  %721 = vmatprep.subr.bf16.mxu0 %v512
  %722 = vmatpush1.bf16.msra.mxu0 %v511
  %723 = vmatprep.subr.bf16.mxu0 %v514
  %724 = vmatpush1.bf16.msra.mxu0 %v513
  %725 = vmatprep.subr.bf16.mxu0 %v516
  %726 = vmatpush1.bf16.msra.mxu0 %v515
  %727 = vmatprep.subr.bf16.mxu0 %v518
  %728 = vmatpush1.bf16.msra.mxu0 %v517
  %729 = vmatprep.subr.bf16.mxu0 %v520
  %730 = vmatpush1.bf16.msra.mxu0 %v519
  %731 = vmatprep.subr.bf16.mxu0 %v522
  %732 = vmatpush1.bf16.msra.mxu0 %v521
  %733 = vmatprep.subr.bf16.mxu0 %v524
  %734 = vmatpush1.bf16.msra.mxu0 %v523
  %735 = vmatprep.mubr.bf16.mxu0 %v134
  %736 = vmatmul.mubr.bf16.gmra.mrb[0].mxu0 %v133
  %v737 = vpop.f32.mrb[0].mxu0
  %v738 = vadd.f32 %v697, %v737
  %v739 = vpop.f32.mrb[0].mxu0
  %v740 = vadd.f32 %v699, %v739
  %v741 = vpop.f32.mrb[0].mxu0
  %v742 = vpop.f32.mrb[0].mxu0
  %743 = vdwg.mxu0
  %s744 = scalar_lea.vmem %s1, 768
  %v745 = vld [vmem:[%s744] sm:$0xff]
  %v746 = vld [vmem:[%s744 + $0x8] sm:$0xff]
  %v747 = vld [vmem:[%s744 + $0x10] sm:$0xff]
  %v748 = vld [vmem:[%s744 + $0x18] sm:$0xff]
  %v749 = vld [vmem:[%s744 + $0x20] sm:$0xff]
  %v750 = vld [vmem:[%s744 + $0x28] sm:$0xff]
  %v751 = vld [vmem:[%s744 + $0x30] sm:$0xff]
  %v752 = vld [vmem:[%s744 + $0x38] sm:$0xff]
  %v753 = vld [vmem:[%s744 + $0x40] sm:$0xff]
  %v754 = vld [vmem:[%s744 + $0x48] sm:$0xff]
  %v755 = vld [vmem:[%s744 + $0x50] sm:$0xff]
  %v756 = vld [vmem:[%s744 + $0x58] sm:$0xff]
  %v757 = vld [vmem:[%s744 + $0x60] sm:$0xff]
  %v758 = vld [vmem:[%s744 + $0x68] sm:$0xff]
  %v759 = vld [vmem:[%s744 + $0x70] sm:$0xff]
  %v760 = vld [vmem:[%s744 + $0x78] sm:$0xff]
  %v761 = vld [vmem:[%s744 + $0x80] sm:$0xff]
  %v762 = vld [vmem:[%s744 + $0x88] sm:$0xff]
  %v763 = vld [vmem:[%s744 + $0x90] sm:$0xff]
  %v764 = vld [vmem:[%s744 + $0x98] sm:$0xff]
  %v765 = vld [vmem:[%s744 + $0xa0] sm:$0xff]
  %v766 = vld [vmem:[%s744 + $0xa8] sm:$0xff]
  %v767 = vld [vmem:[%s744 + $0xb0] sm:$0xff]
  %v768 = vld [vmem:[%s744 + $0xb8] sm:$0xff]
  %v769 = vld [vmem:[%s744 + $0xc0] sm:$0xff]
  %v770 = vld [vmem:[%s744 + $0xc8] sm:$0xff]
  %v771 = vld [vmem:[%s744 + $0xd0] sm:$0xff]
  %v772 = vld [vmem:[%s744 + $0xd8] sm:$0xff]
  %v773 = vld [vmem:[%s744 + $0xe0] sm:$0xff]
  %v774 = vld [vmem:[%s744 + $0xe8] sm:$0xff]
  %v775 = vld [vmem:[%s744 + $0xf0] sm:$0xff]
  %v776 = vld [vmem:[%s744 + $0xf8] sm:$0xff]
  %v777 = vld [vmem:[%s744 + $0x100] sm:$0xff]
  %v778 = vld [vmem:[%s744 + $0x108] sm:$0xff]
  %v779 = vld [vmem:[%s744 + $0x110] sm:$0xff]
  %v780 = vld [vmem:[%s744 + $0x118] sm:$0xff]
  %v781 = vld [vmem:[%s744 + $0x120] sm:$0xff]
  %v782 = vld [vmem:[%s744 + $0x128] sm:$0xff]
  %v783 = vld [vmem:[%s744 + $0x130] sm:$0xff]
  %v784 = vld [vmem:[%s744 + $0x138] sm:$0xff]
  %v785 = vld [vmem:[%s744 + $0x140] sm:$0xff]
  %v786 = vld [vmem:[%s744 + $0x148] sm:$0xff]
  %v787 = vld [vmem:[%s744 + $0x150] sm:$0xff]
  %v788 = vld [vmem:[%s744 + $0x158] sm:$0xff]
  %v789 = vld [vmem:[%s744 + $0x160] sm:$0xff]
  %v790 = vld [vmem:[%s744 + $0x168] sm:$0xff]
  %v791 = vld [vmem:[%s744 + $0x170] sm:$0xff]
  %v792 = vld [vmem:[%s744 + $0x178] sm:$0xff]
  %v793 = vld [vmem:[%s744 + $0x180] sm:$0xff]
  %v794 = vld [vmem:[%s744 + $0x188] sm:$0xff]
  %v795 = vld [vmem:[%s744 + $0x190] sm:$0xff]
  %v796 = vld [vmem:[%s744 + $0x198] sm:$0xff]
  %v797 = vld [vmem:[%s744 + $0x1a0] sm:$0xff]
  %v798 = vld [vmem:[%s744 + $0x1a8] sm:$0xff]
  %v799 = vld [vmem:[%s744 + $0x1b0] sm:$0xff]
  %v800 = vld [vmem:[%s744 + $0x1b8] sm:$0xff]
  %v801 = vld [vmem:[%s744 + $0x1c0] sm:$0xff]
  %v802 = vld [vmem:[%s744 + $0x1c8] sm:$0xff]
  %v803 = vld [vmem:[%s744 + $0x1d0] sm:$0xff]
  %v804 = vld [vmem:[%s744 + $0x1d8] sm:$0xff]
  %v805 = vld [vmem:[%s744 + $0x1e0] sm:$0xff]
  %v806 = vld [vmem:[%s744 + $0x1e8] sm:$0xff]
  %v807 = vld [vmem:[%s744 + $0x1f0] sm:$0xff]
  %v808 = vld [vmem:[%s744 + $0x1f8] sm:$0xff]
  %v809 = vld [vmem:[%s744 + $0x200] sm:$0xff]
  %v810 = vld [vmem:[%s744 + $0x208] sm:$0xff]
  %v811 = vld [vmem:[%s744 + $0x210] sm:$0xff]
  %v812 = vld [vmem:[%s744 + $0x218] sm:$0xff]
  %v813 = vld [vmem:[%s744 + $0x220] sm:$0xff]
  %v814 = vld [vmem:[%s744 + $0x228] sm:$0xff]
  %v815 = vld [vmem:[%s744 + $0x230] sm:$0xff]
  %v816 = vld [vmem:[%s744 + $0x238] sm:$0xff]
  %v817 = vld [vmem:[%s744 + $0x240] sm:$0xff]
  %v818 = vld [vmem:[%s744 + $0x248] sm:$0xff]
  %v819 = vld [vmem:[%s744 + $0x250] sm:$0xff]
  %v820 = vld [vmem:[%s744 + $0x258] sm:$0xff]
  %v821 = vld [vmem:[%s744 + $0x260] sm:$0xff]
  %v822 = vld [vmem:[%s744 + $0x268] sm:$0xff]
  %v823 = vld [vmem:[%s744 + $0x270] sm:$0xff]
  %v824 = vld [vmem:[%s744 + $0x278] sm:$0xff]
  %v825 = vld [vmem:[%s744 + $0x280] sm:$0xff]
  %v826 = vld [vmem:[%s744 + $0x288] sm:$0xff]
  %v827 = vld [vmem:[%s744 + $0x290] sm:$0xff]
  %v828 = vld [vmem:[%s744 + $0x298] sm:$0xff]
  %v829 = vld [vmem:[%s744 + $0x2a0] sm:$0xff]
  %v830 = vld [vmem:[%s744 + $0x2a8] sm:$0xff]
  %v831 = vld [vmem:[%s744 + $0x2b0] sm:$0xff]
  %v832 = vld [vmem:[%s744 + $0x2b8] sm:$0xff]
  %v833 = vld [vmem:[%s744 + $0x2c0] sm:$0xff]
  %v834 = vld [vmem:[%s744 + $0x2c8] sm:$0xff]
  %v835 = vld [vmem:[%s744 + $0x2d0] sm:$0xff]
  %v836 = vld [vmem:[%s744 + $0x2d8] sm:$0xff]
  %v837 = vld [vmem:[%s744 + $0x2e0] sm:$0xff]
  %v838 = vld [vmem:[%s744 + $0x2e8] sm:$0xff]
  %v839 = vld [vmem:[%s744 + $0x2f0] sm:$0xff]
  %v840 = vld [vmem:[%s744 + $0x2f8] sm:$0xff]
  %v937 = vunpack.c.l.b16 %v745
  %v938 = vunpack.c.h.b16 %v745
  %v939 = vunpack.c.l.b16 %v746
  %v940 = vunpack.c.h.b16 %v746
  %v941 = vunpack.c.l.b16 %v747
  %v942 = vunpack.c.h.b16 %v747
  %v943 = vunpack.c.l.b16 %v748
  %v944 = vunpack.c.h.b16 %v748
  %v945 = vunpack.c.l.b16 %v749
  %v946 = vunpack.c.h.b16 %v749
  %v947 = vunpack.c.l.b16 %v750
  %v948 = vunpack.c.h.b16 %v750
  %v949 = vunpack.c.l.b16 %v751
  %v950 = vunpack.c.h.b16 %v751
  %v951 = vunpack.c.l.b16 %v752
  %v952 = vunpack.c.h.b16 %v752
  %v953 = vunpack.c.l.b16 %v753
  %v954 = vunpack.c.h.b16 %v753
  %v955 = vunpack.c.l.b16 %v754
  %v956 = vunpack.c.h.b16 %v754
  %v957 = vunpack.c.l.b16 %v755
  %v958 = vunpack.c.h.b16 %v755
  %v959 = vunpack.c.l.b16 %v756
  %v960 = vunpack.c.h.b16 %v756
  %v961 = vunpack.c.l.b16 %v757
  %v962 = vunpack.c.h.b16 %v757
  %v963 = vunpack.c.l.b16 %v758
  %v964 = vunpack.c.h.b16 %v758
  %v965 = vunpack.c.l.b16 %v759
  %v966 = vunpack.c.h.b16 %v759
  %v967 = vunpack.c.l.b16 %v760
  %v968 = vunpack.c.h.b16 %v760
  %v969 = vunpack.c.l.b16 %v761
  %v970 = vunpack.c.h.b16 %v761
  %v971 = vunpack.c.l.b16 %v762
  %v972 = vunpack.c.h.b16 %v762
  %v973 = vunpack.c.l.b16 %v763
  %v974 = vunpack.c.h.b16 %v763
  %v975 = vunpack.c.l.b16 %v764
  %v976 = vunpack.c.h.b16 %v764
  %v977 = vunpack.c.l.b16 %v765
  %v978 = vunpack.c.h.b16 %v765
  %v979 = vunpack.c.l.b16 %v766
  %v980 = vunpack.c.h.b16 %v766
  %v981 = vunpack.c.l.b16 %v767
  %v982 = vunpack.c.h.b16 %v767
  %v983 = vunpack.c.l.b16 %v768
  %v984 = vunpack.c.h.b16 %v768
  %v985 = vunpack.c.l.b16 %v769
  %v986 = vunpack.c.h.b16 %v769
  %v987 = vunpack.c.l.b16 %v770
  %v988 = vunpack.c.h.b16 %v770
  %v989 = vunpack.c.l.b16 %v771
  %v990 = vunpack.c.h.b16 %v771
  %v991 = vunpack.c.l.b16 %v772
  %v992 = vunpack.c.h.b16 %v772
  %v993 = vunpack.c.l.b16 %v773
  %v994 = vunpack.c.h.b16 %v773
  %v995 = vunpack.c.l.b16 %v774
  %v996 = vunpack.c.h.b16 %v774
  %v997 = vunpack.c.l.b16 %v775
  %v998 = vunpack.c.h.b16 %v775
  %v999 = vunpack.c.l.b16 %v776
  %v1000 = vunpack.c.h.b16 %v776
  %v1001 = vunpack.c.l.b16 %v777
  %v1002 = vunpack.c.h.b16 %v777
  %v1003 = vunpack.c.l.b16 %v778
  %v1004 = vunpack.c.h.b16 %v778
  %v1005 = vunpack.c.l.b16 %v779
  %v1006 = vunpack.c.h.b16 %v779
  %v1007 = vunpack.c.l.b16 %v780
  %v1008 = vunpack.c.h.b16 %v780
  %v1009 = vunpack.c.l.b16 %v781
  %v1010 = vunpack.c.h.b16 %v781
  %v1011 = vunpack.c.l.b16 %v782
  %v1012 = vunpack.c.h.b16 %v782
  %v1013 = vunpack.c.l.b16 %v783
  %v1014 = vunpack.c.h.b16 %v783
  %v1015 = vunpack.c.l.b16 %v784
  %v1016 = vunpack.c.h.b16 %v784
  %v1017 = vunpack.c.l.b16 %v785
  %v1018 = vunpack.c.h.b16 %v785
  %v1019 = vunpack.c.l.b16 %v786
  %v1020 = vunpack.c.h.b16 %v786
  %v1021 = vunpack.c.l.b16 %v787
  %v1022 = vunpack.c.h.b16 %v787
  %v1023 = vunpack.c.l.b16 %v788
  %v1024 = vunpack.c.h.b16 %v788
  %v1025 = vunpack.c.l.b16 %v789
  %v1026 = vunpack.c.h.b16 %v789
  %v1027 = vunpack.c.l.b16 %v790
  %v1028 = vunpack.c.h.b16 %v790
  %v1029 = vunpack.c.l.b16 %v791
  %v1030 = vunpack.c.h.b16 %v791
  %v1031 = vunpack.c.l.b16 %v792
  %v1032 = vunpack.c.h.b16 %v792
  %v1033 = vunpack.c.l.b16 %v793
  %v1034 = vunpack.c.h.b16 %v793
  %v1035 = vunpack.c.l.b16 %v794
  %v1036 = vunpack.c.h.b16 %v794
  %v1037 = vunpack.c.l.b16 %v795
  %v1038 = vunpack.c.h.b16 %v795
  %v1039 = vunpack.c.l.b16 %v796
  %v1040 = vunpack.c.h.b16 %v796
  %v1041 = vunpack.c.l.b16 %v797
  %v1042 = vunpack.c.h.b16 %v797
  %v1043 = vunpack.c.l.b16 %v798
  %v1044 = vunpack.c.h.b16 %v798
  %v1045 = vunpack.c.l.b16 %v799
  %v1046 = vunpack.c.h.b16 %v799
  %v1047 = vunpack.c.l.b16 %v800
  %v1048 = vunpack.c.h.b16 %v800
  %v1049 = vunpack.c.l.b16 %v801
  %v1050 = vunpack.c.h.b16 %v801
  %v1051 = vunpack.c.l.b16 %v802
  %v1052 = vunpack.c.h.b16 %v802
  %v1053 = vunpack.c.l.b16 %v803
  %v1054 = vunpack.c.h.b16 %v803
  %v1055 = vunpack.c.l.b16 %v804
  %v1056 = vunpack.c.h.b16 %v804
  %v1057 = vunpack.c.l.b16 %v805
  %v1058 = vunpack.c.h.b16 %v805
  %v1059 = vunpack.c.l.b16 %v806
  %v1060 = vunpack.c.h.b16 %v806
  %v1061 = vunpack.c.l.b16 %v807
  %v1062 = vunpack.c.h.b16 %v807
  %v1063 = vunpack.c.l.b16 %v808
  %v1064 = vunpack.c.h.b16 %v808
  %v1065 = vunpack.c.l.b16 %v809
  %v1066 = vunpack.c.h.b16 %v809
  %v1067 = vunpack.c.l.b16 %v810
  %v1068 = vunpack.c.h.b16 %v810
  %v1069 = vunpack.c.l.b16 %v811
  %v1070 = vunpack.c.h.b16 %v811
  %v1071 = vunpack.c.l.b16 %v812
  %v1072 = vunpack.c.h.b16 %v812
  %v1073 = vunpack.c.l.b16 %v813
  %v1074 = vunpack.c.h.b16 %v813
  %v1075 = vunpack.c.l.b16 %v814
  %v1076 = vunpack.c.h.b16 %v814
  %v1077 = vunpack.c.l.b16 %v815
  %v1078 = vunpack.c.h.b16 %v815
  %v1079 = vunpack.c.l.b16 %v816
  %v1080 = vunpack.c.h.b16 %v816
  %v1081 = vunpack.c.l.b16 %v817
  %v1082 = vunpack.c.h.b16 %v817
  %v1083 = vunpack.c.l.b16 %v818
  %v1084 = vunpack.c.h.b16 %v818
  %v1085 = vunpack.c.l.b16 %v819
  %v1086 = vunpack.c.h.b16 %v819
  %v1087 = vunpack.c.l.b16 %v820
  %v1088 = vunpack.c.h.b16 %v820
  %v1089 = vunpack.c.l.b16 %v821
  %v1090 = vunpack.c.h.b16 %v821
  %v1091 = vunpack.c.l.b16 %v822
  %v1092 = vunpack.c.h.b16 %v822
  %v1093 = vunpack.c.l.b16 %v823
  %v1094 = vunpack.c.h.b16 %v823
  %v1095 = vunpack.c.l.b16 %v824
  %v1096 = vunpack.c.h.b16 %v824
  %v1097 = vunpack.c.l.b16 %v825
  %v1098 = vunpack.c.h.b16 %v825
  %v1099 = vunpack.c.l.b16 %v826
  %v1100 = vunpack.c.h.b16 %v826
  %v1101 = vunpack.c.l.b16 %v827
  %v1102 = vunpack.c.h.b16 %v827
  %v1103 = vunpack.c.l.b16 %v828
  %v1104 = vunpack.c.h.b16 %v828
  %v1105 = vunpack.c.l.b16 %v829
  %v1106 = vunpack.c.h.b16 %v829
  %v1107 = vunpack.c.l.b16 %v830
  %v1108 = vunpack.c.h.b16 %v830
  %v1109 = vunpack.c.l.b16 %v831
  %v1110 = vunpack.c.h.b16 %v831
  %v1111 = vunpack.c.l.b16 %v832
  %v1112 = vunpack.c.h.b16 %v832
  %v1113 = vunpack.c.l.b16 %v833
  %v1114 = vunpack.c.h.b16 %v833
  %v1115 = vunpack.c.l.b16 %v834
  %v1116 = vunpack.c.h.b16 %v834
  %v1117 = vunpack.c.l.b16 %v835
  %v1118 = vunpack.c.h.b16 %v835
  %v1119 = vunpack.c.l.b16 %v836
  %v1120 = vunpack.c.h.b16 %v836
  %v1121 = vunpack.c.l.b16 %v837
  %v1122 = vunpack.c.h.b16 %v837
  %v1123 = vunpack.c.l.b16 %v838
  %v1124 = vunpack.c.h.b16 %v838
  %v1125 = vunpack.c.l.b16 %v839
  %v1126 = vunpack.c.h.b16 %v839
  %v1127 = vunpack.c.l.b16 %v840
  %v1128 = vunpack.c.h.b16 %v840
  %v1129 = vpack.c.b16 %v939, %v937
  %v1130 = vpack.c.b16 %v940, %v938
  %v1131 = vpack.c.b16 %v943, %v941
  %v1132 = vpack.c.b16 %v944, %v942
  %v1133 = vpack.c.b16 %v947, %v945
  %v1134 = vpack.c.b16 %v948, %v946
  %v1135 = vpack.c.b16 %v951, %v949
  %v1136 = vpack.c.b16 %v952, %v950
  %v1137 = vpack.c.b16 %v955, %v953
  %v1138 = vpack.c.b16 %v956, %v954
  %v1139 = vpack.c.b16 %v959, %v957
  %v1140 = vpack.c.b16 %v960, %v958
  %v1141 = vpack.c.b16 %v963, %v961
  %v1142 = vpack.c.b16 %v964, %v962
  %v1143 = vpack.c.b16 %v967, %v965
  %v1144 = vpack.c.b16 %v968, %v966
  %v1145 = vpack.c.b16 %v971, %v969
  %v1146 = vpack.c.b16 %v972, %v970
  %v1147 = vpack.c.b16 %v975, %v973
  %v1148 = vpack.c.b16 %v976, %v974
  %v1149 = vpack.c.b16 %v979, %v977
  %v1150 = vpack.c.b16 %v980, %v978
  %v1151 = vpack.c.b16 %v983, %v981
  %v1152 = vpack.c.b16 %v984, %v982
  %v1153 = vpack.c.b16 %v987, %v985
  %v1154 = vpack.c.b16 %v988, %v986
  %v1155 = vpack.c.b16 %v991, %v989
  %v1156 = vpack.c.b16 %v992, %v990
  %v1157 = vpack.c.b16 %v995, %v993
  %v1158 = vpack.c.b16 %v996, %v994
  %v1159 = vpack.c.b16 %v999, %v997
  %v1160 = vpack.c.b16 %v1000, %v998
  %v1161 = vpack.c.b16 %v1003, %v1001
  %v1162 = vpack.c.b16 %v1004, %v1002
  %v1163 = vpack.c.b16 %v1007, %v1005
  %v1164 = vpack.c.b16 %v1008, %v1006
  %v1165 = vpack.c.b16 %v1011, %v1009
  %v1166 = vpack.c.b16 %v1012, %v1010
  %v1167 = vpack.c.b16 %v1015, %v1013
  %v1168 = vpack.c.b16 %v1016, %v1014
  %v1169 = vpack.c.b16 %v1019, %v1017
  %v1170 = vpack.c.b16 %v1020, %v1018
  %v1171 = vpack.c.b16 %v1023, %v1021
  %v1172 = vpack.c.b16 %v1024, %v1022
  %v1173 = vpack.c.b16 %v1027, %v1025
  %v1174 = vpack.c.b16 %v1028, %v1026
  %v1175 = vpack.c.b16 %v1031, %v1029
  %v1176 = vpack.c.b16 %v1032, %v1030
  %v1177 = vpack.c.b16 %v1035, %v1033
  %v1178 = vpack.c.b16 %v1036, %v1034
  %v1179 = vpack.c.b16 %v1039, %v1037
  %v1180 = vpack.c.b16 %v1040, %v1038
  %v1181 = vpack.c.b16 %v1043, %v1041
  %v1182 = vpack.c.b16 %v1044, %v1042
  %v1183 = vpack.c.b16 %v1047, %v1045
  %v1184 = vpack.c.b16 %v1048, %v1046
  %v1185 = vpack.c.b16 %v1051, %v1049
  %v1186 = vpack.c.b16 %v1052, %v1050
  %v1187 = vpack.c.b16 %v1055, %v1053
  %v1188 = vpack.c.b16 %v1056, %v1054
  %v1189 = vpack.c.b16 %v1059, %v1057
  %v1190 = vpack.c.b16 %v1060, %v1058
  %v1191 = vpack.c.b16 %v1063, %v1061
  %v1192 = vpack.c.b16 %v1064, %v1062
  %v1193 = vpack.c.b16 %v1067, %v1065
  %v1194 = vpack.c.b16 %v1068, %v1066
  %v1195 = vpack.c.b16 %v1071, %v1069
  %v1196 = vpack.c.b16 %v1072, %v1070
  %v1197 = vpack.c.b16 %v1075, %v1073
  %v1198 = vpack.c.b16 %v1076, %v1074
  %v1199 = vpack.c.b16 %v1079, %v1077
  %v1200 = vpack.c.b16 %v1080, %v1078
  %v1201 = vpack.c.b16 %v1083, %v1081
  %v1202 = vpack.c.b16 %v1084, %v1082
  %v1203 = vpack.c.b16 %v1087, %v1085
  %v1204 = vpack.c.b16 %v1088, %v1086
  %v1205 = vpack.c.b16 %v1091, %v1089
  %v1206 = vpack.c.b16 %v1092, %v1090
  %v1207 = vpack.c.b16 %v1095, %v1093
  %v1208 = vpack.c.b16 %v1096, %v1094
  %v1209 = vpack.c.b16 %v1099, %v1097
  %v1210 = vpack.c.b16 %v1100, %v1098
  %v1211 = vpack.c.b16 %v1103, %v1101
  %v1212 = vpack.c.b16 %v1104, %v1102
  %v1213 = vpack.c.b16 %v1107, %v1105
  %v1214 = vpack.c.b16 %v1108, %v1106
  %v1215 = vpack.c.b16 %v1111, %v1109
  %v1216 = vpack.c.b16 %v1112, %v1110
  %v1217 = vpack.c.b16 %v1115, %v1113
  %v1218 = vpack.c.b16 %v1116, %v1114
  %v1219 = vpack.c.b16 %v1119, %v1117
  %v1220 = vpack.c.b16 %v1120, %v1118
  %v1221 = vpack.c.b16 %v1123, %v1121
  %v1222 = vpack.c.b16 %v1124, %v1122
  %v1223 = vpack.c.b16 %v1127, %v1125
  %v1224 = vpack.c.b16 %v1128, %v1126
  %1321 = vmatprep.subr.bf16.mxu0 %v1130
  %1322 = vmatpush1.bf16.msra.mxu0 %v1129
  %1323 = vmatprep.subr.bf16.mxu0 %v1132
  %1324 = vmatpush1.bf16.msra.mxu0 %v1131
  %1325 = vmatprep.subr.bf16.mxu0 %v1134
  %1326 = vmatpush1.bf16.msra.mxu0 %v1133
  %1327 = vmatprep.subr.bf16.mxu0 %v1136
  %1328 = vmatpush1.bf16.msra.mxu0 %v1135
  %1329 = vmatprep.subr.bf16.mxu0 %v1138
  %1330 = vmatpush1.bf16.msra.mxu0 %v1137
  %1331 = vmatprep.subr.bf16.mxu0 %v1140
  %1332 = vmatpush1.bf16.msra.mxu0 %v1139
  %1333 = vmatprep.subr.bf16.mxu0 %v1142
  %1334 = vmatpush1.bf16.msra.mxu0 %v1141
  %1335 = vmatprep.subr.bf16.mxu0 %v1144
  %1336 = vmatpush1.bf16.msra.mxu0 %v1143
  %1337 = vmatprep.subr.bf16.mxu0 %v1146
  %1338 = vmatpush1.bf16.msra.mxu0 %v1145
  %1339 = vmatprep.subr.bf16.mxu0 %v1148
  %1340 = vmatpush1.bf16.msra.mxu0 %v1147
  %1341 = vmatprep.subr.bf16.mxu0 %v1150
  %1342 = vmatpush1.bf16.msra.mxu0 %v1149
  %1343 = vmatprep.subr.bf16.mxu0 %v1152
  %1344 = vmatpush1.bf16.msra.mxu0 %v1151
  %1345 = vmatprep.subr.bf16.mxu0 %v1154
  %1346 = vmatpush1.bf16.msra.mxu0 %v1153
  %1347 = vmatprep.subr.bf16.mxu0 %v1156
  %1348 = vmatpush1.bf16.msra.mxu0 %v1155
  %1349 = vmatprep.subr.bf16.mxu0 %v1158
  %1350 = vmatpush1.bf16.msra.mxu0 %v1157
  %1351 = vmatprep.subr.bf16.mxu0 %v1160
  %1352 = vmatpush1.bf16.msra.mxu0 %v1159
  %1353 = vmatprep.mubr.bf16.mxu0 %v130
  %1354 = vmatmul.mubr.bf16.gmra.mrb[0].mxu0 %v129
  %v1355 = vpop.f32.mrb[0].mxu0
  %v1356 = vadd.f32 0.0, %v1355
  %v1357 = vpop.f32.mrb[0].mxu0
  %v1358 = vadd.f32 0.0, %v1357
  %v1359 = vpop.f32.mrb[0].mxu0
  %v1360 = vpop.f32.mrb[0].mxu0
  %1361 = vdwg.mxu0
  %1362 = vmatprep.subr.bf16.mxu0 %v1162
  %1363 = vmatpush1.bf16.msra.mxu0 %v1161
  %1364 = vmatprep.subr.bf16.mxu0 %v1164
  %1365 = vmatpush1.bf16.msra.mxu0 %v1163
  %1366 = vmatprep.subr.bf16.mxu0 %v1166
  %1367 = vmatpush1.bf16.msra.mxu0 %v1165
  %1368 = vmatprep.subr.bf16.mxu0 %v1168
  %1369 = vmatpush1.bf16.msra.mxu0 %v1167
  %1370 = vmatprep.subr.bf16.mxu0 %v1170
  %1371 = vmatpush1.bf16.msra.mxu0 %v1169
  %1372 = vmatprep.subr.bf16.mxu0 %v1172
  %1373 = vmatpush1.bf16.msra.mxu0 %v1171
  %1374 = vmatprep.subr.bf16.mxu0 %v1174
  %1375 = vmatpush1.bf16.msra.mxu0 %v1173
  %1376 = vmatprep.subr.bf16.mxu0 %v1176
  %1377 = vmatpush1.bf16.msra.mxu0 %v1175
  %1378 = vmatprep.subr.bf16.mxu0 %v1178
  %1379 = vmatpush1.bf16.msra.mxu0 %v1177
  %1380 = vmatprep.subr.bf16.mxu0 %v1180
  %1381 = vmatpush1.bf16.msra.mxu0 %v1179
  %1382 = vmatprep.subr.bf16.mxu0 %v1182
  %1383 = vmatpush1.bf16.msra.mxu0 %v1181
  %1384 = vmatprep.subr.bf16.mxu0 %v1184
  %1385 = vmatpush1.bf16.msra.mxu0 %v1183
  %1386 = vmatprep.subr.bf16.mxu0 %v1186
  %1387 = vmatpush1.bf16.msra.mxu0 %v1185
  %1388 = vmatprep.subr.bf16.mxu0 %v1188
  %1389 = vmatpush1.bf16.msra.mxu0 %v1187
  %1390 = vmatprep.subr.bf16.mxu0 %v1190
  %1391 = vmatpush1.bf16.msra.mxu0 %v1189
  %1392 = vmatprep.subr.bf16.mxu0 %v1192
  %1393 = vmatpush1.bf16.msra.mxu0 %v1191
  %1394 = vmatprep.mubr.bf16.mxu0 %v132
  %1395 = vmatmul.mubr.bf16.gmra.mrb[0].mxu0 %v131
  %v1396 = vpop.f32.mrb[0].mxu0
  %v1397 = vadd.f32 %v1356, %v1396
  %v1398 = vpop.f32.mrb[0].mxu0
  %v1399 = vadd.f32 %v1358, %v1398
  %v1400 = vpop.f32.mrb[0].mxu0
  %v1401 = vpop.f32.mrb[0].mxu0
  %1402 = vdwg.mxu0
  %1403 = vmatprep.subr.bf16.mxu0 %v1194
  %1404 = vmatpush1.bf16.msra.mxu0 %v1193
  %1405 = vmatprep.subr.bf16.mxu0 %v1196
  %1406 = vmatpush1.bf16.msra.mxu0 %v1195
  %1407 = vmatprep.subr.bf16.mxu0 %v1198
  %1408 = vmatpush1.bf16.msra.mxu0 %v1197
  %1409 = vmatprep.subr.bf16.mxu0 %v1200
  %1410 = vmatpush1.bf16.msra.mxu0 %v1199
  %1411 = vmatprep.subr.bf16.mxu0 %v1202
  %1412 = vmatpush1.bf16.msra.mxu0 %v1201
  %1413 = vmatprep.subr.bf16.mxu0 %v1204
  %1414 = vmatpush1.bf16.msra.mxu0 %v1203
  %1415 = vmatprep.subr.bf16.mxu0 %v1206
  %1416 = vmatpush1.bf16.msra.mxu0 %v1205
  %1417 = vmatprep.subr.bf16.mxu0 %v1208
  %1418 = vmatpush1.bf16.msra.mxu0 %v1207
  %1419 = vmatprep.subr.bf16.mxu0 %v1210
  %1420 = vmatpush1.bf16.msra.mxu0 %v1209
  %1421 = vmatprep.subr.bf16.mxu0 %v1212
  %1422 = vmatpush1.bf16.msra.mxu0 %v1211
  %1423 = vmatprep.subr.bf16.mxu0 %v1214
  %1424 = vmatpush1.bf16.msra.mxu0 %v1213
  %1425 = vmatprep.subr.bf16.mxu0 %v1216
  %1426 = vmatpush1.bf16.msra.mxu0 %v1215
  %1427 = vmatprep.subr.bf16.mxu0 %v1218
  %1428 = vmatpush1.bf16.msra.mxu0 %v1217
  %1429 = vmatprep.subr.bf16.mxu0 %v1220
  %1430 = vmatpush1.bf16.msra.mxu0 %v1219
  %1431 = vmatprep.subr.bf16.mxu0 %v1222
  %1432 = vmatpush1.bf16.msra.mxu0 %v1221
  %1433 = vmatprep.subr.bf16.mxu0 %v1224
  %1434 = vmatpush1.bf16.msra.mxu0 %v1223
  %1435 = vmatprep.mubr.bf16.mxu0 %v134
  %1436 = vmatmul.mubr.bf16.gmra.mrb[0].mxu0 %v133
  %v1437 = vpop.f32.mrb[0].mxu0
  %v1438 = vadd.f32 %v1397, %v1437
  %v1439 = vpop.f32.mrb[0].mxu0
  %v1440 = vadd.f32 %v1399, %v1439
  %v1441 = vpop.f32.mrb[0].mxu0
  %v1442 = vpop.f32.mrb[0].mxu0
  %1443 = vdwg.mxu0
  %v1444 = vmax.f32 %v738, %v1438
  %v1445 = vmax.f32 %v740, %v1440
  %s1446 = scalar_lea.vmem %s1, 1536
  %v1447 = vld [vmem:[%s1446] sm:$0xff]
  %v1448 = vld [vmem:[%s1446 + $0x8] sm:$0xff]
  %v1449 = vld [vmem:[%s1446 + $0x10] sm:$0xff]
  %v1450 = vld [vmem:[%s1446 + $0x18] sm:$0xff]
  %v1451 = vld [vmem:[%s1446 + $0x20] sm:$0xff]
  %v1452 = vld [vmem:[%s1446 + $0x28] sm:$0xff]
  %v1453 = vld [vmem:[%s1446 + $0x30] sm:$0xff]
  %v1454 = vld [vmem:[%s1446 + $0x38] sm:$0xff]
  %v1455 = vld [vmem:[%s1446 + $0x40] sm:$0xff]
  %v1456 = vld [vmem:[%s1446 + $0x48] sm:$0xff]
  %v1457 = vld [vmem:[%s1446 + $0x50] sm:$0xff]
  %v1458 = vld [vmem:[%s1446 + $0x58] sm:$0xff]
  %v1459 = vld [vmem:[%s1446 + $0x60] sm:$0xff]
  %v1460 = vld [vmem:[%s1446 + $0x68] sm:$0xff]
  %v1461 = vld [vmem:[%s1446 + $0x70] sm:$0xff]
  %v1462 = vld [vmem:[%s1446 + $0x78] sm:$0xff]
  %v1463 = vld [vmem:[%s1446 + $0x80] sm:$0xff]
  %v1464 = vld [vmem:[%s1446 + $0x88] sm:$0xff]
  %v1465 = vld [vmem:[%s1446 + $0x90] sm:$0xff]
  %v1466 = vld [vmem:[%s1446 + $0x98] sm:$0xff]
  %v1467 = vld [vmem:[%s1446 + $0xa0] sm:$0xff]
  %v1468 = vld [vmem:[%s1446 + $0xa8] sm:$0xff]
  %v1469 = vld [vmem:[%s1446 + $0xb0] sm:$0xff]
  %v1470 = vld [vmem:[%s1446 + $0xb8] sm:$0xff]
  %v1471 = vld [vmem:[%s1446 + $0xc0] sm:$0xff]
  %v1472 = vld [vmem:[%s1446 + $0xc8] sm:$0xff]
  %v1473 = vld [vmem:[%s1446 + $0xd0] sm:$0xff]
  %v1474 = vld [vmem:[%s1446 + $0xd8] sm:$0xff]
  %v1475 = vld [vmem:[%s1446 + $0xe0] sm:$0xff]
  %v1476 = vld [vmem:[%s1446 + $0xe8] sm:$0xff]
  %v1477 = vld [vmem:[%s1446 + $0xf0] sm:$0xff]
  %v1478 = vld [vmem:[%s1446 + $0xf8] sm:$0xff]
  %v1479 = vld [vmem:[%s1446 + $0x100] sm:$0xff]
  %v1480 = vld [vmem:[%s1446 + $0x108] sm:$0xff]
  %v1481 = vld [vmem:[%s1446 + $0x110] sm:$0xff]
  %v1482 = vld [vmem:[%s1446 + $0x118] sm:$0xff]
  %v1483 = vld [vmem:[%s1446 + $0x120] sm:$0xff]
  %v1484 = vld [vmem:[%s1446 + $0x128] sm:$0xff]
  %v1485 = vld [vmem:[%s1446 + $0x130] sm:$0xff]
  %v1486 = vld [vmem:[%s1446 + $0x138] sm:$0xff]
  %v1487 = vld [vmem:[%s1446 + $0x140] sm:$0xff]
  %v1488 = vld [vmem:[%s1446 + $0x148] sm:$0xff]
  %v1489 = vld [vmem:[%s1446 + $0x150] sm:$0xff]
  %v1490 = vld [vmem:[%s1446 + $0x158] sm:$0xff]
  %v1491 = vld [vmem:[%s1446 + $0x160] sm:$0xff]
  %v1492 = vld [vmem:[%s1446 + $0x168] sm:$0xff]
  %v1493 = vld [vmem:[%s1446 + $0x170] sm:$0xff]
  %v1494 = vld [vmem:[%s1446 + $0x178] sm:$0xff]
  %v1495 = vld [vmem:[%s1446 + $0x180] sm:$0xff]
  %v1496 = vld [vmem:[%s1446 + $0x188] sm:$0xff]
  %v1497 = vld [vmem:[%s1446 + $0x190] sm:$0xff]
  %v1498 = vld [vmem:[%s1446 + $0x198] sm:$0xff]
  %v1499 = vld [vmem:[%s1446 + $0x1a0] sm:$0xff]
  %v1500 = vld [vmem:[%s1446 + $0x1a8] sm:$0xff]
  %v1501 = vld [vmem:[%s1446 + $0x1b0] sm:$0xff]
  %v1502 = vld [vmem:[%s1446 + $0x1b8] sm:$0xff]
  %v1503 = vld [vmem:[%s1446 + $0x1c0] sm:$0xff]
  %v1504 = vld [vmem:[%s1446 + $0x1c8] sm:$0xff]
  %v1505 = vld [vmem:[%s1446 + $0x1d0] sm:$0xff]
  %v1506 = vld [vmem:[%s1446 + $0x1d8] sm:$0xff]
  %v1507 = vld [vmem:[%s1446 + $0x1e0] sm:$0xff]
  %v1508 = vld [vmem:[%s1446 + $0x1e8] sm:$0xff]
  %v1509 = vld [vmem:[%s1446 + $0x1f0] sm:$0xff]
  %v1510 = vld [vmem:[%s1446 + $0x1f8] sm:$0xff]
  %v1511 = vld [vmem:[%s1446 + $0x200] sm:$0xff]
  %v1512 = vld [vmem:[%s1446 + $0x208] sm:$0xff]
  %v1513 = vld [vmem:[%s1446 + $0x210] sm:$0xff]
  %v1514 = vld [vmem:[%s1446 + $0x218] sm:$0xff]
  %v1515 = vld [vmem:[%s1446 + $0x220] sm:$0xff]
  %v1516 = vld [vmem:[%s1446 + $0x228] sm:$0xff]
  %v1517 = vld [vmem:[%s1446 + $0x230] sm:$0xff]
  %v1518 = vld [vmem:[%s1446 + $0x238] sm:$0xff]
  %v1519 = vld [vmem:[%s1446 + $0x240] sm:$0xff]
  %v1520 = vld [vmem:[%s1446 + $0x248] sm:$0xff]
  %v1521 = vld [vmem:[%s1446 + $0x250] sm:$0xff]
  %v1522 = vld [vmem:[%s1446 + $0x258] sm:$0xff]
  %v1523 = vld [vmem:[%s1446 + $0x260] sm:$0xff]
  %v1524 = vld [vmem:[%s1446 + $0x268] sm:$0xff]
  %v1525 = vld [vmem:[%s1446 + $0x270] sm:$0xff]
  %v1526 = vld [vmem:[%s1446 + $0x278] sm:$0xff]
  %v1527 = vld [vmem:[%s1446 + $0x280] sm:$0xff]
  %v1528 = vld [vmem:[%s1446 + $0x288] sm:$0xff]
  %v1529 = vld [vmem:[%s1446 + $0x290] sm:$0xff]
  %v1530 = vld [vmem:[%s1446 + $0x298] sm:$0xff]
  %v1531 = vld [vmem:[%s1446 + $0x2a0] sm:$0xff]
  %v1532 = vld [vmem:[%s1446 + $0x2a8] sm:$0xff]
  %v1533 = vld [vmem:[%s1446 + $0x2b0] sm:$0xff]
  %v1534 = vld [vmem:[%s1446 + $0x2b8] sm:$0xff]
  %v1535 = vld [vmem:[%s1446 + $0x2c0] sm:$0xff]
  %v1536 = vld [vmem:[%s1446 + $0x2c8] sm:$0xff]
  %v1537 = vld [vmem:[%s1446 + $0x2d0] sm:$0xff]
  %v1538 = vld [vmem:[%s1446 + $0x2d8] sm:$0xff]
  %v1539 = vld [vmem:[%s1446 + $0x2e0] sm:$0xff]
  %v1540 = vld [vmem:[%s1446 + $0x2e8] sm:$0xff]
  %v1541 = vld [vmem:[%s1446 + $0x2f0] sm:$0xff]
  %v1542 = vld [vmem:[%s1446 + $0x2f8] sm:$0xff]
  %v1639 = vunpack.c.l.b16 %v1447
  %v1640 = vunpack.c.h.b16 %v1447
  %v1641 = vunpack.c.l.b16 %v1448
  %v1642 = vunpack.c.h.b16 %v1448
  %v1643 = vunpack.c.l.b16 %v1449
  %v1644 = vunpack.c.h.b16 %v1449
  %v1645 = vunpack.c.l.b16 %v1450
  %v1646 = vunpack.c.h.b16 %v1450
  %v1647 = vunpack.c.l.b16 %v1451
  %v1648 = vunpack.c.h.b16 %v1451
  %v1649 = vunpack.c.l.b16 %v1452
  %v1650 = vunpack.c.h.b16 %v1452
  %v1651 = vunpack.c.l.b16 %v1453
  %v1652 = vunpack.c.h.b16 %v1453
  %v1653 = vunpack.c.l.b16 %v1454
  %v1654 = vunpack.c.h.b16 %v1454
  %v1655 = vunpack.c.l.b16 %v1455
  %v1656 = vunpack.c.h.b16 %v1455
  %v1657 = vunpack.c.l.b16 %v1456
  %v1658 = vunpack.c.h.b16 %v1456
  %v1659 = vunpack.c.l.b16 %v1457
  %v1660 = vunpack.c.h.b16 %v1457
  %v1661 = vunpack.c.l.b16 %v1458
  %v1662 = vunpack.c.h.b16 %v1458
  %v1663 = vunpack.c.l.b16 %v1459
  %v1664 = vunpack.c.h.b16 %v1459
  %v1665 = vunpack.c.l.b16 %v1460
  %v1666 = vunpack.c.h.b16 %v1460
  %v1667 = vunpack.c.l.b16 %v1461
  %v1668 = vunpack.c.h.b16 %v1461
  %v1669 = vunpack.c.l.b16 %v1462
  %v1670 = vunpack.c.h.b16 %v1462
  %v1671 = vunpack.c.l.b16 %v1463
  %v1672 = vunpack.c.h.b16 %v1463
  %v1673 = vunpack.c.l.b16 %v1464
  %v1674 = vunpack.c.h.b16 %v1464
  %v1675 = vunpack.c.l.b16 %v1465
  %v1676 = vunpack.c.h.b16 %v1465
  %v1677 = vunpack.c.l.b16 %v1466
  %v1678 = vunpack.c.h.b16 %v1466
  %v1679 = vunpack.c.l.b16 %v1467
  %v1680 = vunpack.c.h.b16 %v1467
  %v1681 = vunpack.c.l.b16 %v1468
  %v1682 = vunpack.c.h.b16 %v1468
  %v1683 = vunpack.c.l.b16 %v1469
  %v1684 = vunpack.c.h.b16 %v1469
  %v1685 = vunpack.c.l.b16 %v1470
  %v1686 = vunpack.c.h.b16 %v1470
  %v1687 = vunpack.c.l.b16 %v1471
  %v1688 = vunpack.c.h.b16 %v1471
  %v1689 = vunpack.c.l.b16 %v1472
  %v1690 = vunpack.c.h.b16 %v1472
  %v1691 = vunpack.c.l.b16 %v1473
  %v1692 = vunpack.c.h.b16 %v1473
  %v1693 = vunpack.c.l.b16 %v1474
  %v1694 = vunpack.c.h.b16 %v1474
  %v1695 = vunpack.c.l.b16 %v1475
  %v1696 = vunpack.c.h.b16 %v1475
  %v1697 = vunpack.c.l.b16 %v1476
  %v1698 = vunpack.c.h.b16 %v1476
  %v1699 = vunpack.c.l.b16 %v1477
  %v1700 = vunpack.c.h.b16 %v1477
  %v1701 = vunpack.c.l.b16 %v1478
  %v1702 = vunpack.c.h.b16 %v1478
  %v1703 = vunpack.c.l.b16 %v1479
  %v1704 = vunpack.c.h.b16 %v1479
  %v1705 = vunpack.c.l.b16 %v1480
  %v1706 = vunpack.c.h.b16 %v1480
  %v1707 = vunpack.c.l.b16 %v1481
  %v1708 = vunpack.c.h.b16 %v1481
  %v1709 = vunpack.c.l.b16 %v1482
  %v1710 = vunpack.c.h.b16 %v1482
  %v1711 = vunpack.c.l.b16 %v1483
  %v1712 = vunpack.c.h.b16 %v1483
  %v1713 = vunpack.c.l.b16 %v1484
  %v1714 = vunpack.c.h.b16 %v1484
  %v1715 = vunpack.c.l.b16 %v1485
  %v1716 = vunpack.c.h.b16 %v1485
  %v1717 = vunpack.c.l.b16 %v1486
  %v1718 = vunpack.c.h.b16 %v1486
  %v1719 = vunpack.c.l.b16 %v1487
  %v1720 = vunpack.c.h.b16 %v1487
  %v1721 = vunpack.c.l.b16 %v1488
  %v1722 = vunpack.c.h.b16 %v1488
  %v1723 = vunpack.c.l.b16 %v1489
  %v1724 = vunpack.c.h.b16 %v1489
  %v1725 = vunpack.c.l.b16 %v1490
  %v1726 = vunpack.c.h.b16 %v1490
  %v1727 = vunpack.c.l.b16 %v1491
  %v1728 = vunpack.c.h.b16 %v1491
  %v1729 = vunpack.c.l.b16 %v1492
  %v1730 = vunpack.c.h.b16 %v1492
  %v1731 = vunpack.c.l.b16 %v1493
  %v1732 = vunpack.c.h.b16 %v1493
  %v1733 = vunpack.c.l.b16 %v1494
  %v1734 = vunpack.c.h.b16 %v1494
  %v1735 = vunpack.c.l.b16 %v1495
  %v1736 = vunpack.c.h.b16 %v1495
  %v1737 = vunpack.c.l.b16 %v1496
  %v1738 = vunpack.c.h.b16 %v1496
  %v1739 = vunpack.c.l.b16 %v1497
  %v1740 = vunpack.c.h.b16 %v1497
  %v1741 = vunpack.c.l.b16 %v1498
  %v1742 = vunpack.c.h.b16 %v1498
  %v1743 = vunpack.c.l.b16 %v1499
  %v1744 = vunpack.c.h.b16 %v1499
  %v1745 = vunpack.c.l.b16 %v1500
  %v1746 = vunpack.c.h.b16 %v1500
  %v1747 = vunpack.c.l.b16 %v1501
  %v1748 = vunpack.c.h.b16 %v1501
  %v1749 = vunpack.c.l.b16 %v1502
  %v1750 = vunpack.c.h.b16 %v1502
  %v1751 = vunpack.c.l.b16 %v1503
  %v1752 = vunpack.c.h.b16 %v1503
  %v1753 = vunpack.c.l.b16 %v1504
  %v1754 = vunpack.c.h.b16 %v1504
  %v1755 = vunpack.c.l.b16 %v1505
  %v1756 = vunpack.c.h.b16 %v1505
  %v1757 = vunpack.c.l.b16 %v1506
  %v1758 = vunpack.c.h.b16 %v1506
  %v1759 = vunpack.c.l.b16 %v1507
  %v1760 = vunpack.c.h.b16 %v1507
  %v1761 = vunpack.c.l.b16 %v1508
  %v1762 = vunpack.c.h.b16 %v1508
  %v1763 = vunpack.c.l.b16 %v1509
  %v1764 = vunpack.c.h.b16 %v1509
  %v1765 = vunpack.c.l.b16 %v1510
  %v1766 = vunpack.c.h.b16 %v1510
  %v1767 = vunpack.c.l.b16 %v1511
  %v1768 = vunpack.c.h.b16 %v1511
  %v1769 = vunpack.c.l.b16 %v1512
  %v1770 = vunpack.c.h.b16 %v1512
  %v1771 = vunpack.c.l.b16 %v1513
  %v1772 = vunpack.c.h.b16 %v1513
  %v1773 = vunpack.c.l.b16 %v1514
  %v1774 = vunpack.c.h.b16 %v1514
  %v1775 = vunpack.c.l.b16 %v1515
  %v1776 = vunpack.c.h.b16 %v1515
  %v1777 = vunpack.c.l.b16 %v1516
  %v1778 = vunpack.c.h.b16 %v1516
  %v1779 = vunpack.c.l.b16 %v1517
  %v1780 = vunpack.c.h.b16 %v1517
  %v1781 = vunpack.c.l.b16 %v1518
  %v1782 = vunpack.c.h.b16 %v1518
  %v1783 = vunpack.c.l.b16 %v1519
  %v1784 = vunpack.c.h.b16 %v1519
  %v1785 = vunpack.c.l.b16 %v1520
  %v1786 = vunpack.c.h.b16 %v1520
  %v1787 = vunpack.c.l.b16 %v1521
  %v1788 = vunpack.c.h.b16 %v1521
  %v1789 = vunpack.c.l.b16 %v1522
  %v1790 = vunpack.c.h.b16 %v1522
  %v1791 = vunpack.c.l.b16 %v1523
  %v1792 = vunpack.c.h.b16 %v1523
  %v1793 = vunpack.c.l.b16 %v1524
  %v1794 = vunpack.c.h.b16 %v1524
  %v1795 = vunpack.c.l.b16 %v1525
  %v1796 = vunpack.c.h.b16 %v1525
  %v1797 = vunpack.c.l.b16 %v1526
  %v1798 = vunpack.c.h.b16 %v1526
  %v1799 = vunpack.c.l.b16 %v1527
  %v1800 = vunpack.c.h.b16 %v1527
  %v1801 = vunpack.c.l.b16 %v1528
  %v1802 = vunpack.c.h.b16 %v1528
  %v1803 = vunpack.c.l.b16 %v1529
  %v1804 = vunpack.c.h.b16 %v1529
  %v1805 = vunpack.c.l.b16 %v1530
  %v1806 = vunpack.c.h.b16 %v1530
  %v1807 = vunpack.c.l.b16 %v1531
  %v1808 = vunpack.c.h.b16 %v1531
  %v1809 = vunpack.c.l.b16 %v1532
  %v1810 = vunpack.c.h.b16 %v1532
  %v1811 = vunpack.c.l.b16 %v1533
  %v1812 = vunpack.c.h.b16 %v1533
  %v1813 = vunpack.c.l.b16 %v1534
  %v1814 = vunpack.c.h.b16 %v1534
  %v1815 = vunpack.c.l.b16 %v1535
  %v1816 = vunpack.c.h.b16 %v1535
  %v1817 = vunpack.c.l.b16 %v1536
  %v1818 = vunpack.c.h.b16 %v1536
  %v1819 = vunpack.c.l.b16 %v1537
  %v1820 = vunpack.c.h.b16 %v1537
  %v1821 = vunpack.c.l.b16 %v1538
  %v1822 = vunpack.c.h.b16 %v1538
  %v1823 = vunpack.c.l.b16 %v1539
  %v1824 = vunpack.c.h.b16 %v1539
  %v1825 = vunpack.c.l.b16 %v1540
  %v1826 = vunpack.c.h.b16 %v1540
  %v1827 = vunpack.c.l.b16 %v1541
  %v1828 = vunpack.c.h.b16 %v1541
  %v1829 = vunpack.c.l.b16 %v1542
  %v1830 = vunpack.c.h.b16 %v1542
  %v1831 = vpack.c.b16 %v1641, %v1639
  %v1832 = vpack.c.b16 %v1642, %v1640
  %v1833 = vpack.c.b16 %v1645, %v1643
  %v1834 = vpack.c.b16 %v1646, %v1644
  %v1835 = vpack.c.b16 %v1649, %v1647
  %v1836 = vpack.c.b16 %v1650, %v1648
  %v1837 = vpack.c.b16 %v1653, %v1651
  %v1838 = vpack.c.b16 %v1654, %v1652
  %v1839 = vpack.c.b16 %v1657, %v1655
  %v1840 = vpack.c.b16 %v1658, %v1656
  %v1841 = vpack.c.b16 %v1661, %v1659
  %v1842 = vpack.c.b16 %v1662, %v1660
  %v1843 = vpack.c.b16 %v1665, %v1663
  %v1844 = vpack.c.b16 %v1666, %v1664
  %v1845 = vpack.c.b16 %v1669, %v1667
  %v1846 = vpack.c.b16 %v1670, %v1668
  %v1847 = vpack.c.b16 %v1673, %v1671
  %v1848 = vpack.c.b16 %v1674, %v1672
  %v1849 = vpack.c.b16 %v1677, %v1675
  %v1850 = vpack.c.b16 %v1678, %v1676
  %v1851 = vpack.c.b16 %v1681, %v1679
  %v1852 = vpack.c.b16 %v1682, %v1680
  %v1853 = vpack.c.b16 %v1685, %v1683
  %v1854 = vpack.c.b16 %v1686, %v1684
  %v1855 = vpack.c.b16 %v1689, %v1687
  %v1856 = vpack.c.b16 %v1690, %v1688
  %v1857 = vpack.c.b16 %v1693, %v1691
  %v1858 = vpack.c.b16 %v1694, %v1692
  %v1859 = vpack.c.b16 %v1697, %v1695
  %v1860 = vpack.c.b16 %v1698, %v1696
  %v1861 = vpack.c.b16 %v1701, %v1699
  %v1862 = vpack.c.b16 %v1702, %v1700
  %v1863 = vpack.c.b16 %v1705, %v1703
  %v1864 = vpack.c.b16 %v1706, %v1704
  %v1865 = vpack.c.b16 %v1709, %v1707
  %v1866 = vpack.c.b16 %v1710, %v1708
  %v1867 = vpack.c.b16 %v1713, %v1711
  %v1868 = vpack.c.b16 %v1714, %v1712
  %v1869 = vpack.c.b16 %v1717, %v1715
  %v1870 = vpack.c.b16 %v1718, %v1716
  %v1871 = vpack.c.b16 %v1721, %v1719
  %v1872 = vpack.c.b16 %v1722, %v1720
  %v1873 = vpack.c.b16 %v1725, %v1723
  %v1874 = vpack.c.b16 %v1726, %v1724
  %v1875 = vpack.c.b16 %v1729, %v1727
  %v1876 = vpack.c.b16 %v1730, %v1728
  %v1877 = vpack.c.b16 %v1733, %v1731
  %v1878 = vpack.c.b16 %v1734, %v1732
  %v1879 = vpack.c.b16 %v1737, %v1735
  %v1880 = vpack.c.b16 %v1738, %v1736
  %v1881 = vpack.c.b16 %v1741, %v1739
  %v1882 = vpack.c.b16 %v1742, %v1740
  %v1883 = vpack.c.b16 %v1745, %v1743
  %v1884 = vpack.c.b16 %v1746, %v1744
  %v1885 = vpack.c.b16 %v1749, %v1747
  %v1886 = vpack.c.b16 %v1750, %v1748
  %v1887 = vpack.c.b16 %v1753, %v1751
  %v1888 = vpack.c.b16 %v1754, %v1752
  %v1889 = vpack.c.b16 %v1757, %v1755
  %v1890 = vpack.c.b16 %v1758, %v1756
  %v1891 = vpack.c.b16 %v1761, %v1759
  %v1892 = vpack.c.b16 %v1762, %v1760
  %v1893 = vpack.c.b16 %v1765, %v1763
  %v1894 = vpack.c.b16 %v1766, %v1764
  %v1895 = vpack.c.b16 %v1769, %v1767
  %v1896 = vpack.c.b16 %v1770, %v1768
  %v1897 = vpack.c.b16 %v1773, %v1771
  %v1898 = vpack.c.b16 %v1774, %v1772
  %v1899 = vpack.c.b16 %v1777, %v1775
  %v1900 = vpack.c.b16 %v1778, %v1776
  %v1901 = vpack.c.b16 %v1781, %v1779
  %v1902 = vpack.c.b16 %v1782, %v1780
  %v1903 = vpack.c.b16 %v1785, %v1783
  %v1904 = vpack.c.b16 %v1786, %v1784
  %v1905 = vpack.c.b16 %v1789, %v1787
  %v1906 = vpack.c.b16 %v1790, %v1788
  %v1907 = vpack.c.b16 %v1793, %v1791
  %v1908 = vpack.c.b16 %v1794, %v1792
  %v1909 = vpack.c.b16 %v1797, %v1795
  %v1910 = vpack.c.b16 %v1798, %v1796
  %v1911 = vpack.c.b16 %v1801, %v1799
  %v1912 = vpack.c.b16 %v1802, %v1800
  %v1913 = vpack.c.b16 %v1805, %v1803
  %v1914 = vpack.c.b16 %v1806, %v1804
  %v1915 = vpack.c.b16 %v1809, %v1807
  %v1916 = vpack.c.b16 %v1810, %v1808
  %v1917 = vpack.c.b16 %v1813, %v1811
  %v1918 = vpack.c.b16 %v1814, %v1812
  %v1919 = vpack.c.b16 %v1817, %v1815
  %v1920 = vpack.c.b16 %v1818, %v1816
  %v1921 = vpack.c.b16 %v1821, %v1819
  %v1922 = vpack.c.b16 %v1822, %v1820
  %v1923 = vpack.c.b16 %v1825, %v1823
  %v1924 = vpack.c.b16 %v1826, %v1824
  %v1925 = vpack.c.b16 %v1829, %v1827
  %v1926 = vpack.c.b16 %v1830, %v1828
  %2023 = vmatprep.subr.bf16.mxu0 %v1832
  %2024 = vmatpush1.bf16.msra.mxu0 %v1831
  %2025 = vmatprep.subr.bf16.mxu0 %v1834
  %2026 = vmatpush1.bf16.msra.mxu0 %v1833
  %2027 = vmatprep.subr.bf16.mxu0 %v1836
  %2028 = vmatpush1.bf16.msra.mxu0 %v1835
  %2029 = vmatprep.subr.bf16.mxu0 %v1838
  %2030 = vmatpush1.bf16.msra.mxu0 %v1837
  %2031 = vmatprep.subr.bf16.mxu0 %v1840
  %2032 = vmatpush1.bf16.msra.mxu0 %v1839
  %2033 = vmatprep.subr.bf16.mxu0 %v1842
  %2034 = vmatpush1.bf16.msra.mxu0 %v1841
  %2035 = vmatprep.subr.bf16.mxu0 %v1844
  %2036 = vmatpush1.bf16.msra.mxu0 %v1843
  %2037 = vmatprep.subr.bf16.mxu0 %v1846
  %2038 = vmatpush1.bf16.msra.mxu0 %v1845
  %2039 = vmatprep.subr.bf16.mxu0 %v1848
  %2040 = vmatpush1.bf16.msra.mxu0 %v1847
  %2041 = vmatprep.subr.bf16.mxu0 %v1850
  %2042 = vmatpush1.bf16.msra.mxu0 %v1849
  %2043 = vmatprep.subr.bf16.mxu0 %v1852
  %2044 = vmatpush1.bf16.msra.mxu0 %v1851
  %2045 = vmatprep.subr.bf16.mxu0 %v1854
  %2046 = vmatpush1.bf16.msra.mxu0 %v1853
  %2047 = vmatprep.subr.bf16.mxu0 %v1856
  %2048 = vmatpush1.bf16.msra.mxu0 %v1855
  %2049 = vmatprep.subr.bf16.mxu0 %v1858
  %2050 = vmatpush1.bf16.msra.mxu0 %v1857
  %2051 = vmatprep.subr.bf16.mxu0 %v1860
  %2052 = vmatpush1.bf16.msra.mxu0 %v1859
  %2053 = vmatprep.subr.bf16.mxu0 %v1862
  %2054 = vmatpush1.bf16.msra.mxu0 %v1861
  %2055 = vmatprep.mubr.bf16.mxu0 %v130
  %2056 = vmatmul.mubr.bf16.gmra.mrb[0].mxu0 %v129
  %v2057 = vpop.f32.mrb[0].mxu0
  %v2058 = vadd.f32 0.0, %v2057
  %v2059 = vpop.f32.mrb[0].mxu0
  %v2060 = vadd.f32 0.0, %v2059
  %v2061 = vpop.f32.mrb[0].mxu0
  %v2062 = vpop.f32.mrb[0].mxu0
  %2063 = vdwg.mxu0
  %2064 = vmatprep.subr.bf16.mxu0 %v1864
  %2065 = vmatpush1.bf16.msra.mxu0 %v1863
  %2066 = vmatprep.subr.bf16.mxu0 %v1866
  %2067 = vmatpush1.bf16.msra.mxu0 %v1865
  %2068 = vmatprep.subr.bf16.mxu0 %v1868
  %2069 = vmatpush1.bf16.msra.mxu0 %v1867
  %2070 = vmatprep.subr.bf16.mxu0 %v1870
  %2071 = vmatpush1.bf16.msra.mxu0 %v1869
  %2072 = vmatprep.subr.bf16.mxu0 %v1872
  %2073 = vmatpush1.bf16.msra.mxu0 %v1871
  %2074 = vmatprep.subr.bf16.mxu0 %v1874
  %2075 = vmatpush1.bf16.msra.mxu0 %v1873
  %2076 = vmatprep.subr.bf16.mxu0 %v1876
  %2077 = vmatpush1.bf16.msra.mxu0 %v1875
  %2078 = vmatprep.subr.bf16.mxu0 %v1878
  %2079 = vmatpush1.bf16.msra.mxu0 %v1877
  %2080 = vmatprep.subr.bf16.mxu0 %v1880
  %2081 = vmatpush1.bf16.msra.mxu0 %v1879
  %2082 = vmatprep.subr.bf16.mxu0 %v1882
  %2083 = vmatpush1.bf16.msra.mxu0 %v1881
  %2084 = vmatprep.subr.bf16.mxu0 %v1884
  %2085 = vmatpush1.bf16.msra.mxu0 %v1883
  %2086 = vmatprep.subr.bf16.mxu0 %v1886
  %2087 = vmatpush1.bf16.msra.mxu0 %v1885
  %2088 = vmatprep.subr.bf16.mxu0 %v1888
  %2089 = vmatpush1.bf16.msra.mxu0 %v1887
  %2090 = vmatprep.subr.bf16.mxu0 %v1890
  %2091 = vmatpush1.bf16.msra.mxu0 %v1889
  %2092 = vmatprep.subr.bf16.mxu0 %v1892
  %2093 = vmatpush1.bf16.msra.mxu0 %v1891
  %2094 = vmatprep.subr.bf16.mxu0 %v1894
  %2095 = vmatpush1.bf16.msra.mxu0 %v1893
  %2096 = vmatprep.mubr.bf16.mxu0 %v132
  %2097 = vmatmul.mubr.bf16.gmra.mrb[0].mxu0 %v131
  %v2098 = vpop.f32.mrb[0].mxu0
  %v2099 = vadd.f32 %v2058, %v2098
  %v2100 = vpop.f32.mrb[0].mxu0
  %v2101 = vadd.f32 %v2060, %v2100
  %v2102 = vpop.f32.mrb[0].mxu0
  %v2103 = vpop.f32.mrb[0].mxu0
  %2104 = vdwg.mxu0
  %2105 = vmatprep.subr.bf16.mxu0 %v1896
  %2106 = vmatpush1.bf16.msra.mxu0 %v1895
  %2107 = vmatprep.subr.bf16.mxu0 %v1898
  %2108 = vmatpush1.bf16.msra.mxu0 %v1897
  %2109 = vmatprep.subr.bf16.mxu0 %v1900
  %2110 = vmatpush1.bf16.msra.mxu0 %v1899
  %2111 = vmatprep.subr.bf16.mxu0 %v1902
  %2112 = vmatpush1.bf16.msra.mxu0 %v1901
  %2113 = vmatprep.subr.bf16.mxu0 %v1904
  %2114 = vmatpush1.bf16.msra.mxu0 %v1903
  %2115 = vmatprep.subr.bf16.mxu0 %v1906
  %2116 = vmatpush1.bf16.msra.mxu0 %v1905
  %2117 = vmatprep.subr.bf16.mxu0 %v1908
  %2118 = vmatpush1.bf16.msra.mxu0 %v1907
  %2119 = vmatprep.subr.bf16.mxu0 %v1910
  %2120 = vmatpush1.bf16.msra.mxu0 %v1909
  %2121 = vmatprep.subr.bf16.mxu0 %v1912
  %2122 = vmatpush1.bf16.msra.mxu0 %v1911
  %2123 = vmatprep.subr.bf16.mxu0 %v1914
  %2124 = vmatpush1.bf16.msra.mxu0 %v1913
  %2125 = vmatprep.subr.bf16.mxu0 %v1916
  %2126 = vmatpush1.bf16.msra.mxu0 %v1915
  %2127 = vmatprep.subr.bf16.mxu0 %v1918
  %2128 = vmatpush1.bf16.msra.mxu0 %v1917
  %2129 = vmatprep.subr.bf16.mxu0 %v1920
  %2130 = vmatpush1.bf16.msra.mxu0 %v1919
  %2131 = vmatprep.subr.bf16.mxu0 %v1922
  %2132 = vmatpush1.bf16.msra.mxu0 %v1921
  %2133 = vmatprep.subr.bf16.mxu0 %v1924
  %2134 = vmatpush1.bf16.msra.mxu0 %v1923
  %2135 = vmatprep.subr.bf16.mxu0 %v1926
  %2136 = vmatpush1.bf16.msra.mxu0 %v1925
  %2137 = vmatprep.mubr.bf16.mxu0 %v134
  %2138 = vmatmul.mubr.bf16.gmra.mrb[0].mxu0 %v133
  %v2139 = vpop.f32.mrb[0].mxu0
  %v2140 = vadd.f32 %v2099, %v2139
  %v2141 = vpop.f32.mrb[0].mxu0
  %v2142 = vadd.f32 %v2101, %v2141
  %v2143 = vpop.f32.mrb[0].mxu0
  %v2144 = vpop.f32.mrb[0].mxu0
  %2145 = vdwg.mxu0
  %v2146 = vmax.f32 %v1444, %v2140
  %v2147 = vmax.f32 %v1445, %v2142
  %s2148 = scalar_lea.vmem %s1, 2304
  %v2149 = vld [vmem:[%s2148] sm:$0xff]
  %v2150 = vld [vmem:[%s2148 + $0x8] sm:$0xff]
  %v2151 = vld [vmem:[%s2148 + $0x10] sm:$0xff]
  %v2152 = vld [vmem:[%s2148 + $0x18] sm:$0xff]
  %v2153 = vld [vmem:[%s2148 + $0x20] sm:$0xff]
  %v2154 = vld [vmem:[%s2148 + $0x28] sm:$0xff]
  %v2155 = vld [vmem:[%s2148 + $0x30] sm:$0xff]
  %v2156 = vld [vmem:[%s2148 + $0x38] sm:$0xff]
  %v2157 = vld [vmem:[%s2148 + $0x40] sm:$0xff]
  %v2158 = vld [vmem:[%s2148 + $0x48] sm:$0xff]
  %v2159 = vld [vmem:[%s2148 + $0x50] sm:$0xff]
  %v2160 = vld [vmem:[%s2148 + $0x58] sm:$0xff]
  %v2161 = vld [vmem:[%s2148 + $0x60] sm:$0xff]
  %v2162 = vld [vmem:[%s2148 + $0x68] sm:$0xff]
  %v2163 = vld [vmem:[%s2148 + $0x70] sm:$0xff]
  %v2164 = vld [vmem:[%s2148 + $0x78] sm:$0xff]
  %v2165 = vld [vmem:[%s2148 + $0x80] sm:$0xff]
  %v2166 = vld [vmem:[%s2148 + $0x88] sm:$0xff]
  %v2167 = vld [vmem:[%s2148 + $0x90] sm:$0xff]
  %v2168 = vld [vmem:[%s2148 + $0x98] sm:$0xff]
  %v2169 = vld [vmem:[%s2148 + $0xa0] sm:$0xff]
  %v2170 = vld [vmem:[%s2148 + $0xa8] sm:$0xff]
  %v2171 = vld [vmem:[%s2148 + $0xb0] sm:$0xff]
  %v2172 = vld [vmem:[%s2148 + $0xb8] sm:$0xff]
  %v2173 = vld [vmem:[%s2148 + $0xc0] sm:$0xff]
  %v2174 = vld [vmem:[%s2148 + $0xc8] sm:$0xff]
  %v2175 = vld [vmem:[%s2148 + $0xd0] sm:$0xff]
  %v2176 = vld [vmem:[%s2148 + $0xd8] sm:$0xff]
  %v2177 = vld [vmem:[%s2148 + $0xe0] sm:$0xff]
  %v2178 = vld [vmem:[%s2148 + $0xe8] sm:$0xff]
  %v2179 = vld [vmem:[%s2148 + $0xf0] sm:$0xff]
  %v2180 = vld [vmem:[%s2148 + $0xf8] sm:$0xff]
  %v2181 = vld [vmem:[%s2148 + $0x100] sm:$0xff]
  %v2182 = vld [vmem:[%s2148 + $0x108] sm:$0xff]
  %v2183 = vld [vmem:[%s2148 + $0x110] sm:$0xff]
  %v2184 = vld [vmem:[%s2148 + $0x118] sm:$0xff]
  %v2185 = vld [vmem:[%s2148 + $0x120] sm:$0xff]
  %v2186 = vld [vmem:[%s2148 + $0x128] sm:$0xff]
  %v2187 = vld [vmem:[%s2148 + $0x130] sm:$0xff]
  %v2188 = vld [vmem:[%s2148 + $0x138] sm:$0xff]
  %v2189 = vld [vmem:[%s2148 + $0x140] sm:$0xff]
  %v2190 = vld [vmem:[%s2148 + $0x148] sm:$0xff]
  %v2191 = vld [vmem:[%s2148 + $0x150] sm:$0xff]
  %v2192 = vld [vmem:[%s2148 + $0x158] sm:$0xff]
  %v2193 = vld [vmem:[%s2148 + $0x160] sm:$0xff]
  %v2194 = vld [vmem:[%s2148 + $0x168] sm:$0xff]
  %v2195 = vld [vmem:[%s2148 + $0x170] sm:$0xff]
  %v2196 = vld [vmem:[%s2148 + $0x178] sm:$0xff]
  %v2197 = vld [vmem:[%s2148 + $0x180] sm:$0xff]
  %v2198 = vld [vmem:[%s2148 + $0x188] sm:$0xff]
  %v2199 = vld [vmem:[%s2148 + $0x190] sm:$0xff]
  %v2200 = vld [vmem:[%s2148 + $0x198] sm:$0xff]
  %v2201 = vld [vmem:[%s2148 + $0x1a0] sm:$0xff]
  %v2202 = vld [vmem:[%s2148 + $0x1a8] sm:$0xff]
  %v2203 = vld [vmem:[%s2148 + $0x1b0] sm:$0xff]
  %v2204 = vld [vmem:[%s2148 + $0x1b8] sm:$0xff]
  %v2205 = vld [vmem:[%s2148 + $0x1c0] sm:$0xff]
  %v2206 = vld [vmem:[%s2148 + $0x1c8] sm:$0xff]
  %v2207 = vld [vmem:[%s2148 + $0x1d0] sm:$0xff]
  %v2208 = vld [vmem:[%s2148 + $0x1d8] sm:$0xff]
  %v2209 = vld [vmem:[%s2148 + $0x1e0] sm:$0xff]
  %v2210 = vld [vmem:[%s2148 + $0x1e8] sm:$0xff]
  %v2211 = vld [vmem:[%s2148 + $0x1f0] sm:$0xff]
  %v2212 = vld [vmem:[%s2148 + $0x1f8] sm:$0xff]
  %v2213 = vld [vmem:[%s2148 + $0x200] sm:$0xff]
  %v2214 = vld [vmem:[%s2148 + $0x208] sm:$0xff]
  %v2215 = vld [vmem:[%s2148 + $0x210] sm:$0xff]
  %v2216 = vld [vmem:[%s2148 + $0x218] sm:$0xff]
  %v2217 = vld [vmem:[%s2148 + $0x220] sm:$0xff]
  %v2218 = vld [vmem:[%s2148 + $0x228] sm:$0xff]
  %v2219 = vld [vmem:[%s2148 + $0x230] sm:$0xff]
  %v2220 = vld [vmem:[%s2148 + $0x238] sm:$0xff]
  %v2221 = vld [vmem:[%s2148 + $0x240] sm:$0xff]
  %v2222 = vld [vmem:[%s2148 + $0x248] sm:$0xff]
  %v2223 = vld [vmem:[%s2148 + $0x250] sm:$0xff]
  %v2224 = vld [vmem:[%s2148 + $0x258] sm:$0xff]
  %v2225 = vld [vmem:[%s2148 + $0x260] sm:$0xff]
  %v2226 = vld [vmem:[%s2148 + $0x268] sm:$0xff]
  %v2227 = vld [vmem:[%s2148 + $0x270] sm:$0xff]
  %v2228 = vld [vmem:[%s2148 + $0x278] sm:$0xff]
  %v2229 = vld [vmem:[%s2148 + $0x280] sm:$0xff]
  %v2230 = vld [vmem:[%s2148 + $0x288] sm:$0xff]
  %v2231 = vld [vmem:[%s2148 + $0x290] sm:$0xff]
  %v2232 = vld [vmem:[%s2148 + $0x298] sm:$0xff]
  %v2233 = vld [vmem:[%s2148 + $0x2a0] sm:$0xff]
  %v2234 = vld [vmem:[%s2148 + $0x2a8] sm:$0xff]
  %v2235 = vld [vmem:[%s2148 + $0x2b0] sm:$0xff]
  %v2236 = vld [vmem:[%s2148 + $0x2b8] sm:$0xff]
  %v2237 = vld [vmem:[%s2148 + $0x2c0] sm:$0xff]
  %v2238 = vld [vmem:[%s2148 + $0x2c8] sm:$0xff]
  %v2239 = vld [vmem:[%s2148 + $0x2d0] sm:$0xff]
  %v2240 = vld [vmem:[%s2148 + $0x2d8] sm:$0xff]
  %v2241 = vld [vmem:[%s2148 + $0x2e0] sm:$0xff]
  %v2242 = vld [vmem:[%s2148 + $0x2e8] sm:$0xff]
  %v2243 = vld [vmem:[%s2148 + $0x2f0] sm:$0xff]
  %v2244 = vld [vmem:[%s2148 + $0x2f8] sm:$0xff]
  %v2341 = vunpack.c.l.b16 %v2149
  %v2342 = vunpack.c.h.b16 %v2149
  %v2343 = vunpack.c.l.b16 %v2150
  %v2344 = vunpack.c.h.b16 %v2150
  %v2345 = vunpack.c.l.b16 %v2151
  %v2346 = vunpack.c.h.b16 %v2151
  %v2347 = vunpack.c.l.b16 %v2152
  %v2348 = vunpack.c.h.b16 %v2152
  %v2349 = vunpack.c.l.b16 %v2153
  %v2350 = vunpack.c.h.b16 %v2153
  %v2351 = vunpack.c.l.b16 %v2154
  %v2352 = vunpack.c.h.b16 %v2154
  %v2353 = vunpack.c.l.b16 %v2155
  %v2354 = vunpack.c.h.b16 %v2155
  %v2355 = vunpack.c.l.b16 %v2156
  %v2356 = vunpack.c.h.b16 %v2156
  %v2357 = vunpack.c.l.b16 %v2157
  %v2358 = vunpack.c.h.b16 %v2157
  %v2359 = vunpack.c.l.b16 %v2158
  %v2360 = vunpack.c.h.b16 %v2158
  %v2361 = vunpack.c.l.b16 %v2159
  %v2362 = vunpack.c.h.b16 %v2159
  %v2363 = vunpack.c.l.b16 %v2160
  %v2364 = vunpack.c.h.b16 %v2160
  %v2365 = vunpack.c.l.b16 %v2161
  %v2366 = vunpack.c.h.b16 %v2161
  %v2367 = vunpack.c.l.b16 %v2162
  %v2368 = vunpack.c.h.b16 %v2162
  %v2369 = vunpack.c.l.b16 %v2163
  %v2370 = vunpack.c.h.b16 %v2163
  %v2371 = vunpack.c.l.b16 %v2164
  %v2372 = vunpack.c.h.b16 %v2164
  %v2373 = vunpack.c.l.b16 %v2165
  %v2374 = vunpack.c.h.b16 %v2165
  %v2375 = vunpack.c.l.b16 %v2166
  %v2376 = vunpack.c.h.b16 %v2166
  %v2377 = vunpack.c.l.b16 %v2167
  %v2378 = vunpack.c.h.b16 %v2167
  %v2379 = vunpack.c.l.b16 %v2168
  %v2380 = vunpack.c.h.b16 %v2168
  %v2381 = vunpack.c.l.b16 %v2169
  %v2382 = vunpack.c.h.b16 %v2169
  %v2383 = vunpack.c.l.b16 %v2170
  %v2384 = vunpack.c.h.b16 %v2170
  %v2385 = vunpack.c.l.b16 %v2171
  %v2386 = vunpack.c.h.b16 %v2171
  %v2387 = vunpack.c.l.b16 %v2172
  %v2388 = vunpack.c.h.b16 %v2172
  %v2389 = vunpack.c.l.b16 %v2173
  %v2390 = vunpack.c.h.b16 %v2173
  %v2391 = vunpack.c.l.b16 %v2174
  %v2392 = vunpack.c.h.b16 %v2174
  %v2393 = vunpack.c.l.b16 %v2175
  %v2394 = vunpack.c.h.b16 %v2175
  %v2395 = vunpack.c.l.b16 %v2176
  %v2396 = vunpack.c.h.b16 %v2176
  %v2397 = vunpack.c.l.b16 %v2177
  %v2398 = vunpack.c.h.b16 %v2177
  %v2399 = vunpack.c.l.b16 %v2178
  %v2400 = vunpack.c.h.b16 %v2178
  %v2401 = vunpack.c.l.b16 %v2179
  %v2402 = vunpack.c.h.b16 %v2179
  %v2403 = vunpack.c.l.b16 %v2180
  %v2404 = vunpack.c.h.b16 %v2180
  %v2405 = vunpack.c.l.b16 %v2181
  %v2406 = vunpack.c.h.b16 %v2181
  %v2407 = vunpack.c.l.b16 %v2182
  %v2408 = vunpack.c.h.b16 %v2182
  %v2409 = vunpack.c.l.b16 %v2183
  %v2410 = vunpack.c.h.b16 %v2183
  %v2411 = vunpack.c.l.b16 %v2184
  %v2412 = vunpack.c.h.b16 %v2184
  %v2413 = vunpack.c.l.b16 %v2185
  %v2414 = vunpack.c.h.b16 %v2185
  %v2415 = vunpack.c.l.b16 %v2186
  %v2416 = vunpack.c.h.b16 %v2186
  %v2417 = vunpack.c.l.b16 %v2187
  %v2418 = vunpack.c.h.b16 %v2187
  %v2419 = vunpack.c.l.b16 %v2188
  %v2420 = vunpack.c.h.b16 %v2188
  %v2421 = vunpack.c.l.b16 %v2189
  %v2422 = vunpack.c.h.b16 %v2189
  %v2423 = vunpack.c.l.b16 %v2190
  %v2424 = vunpack.c.h.b16 %v2190
  %v2425 = vunpack.c.l.b16 %v2191
  %v2426 = vunpack.c.h.b16 %v2191
  %v2427 = vunpack.c.l.b16 %v2192
  %v2428 = vunpack.c.h.b16 %v2192
  %v2429 = vunpack.c.l.b16 %v2193
  %v2430 = vunpack.c.h.b16 %v2193
  %v2431 = vunpack.c.l.b16 %v2194
  %v2432 = vunpack.c.h.b16 %v2194
  %v2433 = vunpack.c.l.b16 %v2195
  %v2434 = vunpack.c.h.b16 %v2195
  %v2435 = vunpack.c.l.b16 %v2196
  %v2436 = vunpack.c.h.b16 %v2196
  %v2437 = vunpack.c.l.b16 %v2197
  %v2438 = vunpack.c.h.b16 %v2197
  %v2439 = vunpack.c.l.b16 %v2198
  %v2440 = vunpack.c.h.b16 %v2198
  %v2441 = vunpack.c.l.b16 %v2199
  %v2442 = vunpack.c.h.b16 %v2199
  %v2443 = vunpack.c.l.b16 %v2200
  %v2444 = vunpack.c.h.b16 %v2200
  %v2445 = vunpack.c.l.b16 %v2201
  %v2446 = vunpack.c.h.b16 %v2201
  %v2447 = vunpack.c.l.b16 %v2202
  %v2448 = vunpack.c.h.b16 %v2202
  %v2449 = vunpack.c.l.b16 %v2203
  %v2450 = vunpack.c.h.b16 %v2203
  %v2451 = vunpack.c.l.b16 %v2204
  %v2452 = vunpack.c.h.b16 %v2204
  %v2453 = vunpack.c.l.b16 %v2205
  %v2454 = vunpack.c.h.b16 %v2205
  %v2455 = vunpack.c.l.b16 %v2206
  %v2456 = vunpack.c.h.b16 %v2206
  %v2457 = vunpack.c.l.b16 %v2207
  %v2458 = vunpack.c.h.b16 %v2207
  %v2459 = vunpack.c.l.b16 %v2208
  %v2460 = vunpack.c.h.b16 %v2208
  %v2461 = vunpack.c.l.b16 %v2209
  %v2462 = vunpack.c.h.b16 %v2209
  %v2463 = vunpack.c.l.b16 %v2210
  %v2464 = vunpack.c.h.b16 %v2210
  %v2465 = vunpack.c.l.b16 %v2211
  %v2466 = vunpack.c.h.b16 %v2211
  %v2467 = vunpack.c.l.b16 %v2212
  %v2468 = vunpack.c.h.b16 %v2212
  %v2469 = vunpack.c.l.b16 %v2213
  %v2470 = vunpack.c.h.b16 %v2213
  %v2471 = vunpack.c.l.b16 %v2214
  %v2472 = vunpack.c.h.b16 %v2214
  %v2473 = vunpack.c.l.b16 %v2215
  %v2474 = vunpack.c.h.b16 %v2215
  %v2475 = vunpack.c.l.b16 %v2216
  %v2476 = vunpack.c.h.b16 %v2216
  %v2477 = vunpack.c.l.b16 %v2217
  %v2478 = vunpack.c.h.b16 %v2217
  %v2479 = vunpack.c.l.b16 %v2218
  %v2480 = vunpack.c.h.b16 %v2218
  %v2481 = vunpack.c.l.b16 %v2219
  %v2482 = vunpack.c.h.b16 %v2219
  %v2483 = vunpack.c.l.b16 %v2220
  %v2484 = vunpack.c.h.b16 %v2220
  %v2485 = vunpack.c.l.b16 %v2221
  %v2486 = vunpack.c.h.b16 %v2221
  %v2487 = vunpack.c.l.b16 %v2222
  %v2488 = vunpack.c.h.b16 %v2222
  %v2489 = vunpack.c.l.b16 %v2223
  %v2490 = vunpack.c.h.b16 %v2223
  %v2491 = vunpack.c.l.b16 %v2224
  %v2492 = vunpack.c.h.b16 %v2224
  %v2493 = vunpack.c.l.b16 %v2225
  %v2494 = vunpack.c.h.b16 %v2225
  %v2495 = vunpack.c.l.b16 %v2226
  %v2496 = vunpack.c.h.b16 %v2226
  %v2497 = vunpack.c.l.b16 %v2227
  %v2498 = vunpack.c.h.b16 %v2227
  %v2499 = vunpack.c.l.b16 %v2228
  %v2500 = vunpack.c.h.b16 %v2228
  %v2501 = vunpack.c.l.b16 %v2229
  %v2502 = vunpack.c.h.b16 %v2229
  %v2503 = vunpack.c.l.b16 %v2230
  %v2504 = vunpack.c.h.b16 %v2230
  %v2505 = vunpack.c.l.b16 %v2231
  %v2506 = vunpack.c.h.b16 %v2231
  %v2507 = vunpack.c.l.b16 %v2232
  %v2508 = vunpack.c.h.b16 %v2232
  %v2509 = vunpack.c.l.b16 %v2233
  %v2510 = vunpack.c.h.b16 %v2233
  %v2511 = vunpack.c.l.b16 %v2234
  %v2512 = vunpack.c.h.b16 %v2234
  %v2513 = vunpack.c.l.b16 %v2235
  %v2514 = vunpack.c.h.b16 %v2235
  %v2515 = vunpack.c.l.b16 %v2236
  %v2516 = vunpack.c.h.b16 %v2236
  %v2517 = vunpack.c.l.b16 %v2237
  %v2518 = vunpack.c.h.b16 %v2237
  %v2519 = vunpack.c.l.b16 %v2238
  %v2520 = vunpack.c.h.b16 %v2238
  %v2521 = vunpack.c.l.b16 %v2239
  %v2522 = vunpack.c.h.b16 %v2239
  %v2523 = vunpack.c.l.b16 %v2240
  %v2524 = vunpack.c.h.b16 %v2240
  %v2525 = vunpack.c.l.b16 %v2241
  %v2526 = vunpack.c.h.b16 %v2241
  %v2527 = vunpack.c.l.b16 %v2242
  %v2528 = vunpack.c.h.b16 %v2242
  %v2529 = vunpack.c.l.b16 %v2243
  %v2530 = vunpack.c.h.b16 %v2243
  %v2531 = vunpack.c.l.b16 %v2244
  %v2532 = vunpack.c.h.b16 %v2244
  %v2533 = vpack.c.b16 %v2343, %v2341
  %v2534 = vpack.c.b16 %v2344, %v2342
  %v2535 = vpack.c.b16 %v2347, %v2345
  %v2536 = vpack.c.b16 %v2348, %v2346
  %v2537 = vpack.c.b16 %v2351, %v2349
  %v2538 = vpack.c.b16 %v2352, %v2350
  %v2539 = vpack.c.b16 %v2355, %v2353
  %v2540 = vpack.c.b16 %v2356, %v2354
  %v2541 = vpack.c.b16 %v2359, %v2357
  %v2542 = vpack.c.b16 %v2360, %v2358
  %v2543 = vpack.c.b16 %v2363, %v2361
  %v2544 = vpack.c.b16 %v2364, %v2362
  %v2545 = vpack.c.b16 %v2367, %v2365
  %v2546 = vpack.c.b16 %v2368, %v2366
  %v2547 = vpack.c.b16 %v2371, %v2369
  %v2548 = vpack.c.b16 %v2372, %v2370
  %v2549 = vpack.c.b16 %v2375, %v2373
  %v2550 = vpack.c.b16 %v2376, %v2374
  %v2551 = vpack.c.b16 %v2379, %v2377
  %v2552 = vpack.c.b16 %v2380, %v2378
  %v2553 = vpack.c.b16 %v2383, %v2381
  %v2554 = vpack.c.b16 %v2384, %v2382
  %v2555 = vpack.c.b16 %v2387, %v2385
  %v2556 = vpack.c.b16 %v2388, %v2386
  %v2557 = vpack.c.b16 %v2391, %v2389
  %v2558 = vpack.c.b16 %v2392, %v2390
  %v2559 = vpack.c.b16 %v2395, %v2393
  %v2560 = vpack.c.b16 %v2396, %v2394
  %v2561 = vpack.c.b16 %v2399, %v2397
  %v2562 = vpack.c.b16 %v2400, %v2398
  %v2563 = vpack.c.b16 %v2403, %v2401
  %v2564 = vpack.c.b16 %v2404, %v2402
  %v2565 = vpack.c.b16 %v2407, %v2405
  %v2566 = vpack.c.b16 %v2408, %v2406
  %v2567 = vpack.c.b16 %v2411, %v2409
  %v2568 = vpack.c.b16 %v2412, %v2410
  %v2569 = vpack.c.b16 %v2415, %v2413
  %v2570 = vpack.c.b16 %v2416, %v2414
  %v2571 = vpack.c.b16 %v2419, %v2417
  %v2572 = vpack.c.b16 %v2420, %v2418
  %v2573 = vpack.c.b16 %v2423, %v2421
  %v2574 = vpack.c.b16 %v2424, %v2422
  %v2575 = vpack.c.b16 %v2427, %v2425
  %v2576 = vpack.c.b16 %v2428, %v2426
  %v2577 = vpack.c.b16 %v2431, %v2429
  %v2578 = vpack.c.b16 %v2432, %v2430
  %v2579 = vpack.c.b16 %v2435, %v2433
  %v2580 = vpack.c.b16 %v2436, %v2434
  %v2581 = vpack.c.b16 %v2439, %v2437
  %v2582 = vpack.c.b16 %v2440, %v2438
  %v2583 = vpack.c.b16 %v2443, %v2441
  %v2584 = vpack.c.b16 %v2444, %v2442
  %v2585 = vpack.c.b16 %v2447, %v2445
  %v2586 = vpack.c.b16 %v2448, %v2446
  %v2587 = vpack.c.b16 %v2451, %v2449
  %v2588 = vpack.c.b16 %v2452, %v2450
  %v2589 = vpack.c.b16 %v2455, %v2453
  %v2590 = vpack.c.b16 %v2456, %v2454
  %v2591 = vpack.c.b16 %v2459, %v2457
  %v2592 = vpack.c.b16 %v2460, %v2458
  %v2593 = vpack.c.b16 %v2463, %v2461
  %v2594 = vpack.c.b16 %v2464, %v2462
  %v2595 = vpack.c.b16 %v2467, %v2465
  %v2596 = vpack.c.b16 %v2468, %v2466
  %v2597 = vpack.c.b16 %v2471, %v2469
  %v2598 = vpack.c.b16 %v2472, %v2470
  %v2599 = vpack.c.b16 %v2475, %v2473
  %v2600 = vpack.c.b16 %v2476, %v2474
  %v2601 = vpack.c.b16 %v2479, %v2477
  %v2602 = vpack.c.b16 %v2480, %v2478
  %v2603 = vpack.c.b16 %v2483, %v2481
  %v2604 = vpack.c.b16 %v2484, %v2482
  %v2605 = vpack.c.b16 %v2487, %v2485
  %v2606 = vpack.c.b16 %v2488, %v2486
  %v2607 = vpack.c.b16 %v2491, %v2489
  %v2608 = vpack.c.b16 %v2492, %v2490
  %v2609 = vpack.c.b16 %v2495, %v2493
  %v2610 = vpack.c.b16 %v2496, %v2494
  %v2611 = vpack.c.b16 %v2499, %v2497
  %v2612 = vpack.c.b16 %v2500, %v2498
  %v2613 = vpack.c.b16 %v2503, %v2501
  %v2614 = vpack.c.b16 %v2504, %v2502
  %v2615 = vpack.c.b16 %v2507, %v2505
  %v2616 = vpack.c.b16 %v2508, %v2506
  %v2617 = vpack.c.b16 %v2511, %v2509
  %v2618 = vpack.c.b16 %v2512, %v2510
  %v2619 = vpack.c.b16 %v2515, %v2513
  %v2620 = vpack.c.b16 %v2516, %v2514
  %v2621 = vpack.c.b16 %v2519, %v2517
  %v2622 = vpack.c.b16 %v2520, %v2518
  %v2623 = vpack.c.b16 %v2523, %v2521
  %v2624 = vpack.c.b16 %v2524, %v2522
  %v2625 = vpack.c.b16 %v2527, %v2525
  %v2626 = vpack.c.b16 %v2528, %v2526
  %v2627 = vpack.c.b16 %v2531, %v2529
  %v2628 = vpack.c.b16 %v2532, %v2530
  %2725 = vmatprep.subr.bf16.mxu0 %v2534
  %2726 = vmatpush1.bf16.msra.mxu0 %v2533
  %2727 = vmatprep.subr.bf16.mxu0 %v2536
  %2728 = vmatpush1.bf16.msra.mxu0 %v2535
  %2729 = vmatprep.subr.bf16.mxu0 %v2538
  %2730 = vmatpush1.bf16.msra.mxu0 %v2537
  %2731 = vmatprep.subr.bf16.mxu0 %v2540
  %2732 = vmatpush1.bf16.msra.mxu0 %v2539
  %2733 = vmatprep.subr.bf16.mxu0 %v2542
  %2734 = vmatpush1.bf16.msra.mxu0 %v2541
  %2735 = vmatprep.subr.bf16.mxu0 %v2544
  %2736 = vmatpush1.bf16.msra.mxu0 %v2543
  %2737 = vmatprep.subr.bf16.mxu0 %v2546
  %2738 = vmatpush1.bf16.msra.mxu0 %v2545
  %2739 = vmatprep.subr.bf16.mxu0 %v2548
  %2740 = vmatpush1.bf16.msra.mxu0 %v2547
  %2741 = vmatprep.subr.bf16.mxu0 %v2550
  %2742 = vmatpush1.bf16.msra.mxu0 %v2549
  %2743 = vmatprep.subr.bf16.mxu0 %v2552
  %2744 = vmatpush1.bf16.msra.mxu0 %v2551
  %2745 = vmatprep.subr.bf16.mxu0 %v2554
  %2746 = vmatpush1.bf16.msra.mxu0 %v2553
  %2747 = vmatprep.subr.bf16.mxu0 %v2556
  %2748 = vmatpush1.bf16.msra.mxu0 %v2555
  %2749 = vmatprep.subr.bf16.mxu0 %v2558
  %2750 = vmatpush1.bf16.msra.mxu0 %v2557
  %2751 = vmatprep.subr.bf16.mxu0 %v2560
  %2752 = vmatpush1.bf16.msra.mxu0 %v2559
  %2753 = vmatprep.subr.bf16.mxu0 %v2562
  %2754 = vmatpush1.bf16.msra.mxu0 %v2561
  %2755 = vmatprep.subr.bf16.mxu0 %v2564
  %2756 = vmatpush1.bf16.msra.mxu0 %v2563
  %2757 = vmatprep.mubr.bf16.mxu0 %v130
  %2758 = vmatmul.mubr.bf16.gmra.mrb[0].mxu0 %v129
  %v2759 = vpop.f32.mrb[0].mxu0
  %v2760 = vadd.f32 0.0, %v2759
  %v2761 = vpop.f32.mrb[0].mxu0
  %v2762 = vadd.f32 0.0, %v2761
  %v2763 = vpop.f32.mrb[0].mxu0
  %v2764 = vpop.f32.mrb[0].mxu0
  %2765 = vdwg.mxu0
  %2766 = vmatprep.subr.bf16.mxu0 %v2566
  %2767 = vmatpush1.bf16.msra.mxu0 %v2565
  %2768 = vmatprep.subr.bf16.mxu0 %v2568
  %2769 = vmatpush1.bf16.msra.mxu0 %v2567
  %2770 = vmatprep.subr.bf16.mxu0 %v2570
  %2771 = vmatpush1.bf16.msra.mxu0 %v2569
  %2772 = vmatprep.subr.bf16.mxu0 %v2572
  %2773 = vmatpush1.bf16.msra.mxu0 %v2571
  %2774 = vmatprep.subr.bf16.mxu0 %v2574
  %2775 = vmatpush1.bf16.msra.mxu0 %v2573
  %2776 = vmatprep.subr.bf16.mxu0 %v2576
  %2777 = vmatpush1.bf16.msra.mxu0 %v2575
  %2778 = vmatprep.subr.bf16.mxu0 %v2578
  %2779 = vmatpush1.bf16.msra.mxu0 %v2577
  %2780 = vmatprep.subr.bf16.mxu0 %v2580
  %2781 = vmatpush1.bf16.msra.mxu0 %v2579
  %2782 = vmatprep.subr.bf16.mxu0 %v2582
  %2783 = vmatpush1.bf16.msra.mxu0 %v2581
  %2784 = vmatprep.subr.bf16.mxu0 %v2584
  %2785 = vmatpush1.bf16.msra.mxu0 %v2583
  %2786 = vmatprep.subr.bf16.mxu0 %v2586
  %2787 = vmatpush1.bf16.msra.mxu0 %v2585
  %2788 = vmatprep.subr.bf16.mxu0 %v2588
  %2789 = vmatpush1.bf16.msra.mxu0 %v2587
  %2790 = vmatprep.subr.bf16.mxu0 %v2590
  %2791 = vmatpush1.bf16.msra.mxu0 %v2589
  %2792 = vmatprep.subr.bf16.mxu0 %v2592
  %2793 = vmatpush1.bf16.msra.mxu0 %v2591
  %2794 = vmatprep.subr.bf16.mxu0 %v2594
  %2795 = vmatpush1.bf16.msra.mxu0 %v2593
  %2796 = vmatprep.subr.bf16.mxu0 %v2596
  %2797 = vmatpush1.bf16.msra.mxu0 %v2595
  %2798 = vmatprep.mubr.bf16.mxu0 %v132
  %2799 = vmatmul.mubr.bf16.gmra.mrb[0].mxu0 %v131
  %v2800 = vpop.f32.mrb[0].mxu0
  %v2801 = vadd.f32 %v2760, %v2800
  %v2802 = vpop.f32.mrb[0].mxu0
  %v2803 = vadd.f32 %v2762, %v2802
  %v2804 = vpop.f32.mrb[0].mxu0
  %v2805 = vpop.f32.mrb[0].mxu0
  %2806 = vdwg.mxu0
  %2807 = vmatprep.subr.bf16.mxu0 %v2598
  %2808 = vmatpush1.bf16.msra.mxu0 %v2597
  %2809 = vmatprep.subr.bf16.mxu0 %v2600
  %2810 = vmatpush1.bf16.msra.mxu0 %v2599
  %2811 = vmatprep.subr.bf16.mxu0 %v2602
  %2812 = vmatpush1.bf16.msra.mxu0 %v2601
  %2813 = vmatprep.subr.bf16.mxu0 %v2604
  %2814 = vmatpush1.bf16.msra.mxu0 %v2603
  %2815 = vmatprep.subr.bf16.mxu0 %v2606
  %2816 = vmatpush1.bf16.msra.mxu0 %v2605
  %2817 = vmatprep.subr.bf16.mxu0 %v2608
  %2818 = vmatpush1.bf16.msra.mxu0 %v2607
  %2819 = vmatprep.subr.bf16.mxu0 %v2610
  %2820 = vmatpush1.bf16.msra.mxu0 %v2609
  %2821 = vmatprep.subr.bf16.mxu0 %v2612
  %2822 = vmatpush1.bf16.msra.mxu0 %v2611
  %2823 = vmatprep.subr.bf16.mxu0 %v2614
  %2824 = vmatpush1.bf16.msra.mxu0 %v2613
  %2825 = vmatprep.subr.bf16.mxu0 %v2616
  %2826 = vmatpush1.bf16.msra.mxu0 %v2615
  %2827 = vmatprep.subr.bf16.mxu0 %v2618
  %2828 = vmatpush1.bf16.msra.mxu0 %v2617
  %2829 = vmatprep.subr.bf16.mxu0 %v2620
  %2830 = vmatpush1.bf16.msra.mxu0 %v2619
  %2831 = vmatprep.subr.bf16.mxu0 %v2622
  %2832 = vmatpush1.bf16.msra.mxu0 %v2621
  %2833 = vmatprep.subr.bf16.mxu0 %v2624
  %2834 = vmatpush1.bf16.msra.mxu0 %v2623
  %2835 = vmatprep.subr.bf16.mxu0 %v2626
  %2836 = vmatpush1.bf16.msra.mxu0 %v2625
  %2837 = vmatprep.subr.bf16.mxu0 %v2628
  %2838 = vmatpush1.bf16.msra.mxu0 %v2627
  %2839 = vmatprep.mubr.bf16.mxu0 %v134
  %2840 = vmatmul.mubr.bf16.gmra.mrb[0].mxu0 %v133
  %v2841 = vpop.f32.mrb[0].mxu0
  %v2842 = vadd.f32 %v2801, %v2841
  %v2843 = vpop.f32.mrb[0].mxu0
  %v2844 = vadd.f32 %v2803, %v2843
  %v2845 = vpop.f32.mrb[0].mxu0
  %v2846 = vpop.f32.mrb[0].mxu0
  %2847 = vdwg.mxu0
  %v2848 = vmax.f32 %v2146, %v2842
  %v2849 = vmax.f32 %v2147, %v2844
  %s2850 = scalar_lea.vmem %s1, 3072
  %v2851 = vld [vmem:[%s2850] sm:$0xff]
  %v2852 = vld [vmem:[%s2850 + $0x8] sm:$0xff]
  %v2853 = vld [vmem:[%s2850 + $0x10] sm:$0xff]
  %v2854 = vld [vmem:[%s2850 + $0x18] sm:$0xff]
  %v2855 = vld [vmem:[%s2850 + $0x20] sm:$0xff]
  %v2856 = vld [vmem:[%s2850 + $0x28] sm:$0xff]
  %v2857 = vld [vmem:[%s2850 + $0x30] sm:$0xff]
  %v2858 = vld [vmem:[%s2850 + $0x38] sm:$0xff]
  %v2859 = vld [vmem:[%s2850 + $0x40] sm:$0xff]
  %v2860 = vld [vmem:[%s2850 + $0x48] sm:$0xff]
  %v2861 = vld [vmem:[%s2850 + $0x50] sm:$0xff]
  %v2862 = vld [vmem:[%s2850 + $0x58] sm:$0xff]
  %v2863 = vld [vmem:[%s2850 + $0x60] sm:$0xff]
  %v2864 = vld [vmem:[%s2850 + $0x68] sm:$0xff]
  %v2865 = vld [vmem:[%s2850 + $0x70] sm:$0xff]
  %v2866 = vld [vmem:[%s2850 + $0x78] sm:$0xff]
  %v2867 = vld [vmem:[%s2850 + $0x80] sm:$0xff]
  %v2868 = vld [vmem:[%s2850 + $0x88] sm:$0xff]
  %v2869 = vld [vmem:[%s2850 + $0x90] sm:$0xff]
  %v2870 = vld [vmem:[%s2850 + $0x98] sm:$0xff]
  %v2871 = vld [vmem:[%s2850 + $0xa0] sm:$0xff]
  %v2872 = vld [vmem:[%s2850 + $0xa8] sm:$0xff]
  %v2873 = vld [vmem:[%s2850 + $0xb0] sm:$0xff]
  %v2874 = vld [vmem:[%s2850 + $0xb8] sm:$0xff]
  %v2875 = vld [vmem:[%s2850 + $0xc0] sm:$0xff]
  %v2876 = vld [vmem:[%s2850 + $0xc8] sm:$0xff]
  %v2877 = vld [vmem:[%s2850 + $0xd0] sm:$0xff]
  %v2878 = vld [vmem:[%s2850 + $0xd8] sm:$0xff]
  %v2879 = vld [vmem:[%s2850 + $0xe0] sm:$0xff]
  %v2880 = vld [vmem:[%s2850 + $0xe8] sm:$0xff]
  %v2881 = vld [vmem:[%s2850 + $0xf0] sm:$0xff]
  %v2882 = vld [vmem:[%s2850 + $0xf8] sm:$0xff]
  %v2883 = vld [vmem:[%s2850 + $0x100] sm:$0xff]
  %v2884 = vld [vmem:[%s2850 + $0x108] sm:$0xff]
  %v2885 = vld [vmem:[%s2850 + $0x110] sm:$0xff]
  %v2886 = vld [vmem:[%s2850 + $0x118] sm:$0xff]
  %v2887 = vld [vmem:[%s2850 + $0x120] sm:$0xff]
  %v2888 = vld [vmem:[%s2850 + $0x128] sm:$0xff]
  %v2889 = vld [vmem:[%s2850 + $0x130] sm:$0xff]
  %v2890 = vld [vmem:[%s2850 + $0x138] sm:$0xff]
  %v2891 = vld [vmem:[%s2850 + $0x140] sm:$0xff]
  %v2892 = vld [vmem:[%s2850 + $0x148] sm:$0xff]
  %v2893 = vld [vmem:[%s2850 + $0x150] sm:$0xff]
  %v2894 = vld [vmem:[%s2850 + $0x158] sm:$0xff]
  %v2895 = vld [vmem:[%s2850 + $0x160] sm:$0xff]
  %v2896 = vld [vmem:[%s2850 + $0x168] sm:$0xff]
  %v2897 = vld [vmem:[%s2850 + $0x170] sm:$0xff]
  %v2898 = vld [vmem:[%s2850 + $0x178] sm:$0xff]
  %v2899 = vld [vmem:[%s2850 + $0x180] sm:$0xff]
  %v2900 = vld [vmem:[%s2850 + $0x188] sm:$0xff]
  %v2901 = vld [vmem:[%s2850 + $0x190] sm:$0xff]
  %v2902 = vld [vmem:[%s2850 + $0x198] sm:$0xff]
  %v2903 = vld [vmem:[%s2850 + $0x1a0] sm:$0xff]
  %v2904 = vld [vmem:[%s2850 + $0x1a8] sm:$0xff]
  %v2905 = vld [vmem:[%s2850 + $0x1b0] sm:$0xff]
  %v2906 = vld [vmem:[%s2850 + $0x1b8] sm:$0xff]
  %v2907 = vld [vmem:[%s2850 + $0x1c0] sm:$0xff]
  %v2908 = vld [vmem:[%s2850 + $0x1c8] sm:$0xff]
  %v2909 = vld [vmem:[%s2850 + $0x1d0] sm:$0xff]
  %v2910 = vld [vmem:[%s2850 + $0x1d8] sm:$0xff]
  %v2911 = vld [vmem:[%s2850 + $0x1e0] sm:$0xff]
  %v2912 = vld [vmem:[%s2850 + $0x1e8] sm:$0xff]
  %v2913 = vld [vmem:[%s2850 + $0x1f0] sm:$0xff]
  %v2914 = vld [vmem:[%s2850 + $0x1f8] sm:$0xff]
  %v2915 = vld [vmem:[%s2850 + $0x200] sm:$0xff]
  %v2916 = vld [vmem:[%s2850 + $0x208] sm:$0xff]
  %v2917 = vld [vmem:[%s2850 + $0x210] sm:$0xff]
  %v2918 = vld [vmem:[%s2850 + $0x218] sm:$0xff]
  %v2919 = vld [vmem:[%s2850 + $0x220] sm:$0xff]
  %v2920 = vld [vmem:[%s2850 + $0x228] sm:$0xff]
  %v2921 = vld [vmem:[%s2850 + $0x230] sm:$0xff]
  %v2922 = vld [vmem:[%s2850 + $0x238] sm:$0xff]
  %v2923 = vld [vmem:[%s2850 + $0x240] sm:$0xff]
  %v2924 = vld [vmem:[%s2850 + $0x248] sm:$0xff]
  %v2925 = vld [vmem:[%s2850 + $0x250] sm:$0xff]
  %v2926 = vld [vmem:[%s2850 + $0x258] sm:$0xff]
  %v2927 = vld [vmem:[%s2850 + $0x260] sm:$0xff]
  %v2928 = vld [vmem:[%s2850 + $0x268] sm:$0xff]
  %v2929 = vld [vmem:[%s2850 + $0x270] sm:$0xff]
  %v2930 = vld [vmem:[%s2850 + $0x278] sm:$0xff]
  %v2931 = vld [vmem:[%s2850 + $0x280] sm:$0xff]
  %v2932 = vld [vmem:[%s2850 + $0x288] sm:$0xff]
  %v2933 = vld [vmem:[%s2850 + $0x290] sm:$0xff]
  %v2934 = vld [vmem:[%s2850 + $0x298] sm:$0xff]
  %v2935 = vld [vmem:[%s2850 + $0x2a0] sm:$0xff]
  %v2936 = vld [vmem:[%s2850 + $0x2a8] sm:$0xff]
  %v2937 = vld [vmem:[%s2850 + $0x2b0] sm:$0xff]
  %v2938 = vld [vmem:[%s2850 + $0x2b8] sm:$0xff]
  %v2939 = vld [vmem:[%s2850 + $0x2c0] sm:$0xff]
  %v2940 = vld [vmem:[%s2850 + $0x2c8] sm:$0xff]
  %v2941 = vld [vmem:[%s2850 + $0x2d0] sm:$0xff]
  %v2942 = vld [vmem:[%s2850 + $0x2d8] sm:$0xff]
  %v2943 = vld [vmem:[%s2850 + $0x2e0] sm:$0xff]
  %v2944 = vld [vmem:[%s2850 + $0x2e8] sm:$0xff]
  %v2945 = vld [vmem:[%s2850 + $0x2f0] sm:$0xff]
  %v2946 = vld [vmem:[%s2850 + $0x2f8] sm:$0xff]
  %v3043 = vunpack.c.l.b16 %v2851
  %v3044 = vunpack.c.h.b16 %v2851
  %v3045 = vunpack.c.l.b16 %v2852
  %v3046 = vunpack.c.h.b16 %v2852
  %v3047 = vunpack.c.l.b16 %v2853
  %v3048 = vunpack.c.h.b16 %v2853
  %v3049 = vunpack.c.l.b16 %v2854
  %v3050 = vunpack.c.h.b16 %v2854
  %v3051 = vunpack.c.l.b16 %v2855
  %v3052 = vunpack.c.h.b16 %v2855
  %v3053 = vunpack.c.l.b16 %v2856
  %v3054 = vunpack.c.h.b16 %v2856
  %v3055 = vunpack.c.l.b16 %v2857
  %v3056 = vunpack.c.h.b16 %v2857
  %v3057 = vunpack.c.l.b16 %v2858
  %v3058 = vunpack.c.h.b16 %v2858
  %v3059 = vunpack.c.l.b16 %v2859
  %v3060 = vunpack.c.h.b16 %v2859
  %v3061 = vunpack.c.l.b16 %v2860
  %v3062 = vunpack.c.h.b16 %v2860
  %v3063 = vunpack.c.l.b16 %v2861
  %v3064 = vunpack.c.h.b16 %v2861
  %v3065 = vunpack.c.l.b16 %v2862
  %v3066 = vunpack.c.h.b16 %v2862
  %v3067 = vunpack.c.l.b16 %v2863
  %v3068 = vunpack.c.h.b16 %v2863
  %v3069 = vunpack.c.l.b16 %v2864
  %v3070 = vunpack.c.h.b16 %v2864
  %v3071 = vunpack.c.l.b16 %v2865
  %v3072 = vunpack.c.h.b16 %v2865
  %v3073 = vunpack.c.l.b16 %v2866
  %v3074 = vunpack.c.h.b16 %v2866
  %v3075 = vunpack.c.l.b16 %v2867
  %v3076 = vunpack.c.h.b16 %v2867
  %v3077 = vunpack.c.l.b16 %v2868
  %v3078 = vunpack.c.h.b16 %v2868
  %v3079 = vunpack.c.l.b16 %v2869
  %v3080 = vunpack.c.h.b16 %v2869
  %v3081 = vunpack.c.l.b16 %v2870
  %v3082 = vunpack.c.h.b16 %v2870
  %v3083 = vunpack.c.l.b16 %v2871
  %v3084 = vunpack.c.h.b16 %v2871
  %v3085 = vunpack.c.l.b16 %v2872
  %v3086 = vunpack.c.h.b16 %v2872
  %v3087 = vunpack.c.l.b16 %v2873
  %v3088 = vunpack.c.h.b16 %v2873
  %v3089 = vunpack.c.l.b16 %v2874
  %v3090 = vunpack.c.h.b16 %v2874
  %v3091 = vunpack.c.l.b16 %v2875
  %v3092 = vunpack.c.h.b16 %v2875
  %v3093 = vunpack.c.l.b16 %v2876
  %v3094 = vunpack.c.h.b16 %v2876
  %v3095 = vunpack.c.l.b16 %v2877
  %v3096 = vunpack.c.h.b16 %v2877
  %v3097 = vunpack.c.l.b16 %v2878
  %v3098 = vunpack.c.h.b16 %v2878
  %v3099 = vunpack.c.l.b16 %v2879
  %v3100 = vunpack.c.h.b16 %v2879
  %v3101 = vunpack.c.l.b16 %v2880
  %v3102 = vunpack.c.h.b16 %v2880
  %v3103 = vunpack.c.l.b16 %v2881
  %v3104 = vunpack.c.h.b16 %v2881
  %v3105 = vunpack.c.l.b16 %v2882
  %v3106 = vunpack.c.h.b16 %v2882
  %v3107 = vunpack.c.l.b16 %v2883
  %v3108 = vunpack.c.h.b16 %v2883
  %v3109 = vunpack.c.l.b16 %v2884
  %v3110 = vunpack.c.h.b16 %v2884
  %v3111 = vunpack.c.l.b16 %v2885
  %v3112 = vunpack.c.h.b16 %v2885
  %v3113 = vunpack.c.l.b16 %v2886
  %v3114 = vunpack.c.h.b16 %v2886
  %v3115 = vunpack.c.l.b16 %v2887
  %v3116 = vunpack.c.h.b16 %v2887
  %v3117 = vunpack.c.l.b16 %v2888
  %v3118 = vunpack.c.h.b16 %v2888
  %v3119 = vunpack.c.l.b16 %v2889
  %v3120 = vunpack.c.h.b16 %v2889
  %v3121 = vunpack.c.l.b16 %v2890
  %v3122 = vunpack.c.h.b16 %v2890
  %v3123 = vunpack.c.l.b16 %v2891
  %v3124 = vunpack.c.h.b16 %v2891
  %v3125 = vunpack.c.l.b16 %v2892
  %v3126 = vunpack.c.h.b16 %v2892
  %v3127 = vunpack.c.l.b16 %v2893
  %v3128 = vunpack.c.h.b16 %v2893
  %v3129 = vunpack.c.l.b16 %v2894
  %v3130 = vunpack.c.h.b16 %v2894
  %v3131 = vunpack.c.l.b16 %v2895
  %v3132 = vunpack.c.h.b16 %v2895
  %v3133 = vunpack.c.l.b16 %v2896
  %v3134 = vunpack.c.h.b16 %v2896
  %v3135 = vunpack.c.l.b16 %v2897
  %v3136 = vunpack.c.h.b16 %v2897
  %v3137 = vunpack.c.l.b16 %v2898
  %v3138 = vunpack.c.h.b16 %v2898
  %v3139 = vunpack.c.l.b16 %v2899
  %v3140 = vunpack.c.h.b16 %v2899
  %v3141 = vunpack.c.l.b16 %v2900
  %v3142 = vunpack.c.h.b16 %v2900
  %v3143 = vunpack.c.l.b16 %v2901
  %v3144 = vunpack.c.h.b16 %v2901
  %v3145 = vunpack.c.l.b16 %v2902
  %v3146 = vunpack.c.h.b16 %v2902
  %v3147 = vunpack.c.l.b16 %v2903
  %v3148 = vunpack.c.h.b16 %v2903
  %v3149 = vunpack.c.l.b16 %v2904
  %v3150 = vunpack.c.h.b16 %v2904
  %v3151 = vunpack.c.l.b16 %v2905
  %v3152 = vunpack.c.h.b16 %v2905
  %v3153 = vunpack.c.l.b16 %v2906
  %v3154 = vunpack.c.h.b16 %v2906
  %v3155 = vunpack.c.l.b16 %v2907
  %v3156 = vunpack.c.h.b16 %v2907
  %v3157 = vunpack.c.l.b16 %v2908
  %v3158 = vunpack.c.h.b16 %v2908
  %v3159 = vunpack.c.l.b16 %v2909
  %v3160 = vunpack.c.h.b16 %v2909
  %v3161 = vunpack.c.l.b16 %v2910
  %v3162 = vunpack.c.h.b16 %v2910
  %v3163 = vunpack.c.l.b16 %v2911
  %v3164 = vunpack.c.h.b16 %v2911
  %v3165 = vunpack.c.l.b16 %v2912
  %v3166 = vunpack.c.h.b16 %v2912
  %v3167 = vunpack.c.l.b16 %v2913
  %v3168 = vunpack.c.h.b16 %v2913
  %v3169 = vunpack.c.l.b16 %v2914
  %v3170 = vunpack.c.h.b16 %v2914
  %v3171 = vunpack.c.l.b16 %v2915
  %v3172 = vunpack.c.h.b16 %v2915
  %v3173 = vunpack.c.l.b16 %v2916
  %v3174 = vunpack.c.h.b16 %v2916
  %v3175 = vunpack.c.l.b16 %v2917
  %v3176 = vunpack.c.h.b16 %v2917
  %v3177 = vunpack.c.l.b16 %v2918
  %v3178 = vunpack.c.h.b16 %v2918
  %v3179 = vunpack.c.l.b16 %v2919
  %v3180 = vunpack.c.h.b16 %v2919
  %v3181 = vunpack.c.l.b16 %v2920
  %v3182 = vunpack.c.h.b16 %v2920
  %v3183 = vunpack.c.l.b16 %v2921
  %v3184 = vunpack.c.h.b16 %v2921
  %v3185 = vunpack.c.l.b16 %v2922
  %v3186 = vunpack.c.h.b16 %v2922
  %v3187 = vunpack.c.l.b16 %v2923
  %v3188 = vunpack.c.h.b16 %v2923
  %v3189 = vunpack.c.l.b16 %v2924
  %v3190 = vunpack.c.h.b16 %v2924
  %v3191 = vunpack.c.l.b16 %v2925
  %v3192 = vunpack.c.h.b16 %v2925
  %v3193 = vunpack.c.l.b16 %v2926
  %v3194 = vunpack.c.h.b16 %v2926
  %v3195 = vunpack.c.l.b16 %v2927
  %v3196 = vunpack.c.h.b16 %v2927
  %v3197 = vunpack.c.l.b16 %v2928
  %v3198 = vunpack.c.h.b16 %v2928
  %v3199 = vunpack.c.l.b16 %v2929
  %v3200 = vunpack.c.h.b16 %v2929
  %v3201 = vunpack.c.l.b16 %v2930
  %v3202 = vunpack.c.h.b16 %v2930
  %v3203 = vunpack.c.l.b16 %v2931
  %v3204 = vunpack.c.h.b16 %v2931
  %v3205 = vunpack.c.l.b16 %v2932
  %v3206 = vunpack.c.h.b16 %v2932
  %v3207 = vunpack.c.l.b16 %v2933
  %v3208 = vunpack.c.h.b16 %v2933
  %v3209 = vunpack.c.l.b16 %v2934
  %v3210 = vunpack.c.h.b16 %v2934
  %v3211 = vunpack.c.l.b16 %v2935
  %v3212 = vunpack.c.h.b16 %v2935
  %v3213 = vunpack.c.l.b16 %v2936
  %v3214 = vunpack.c.h.b16 %v2936
  %v3215 = vunpack.c.l.b16 %v2937
  %v3216 = vunpack.c.h.b16 %v2937
  %v3217 = vunpack.c.l.b16 %v2938
  %v3218 = vunpack.c.h.b16 %v2938
  %v3219 = vunpack.c.l.b16 %v2939
  %v3220 = vunpack.c.h.b16 %v2939
  %v3221 = vunpack.c.l.b16 %v2940
  %v3222 = vunpack.c.h.b16 %v2940
  %v3223 = vunpack.c.l.b16 %v2941
  %v3224 = vunpack.c.h.b16 %v2941
  %v3225 = vunpack.c.l.b16 %v2942
  %v3226 = vunpack.c.h.b16 %v2942
  %v3227 = vunpack.c.l.b16 %v2943
  %v3228 = vunpack.c.h.b16 %v2943
  %v3229 = vunpack.c.l.b16 %v2944
  %v3230 = vunpack.c.h.b16 %v2944
  %v3231 = vunpack.c.l.b16 %v2945
  %v3232 = vunpack.c.h.b16 %v2945
  %v3233 = vunpack.c.l.b16 %v2946
  %v3234 = vunpack.c.h.b16 %v2946
  %v3235 = vpack.c.b16 %v3045, %v3043
  %v3236 = vpack.c.b16 %v3046, %v3044
  %v3237 = vpack.c.b16 %v3049, %v3047
  %v3238 = vpack.c.b16 %v3050, %v3048
  %v3239 = vpack.c.b16 %v3053, %v3051
  %v3240 = vpack.c.b16 %v3054, %v3052
  %v3241 = vpack.c.b16 %v3057, %v3055
  %v3242 = vpack.c.b16 %v3058, %v3056
  %v3243 = vpack.c.b16 %v3061, %v3059
  %v3244 = vpack.c.b16 %v3062, %v3060
  %v3245 = vpack.c.b16 %v3065, %v3063
  %v3246 = vpack.c.b16 %v3066, %v3064
  %v3247 = vpack.c.b16 %v3069, %v3067
  %v3248 = vpack.c.b16 %v3070, %v3068
  %v3249 = vpack.c.b16 %v3073, %v3071
  %v3250 = vpack.c.b16 %v3074, %v3072
  %v3251 = vpack.c.b16 %v3077, %v3075
  %v3252 = vpack.c.b16 %v3078, %v3076
  %v3253 = vpack.c.b16 %v3081, %v3079
  %v3254 = vpack.c.b16 %v3082, %v3080
  %v3255 = vpack.c.b16 %v3085, %v3083
  %v3256 = vpack.c.b16 %v3086, %v3084
  %v3257 = vpack.c.b16 %v3089, %v3087
  %v3258 = vpack.c.b16 %v3090, %v3088
  %v3259 = vpack.c.b16 %v3093, %v3091
  %v3260 = vpack.c.b16 %v3094, %v3092
  %v3261 = vpack.c.b16 %v3097, %v3095
  %v3262 = vpack.c.b16 %v3098, %v3096
  %v3263 = vpack.c.b16 %v3101, %v3099
  %v3264 = vpack.c.b16 %v3102, %v3100
  %v3265 = vpack.c.b16 %v3105, %v3103
  %v3266 = vpack.c.b16 %v3106, %v3104
  %v3267 = vpack.c.b16 %v3109, %v3107
  %v3268 = vpack.c.b16 %v3110, %v3108
  %v3269 = vpack.c.b16 %v3113, %v3111
  %v3270 = vpack.c.b16 %v3114, %v3112
  %v3271 = vpack.c.b16 %v3117, %v3115
  %v3272 = vpack.c.b16 %v3118, %v3116
  %v3273 = vpack.c.b16 %v3121, %v3119
  %v3274 = vpack.c.b16 %v3122, %v3120
  %v3275 = vpack.c.b16 %v3125, %v3123
  %v3276 = vpack.c.b16 %v3126, %v3124
  %v3277 = vpack.c.b16 %v3129, %v3127
  %v3278 = vpack.c.b16 %v3130, %v3128
  %v3279 = vpack.c.b16 %v3133, %v3131
  %v3280 = vpack.c.b16 %v3134, %v3132
  %v3281 = vpack.c.b16 %v3137, %v3135
  %v3282 = vpack.c.b16 %v3138, %v3136
  %v3283 = vpack.c.b16 %v3141, %v3139
  %v3284 = vpack.c.b16 %v3142, %v3140
  %v3285 = vpack.c.b16 %v3145, %v3143
  %v3286 = vpack.c.b16 %v3146, %v3144
  %v3287 = vpack.c.b16 %v3149, %v3147
  %v3288 = vpack.c.b16 %v3150, %v3148
  %v3289 = vpack.c.b16 %v3153, %v3151
  %v3290 = vpack.c.b16 %v3154, %v3152
  %v3291 = vpack.c.b16 %v3157, %v3155
  %v3292 = vpack.c.b16 %v3158, %v3156
  %v3293 = vpack.c.b16 %v3161, %v3159
  %v3294 = vpack.c.b16 %v3162, %v3160
  %v3295 = vpack.c.b16 %v3165, %v3163
  %v3296 = vpack.c.b16 %v3166, %v3164
  %v3297 = vpack.c.b16 %v3169, %v3167
  %v3298 = vpack.c.b16 %v3170, %v3168
  %v3299 = vpack.c.b16 %v3173, %v3171
  %v3300 = vpack.c.b16 %v3174, %v3172
  %v3301 = vpack.c.b16 %v3177, %v3175
  %v3302 = vpack.c.b16 %v3178, %v3176
  %v3303 = vpack.c.b16 %v3181, %v3179
  %v3304 = vpack.c.b16 %v3182, %v3180
  %v3305 = vpack.c.b16 %v3185, %v3183
  %v3306 = vpack.c.b16 %v3186, %v3184
  %v3307 = vpack.c.b16 %v3189, %v3187
  %v3308 = vpack.c.b16 %v3190, %v3188
  %v3309 = vpack.c.b16 %v3193, %v3191
  %v3310 = vpack.c.b16 %v3194, %v3192
  %v3311 = vpack.c.b16 %v3197, %v3195
  %v3312 = vpack.c.b16 %v3198, %v3196
  %v3313 = vpack.c.b16 %v3201, %v3199
  %v3314 = vpack.c.b16 %v3202, %v3200
  %v3315 = vpack.c.b16 %v3205, %v3203
  %v3316 = vpack.c.b16 %v3206, %v3204
  %v3317 = vpack.c.b16 %v3209, %v3207
  %v3318 = vpack.c.b16 %v3210, %v3208
  %v3319 = vpack.c.b16 %v3213, %v3211
  %v3320 = vpack.c.b16 %v3214, %v3212
  %v3321 = vpack.c.b16 %v3217, %v3215
  %v3322 = vpack.c.b16 %v3218, %v3216
  %v3323 = vpack.c.b16 %v3221, %v3219
  %v3324 = vpack.c.b16 %v3222, %v3220
  %v3325 = vpack.c.b16 %v3225, %v3223
  %v3326 = vpack.c.b16 %v3226, %v3224
  %v3327 = vpack.c.b16 %v3229, %v3227
  %v3328 = vpack.c.b16 %v3230, %v3228
  %v3329 = vpack.c.b16 %v3233, %v3231
  %v3330 = vpack.c.b16 %v3234, %v3232
  %3427 = vmatprep.subr.bf16.mxu0 %v3236
  %3428 = vmatpush1.bf16.msra.mxu0 %v3235
  %3429 = vmatprep.subr.bf16.mxu0 %v3238
  %3430 = vmatpush1.bf16.msra.mxu0 %v3237
  %3431 = vmatprep.subr.bf16.mxu0 %v3240
  %3432 = vmatpush1.bf16.msra.mxu0 %v3239
  %3433 = vmatprep.subr.bf16.mxu0 %v3242
  %3434 = vmatpush1.bf16.msra.mxu0 %v3241
  %3435 = vmatprep.subr.bf16.mxu0 %v3244
  %3436 = vmatpush1.bf16.msra.mxu0 %v3243
  %3437 = vmatprep.subr.bf16.mxu0 %v3246
  %3438 = vmatpush1.bf16.msra.mxu0 %v3245
  %3439 = vmatprep.subr.bf16.mxu0 %v3248
  %3440 = vmatpush1.bf16.msra.mxu0 %v3247
  %3441 = vmatprep.subr.bf16.mxu0 %v3250
  %3442 = vmatpush1.bf16.msra.mxu0 %v3249
  %3443 = vmatprep.subr.bf16.mxu0 %v3252
  %3444 = vmatpush1.bf16.msra.mxu0 %v3251
  %3445 = vmatprep.subr.bf16.mxu0 %v3254
  %3446 = vmatpush1.bf16.msra.mxu0 %v3253
  %3447 = vmatprep.subr.bf16.mxu0 %v3256
  %3448 = vmatpush1.bf16.msra.mxu0 %v3255
  %3449 = vmatprep.subr.bf16.mxu0 %v3258
  %3450 = vmatpush1.bf16.msra.mxu0 %v3257
  %3451 = vmatprep.subr.bf16.mxu0 %v3260
  %3452 = vmatpush1.bf16.msra.mxu0 %v3259
  %3453 = vmatprep.subr.bf16.mxu0 %v3262
  %3454 = vmatpush1.bf16.msra.mxu0 %v3261
  %3455 = vmatprep.subr.bf16.mxu0 %v3264
  %3456 = vmatpush1.bf16.msra.mxu0 %v3263
  %3457 = vmatprep.subr.bf16.mxu0 %v3266
  %3458 = vmatpush1.bf16.msra.mxu0 %v3265
  %3459 = vmatprep.mubr.bf16.mxu0 %v130
  %3460 = vmatmul.mubr.bf16.gmra.mrb[0].mxu0 %v129
  %v3461 = vpop.f32.mrb[0].mxu0
  %v3462 = vadd.f32 0.0, %v3461
  %v3463 = vpop.f32.mrb[0].mxu0
  %v3464 = vadd.f32 0.0, %v3463
  %v3465 = vpop.f32.mrb[0].mxu0
  %v3466 = vpop.f32.mrb[0].mxu0
  %3467 = vdwg.mxu0
  %3468 = vmatprep.subr.bf16.mxu0 %v3268
  %3469 = vmatpush1.bf16.msra.mxu0 %v3267
  %3470 = vmatprep.subr.bf16.mxu0 %v3270
  %3471 = vmatpush1.bf16.msra.mxu0 %v3269
  %3472 = vmatprep.subr.bf16.mxu0 %v3272
  %3473 = vmatpush1.bf16.msra.mxu0 %v3271
  %3474 = vmatprep.subr.bf16.mxu0 %v3274
  %3475 = vmatpush1.bf16.msra.mxu0 %v3273
  %3476 = vmatprep.subr.bf16.mxu0 %v3276
  %3477 = vmatpush1.bf16.msra.mxu0 %v3275
  %3478 = vmatprep.subr.bf16.mxu0 %v3278
  %3479 = vmatpush1.bf16.msra.mxu0 %v3277
  %3480 = vmatprep.subr.bf16.mxu0 %v3280
  %3481 = vmatpush1.bf16.msra.mxu0 %v3279
  %3482 = vmatprep.subr.bf16.mxu0 %v3282
  %3483 = vmatpush1.bf16.msra.mxu0 %v3281
  %3484 = vmatprep.subr.bf16.mxu0 %v3284
  %3485 = vmatpush1.bf16.msra.mxu0 %v3283
  %3486 = vmatprep.subr.bf16.mxu0 %v3286
  %3487 = vmatpush1.bf16.msra.mxu0 %v3285
  %3488 = vmatprep.subr.bf16.mxu0 %v3288
  %3489 = vmatpush1.bf16.msra.mxu0 %v3287
  %3490 = vmatprep.subr.bf16.mxu0 %v3290
  %3491 = vmatpush1.bf16.msra.mxu0 %v3289
  %3492 = vmatprep.subr.bf16.mxu0 %v3292
  %3493 = vmatpush1.bf16.msra.mxu0 %v3291
  %3494 = vmatprep.subr.bf16.mxu0 %v3294
  %3495 = vmatpush1.bf16.msra.mxu0 %v3293
  %3496 = vmatprep.subr.bf16.mxu0 %v3296
  %3497 = vmatpush1.bf16.msra.mxu0 %v3295
  %3498 = vmatprep.subr.bf16.mxu0 %v3298
  %3499 = vmatpush1.bf16.msra.mxu0 %v3297
  %3500 = vmatprep.mubr.bf16.mxu0 %v132
  %3501 = vmatmul.mubr.bf16.gmra.mrb[0].mxu0 %v131
  %v3502 = vpop.f32.mrb[0].mxu0
  %v3503 = vadd.f32 %v3462, %v3502
  %v3504 = vpop.f32.mrb[0].mxu0
  %v3505 = vadd.f32 %v3464, %v3504
  %v3506 = vpop.f32.mrb[0].mxu0
  %v3507 = vpop.f32.mrb[0].mxu0
  %3508 = vdwg.mxu0
  %3509 = vmatprep.subr.bf16.mxu0 %v3300
  %3510 = vmatpush1.bf16.msra.mxu0 %v3299
  %3511 = vmatprep.subr.bf16.mxu0 %v3302
  %3512 = vmatpush1.bf16.msra.mxu0 %v3301
  %3513 = vmatprep.subr.bf16.mxu0 %v3304
  %3514 = vmatpush1.bf16.msra.mxu0 %v3303
  %3515 = vmatprep.subr.bf16.mxu0 %v3306
  %3516 = vmatpush1.bf16.msra.mxu0 %v3305
  %3517 = vmatprep.subr.bf16.mxu0 %v3308
  %3518 = vmatpush1.bf16.msra.mxu0 %v3307
  %3519 = vmatprep.subr.bf16.mxu0 %v3310
  %3520 = vmatpush1.bf16.msra.mxu0 %v3309
  %3521 = vmatprep.subr.bf16.mxu0 %v3312
  %3522 = vmatpush1.bf16.msra.mxu0 %v3311
  %3523 = vmatprep.subr.bf16.mxu0 %v3314
  %3524 = vmatpush1.bf16.msra.mxu0 %v3313
  %3525 = vmatprep.subr.bf16.mxu0 %v3316
  %3526 = vmatpush1.bf16.msra.mxu0 %v3315
  %3527 = vmatprep.subr.bf16.mxu0 %v3318
  %3528 = vmatpush1.bf16.msra.mxu0 %v3317
  %3529 = vmatprep.subr.bf16.mxu0 %v3320
  %3530 = vmatpush1.bf16.msra.mxu0 %v3319
  %3531 = vmatprep.subr.bf16.mxu0 %v3322
  %3532 = vmatpush1.bf16.msra.mxu0 %v3321
  %3533 = vmatprep.subr.bf16.mxu0 %v3324
  %3534 = vmatpush1.bf16.msra.mxu0 %v3323
  %3535 = vmatprep.subr.bf16.mxu0 %v3326
  %3536 = vmatpush1.bf16.msra.mxu0 %v3325
  %3537 = vmatprep.subr.bf16.mxu0 %v3328
  %3538 = vmatpush1.bf16.msra.mxu0 %v3327
  %3539 = vmatprep.subr.bf16.mxu0 %v3330
  %3540 = vmatpush1.bf16.msra.mxu0 %v3329
  %3541 = vmatprep.mubr.bf16.mxu0 %v134
  %3542 = vmatmul.mubr.bf16.gmra.mrb[0].mxu0 %v133
  %v3543 = vpop.f32.mrb[0].mxu0
  %v3544 = vadd.f32 %v3503, %v3543
  %v3545 = vpop.f32.mrb[0].mxu0
  %v3546 = vadd.f32 %v3505, %v3545
  %v3547 = vpop.f32.mrb[0].mxu0
  %v3548 = vpop.f32.mrb[0].mxu0
  %3549 = vdwg.mxu0
  %v3550 = vmax.f32 %v2848, %v3544
  %v3551 = vmax.f32 %v2849, %v3546
  %s3552 = scalar_lea.vmem %s1, 3840
  %v3553 = vld [vmem:[%s3552] sm:$0xff]
  %v3554 = vld [vmem:[%s3552 + $0x8] sm:$0xff]
  %v3555 = vld [vmem:[%s3552 + $0x10] sm:$0xff]
  %v3556 = vld [vmem:[%s3552 + $0x18] sm:$0xff]
  %v3557 = vld [vmem:[%s3552 + $0x20] sm:$0xff]
  %v3558 = vld [vmem:[%s3552 + $0x28] sm:$0xff]
  %v3559 = vld [vmem:[%s3552 + $0x30] sm:$0xff]
  %v3560 = vld [vmem:[%s3552 + $0x38] sm:$0xff]
  %v3561 = vld [vmem:[%s3552 + $0x40] sm:$0xff]
  %v3562 = vld [vmem:[%s3552 + $0x48] sm:$0xff]
  %v3563 = vld [vmem:[%s3552 + $0x50] sm:$0xff]
  %v3564 = vld [vmem:[%s3552 + $0x58] sm:$0xff]
  %v3565 = vld [vmem:[%s3552 + $0x60] sm:$0xff]
  %v3566 = vld [vmem:[%s3552 + $0x68] sm:$0xff]
  %v3567 = vld [vmem:[%s3552 + $0x70] sm:$0xff]
  %v3568 = vld [vmem:[%s3552 + $0x78] sm:$0xff]
  %v3569 = vld [vmem:[%s3552 + $0x80] sm:$0xff]
  %v3570 = vld [vmem:[%s3552 + $0x88] sm:$0xff]
  %v3571 = vld [vmem:[%s3552 + $0x90] sm:$0xff]
  %v3572 = vld [vmem:[%s3552 + $0x98] sm:$0xff]
  %v3573 = vld [vmem:[%s3552 + $0xa0] sm:$0xff]
  %v3574 = vld [vmem:[%s3552 + $0xa8] sm:$0xff]
  %v3575 = vld [vmem:[%s3552 + $0xb0] sm:$0xff]
  %v3576 = vld [vmem:[%s3552 + $0xb8] sm:$0xff]
  %v3577 = vld [vmem:[%s3552 + $0xc0] sm:$0xff]
  %v3578 = vld [vmem:[%s3552 + $0xc8] sm:$0xff]
  %v3579 = vld [vmem:[%s3552 + $0xd0] sm:$0xff]
  %v3580 = vld [vmem:[%s3552 + $0xd8] sm:$0xff]
  %v3581 = vld [vmem:[%s3552 + $0xe0] sm:$0xff]
  %v3582 = vld [vmem:[%s3552 + $0xe8] sm:$0xff]
  %v3583 = vld [vmem:[%s3552 + $0xf0] sm:$0xff]
  %v3584 = vld [vmem:[%s3552 + $0xf8] sm:$0xff]
  %v3585 = vld [vmem:[%s3552 + $0x100] sm:$0xff]
  %v3586 = vld [vmem:[%s3552 + $0x108] sm:$0xff]
  %v3587 = vld [vmem:[%s3552 + $0x110] sm:$0xff]
  %v3588 = vld [vmem:[%s3552 + $0x118] sm:$0xff]
  %v3589 = vld [vmem:[%s3552 + $0x120] sm:$0xff]
  %v3590 = vld [vmem:[%s3552 + $0x128] sm:$0xff]
  %v3591 = vld [vmem:[%s3552 + $0x130] sm:$0xff]
  %v3592 = vld [vmem:[%s3552 + $0x138] sm:$0xff]
  %v3593 = vld [vmem:[%s3552 + $0x140] sm:$0xff]
  %v3594 = vld [vmem:[%s3552 + $0x148] sm:$0xff]
  %v3595 = vld [vmem:[%s3552 + $0x150] sm:$0xff]
  %v3596 = vld [vmem:[%s3552 + $0x158] sm:$0xff]
  %v3597 = vld [vmem:[%s3552 + $0x160] sm:$0xff]
  %v3598 = vld [vmem:[%s3552 + $0x168] sm:$0xff]
  %v3599 = vld [vmem:[%s3552 + $0x170] sm:$0xff]
  %v3600 = vld [vmem:[%s3552 + $0x178] sm:$0xff]
  %v3601 = vld [vmem:[%s3552 + $0x180] sm:$0xff]
  %v3602 = vld [vmem:[%s3552 + $0x188] sm:$0xff]
  %v3603 = vld [vmem:[%s3552 + $0x190] sm:$0xff]
  %v3604 = vld [vmem:[%s3552 + $0x198] sm:$0xff]
  %v3605 = vld [vmem:[%s3552 + $0x1a0] sm:$0xff]
  %v3606 = vld [vmem:[%s3552 + $0x1a8] sm:$0xff]
  %v3607 = vld [vmem:[%s3552 + $0x1b0] sm:$0xff]
  %v3608 = vld [vmem:[%s3552 + $0x1b8] sm:$0xff]
  %v3609 = vld [vmem:[%s3552 + $0x1c0] sm:$0xff]
  %v3610 = vld [vmem:[%s3552 + $0x1c8] sm:$0xff]
  %v3611 = vld [vmem:[%s3552 + $0x1d0] sm:$0xff]
  %v3612 = vld [vmem:[%s3552 + $0x1d8] sm:$0xff]
  %v3613 = vld [vmem:[%s3552 + $0x1e0] sm:$0xff]
  %v3614 = vld [vmem:[%s3552 + $0x1e8] sm:$0xff]
  %v3615 = vld [vmem:[%s3552 + $0x1f0] sm:$0xff]
  %v3616 = vld [vmem:[%s3552 + $0x1f8] sm:$0xff]
  %v3617 = vld [vmem:[%s3552 + $0x200] sm:$0xff]
  %v3618 = vld [vmem:[%s3552 + $0x208] sm:$0xff]
  %v3619 = vld [vmem:[%s3552 + $0x210] sm:$0xff]
  %v3620 = vld [vmem:[%s3552 + $0x218] sm:$0xff]
  %v3621 = vld [vmem:[%s3552 + $0x220] sm:$0xff]
  %v3622 = vld [vmem:[%s3552 + $0x228] sm:$0xff]
  %v3623 = vld [vmem:[%s3552 + $0x230] sm:$0xff]
  %v3624 = vld [vmem:[%s3552 + $0x238] sm:$0xff]
  %v3625 = vld [vmem:[%s3552 + $0x240] sm:$0xff]
  %v3626 = vld [vmem:[%s3552 + $0x248] sm:$0xff]
  %v3627 = vld [vmem:[%s3552 + $0x250] sm:$0xff]
  %v3628 = vld [vmem:[%s3552 + $0x258] sm:$0xff]
  %v3629 = vld [vmem:[%s3552 + $0x260] sm:$0xff]
  %v3630 = vld [vmem:[%s3552 + $0x268] sm:$0xff]
  %v3631 = vld [vmem:[%s3552 + $0x270] sm:$0xff]
  %v3632 = vld [vmem:[%s3552 + $0x278] sm:$0xff]
  %v3633 = vld [vmem:[%s3552 + $0x280] sm:$0xff]
  %v3634 = vld [vmem:[%s3552 + $0x288] sm:$0xff]
  %v3635 = vld [vmem:[%s3552 + $0x290] sm:$0xff]
  %v3636 = vld [vmem:[%s3552 + $0x298] sm:$0xff]
  %v3637 = vld [vmem:[%s3552 + $0x2a0] sm:$0xff]
  %v3638 = vld [vmem:[%s3552 + $0x2a8] sm:$0xff]
  %v3639 = vld [vmem:[%s3552 + $0x2b0] sm:$0xff]
  %v3640 = vld [vmem:[%s3552 + $0x2b8] sm:$0xff]
  %v3641 = vld [vmem:[%s3552 + $0x2c0] sm:$0xff]
  %v3642 = vld [vmem:[%s3552 + $0x2c8] sm:$0xff]
  %v3643 = vld [vmem:[%s3552 + $0x2d0] sm:$0xff]
  %v3644 = vld [vmem:[%s3552 + $0x2d8] sm:$0xff]
  %v3645 = vld [vmem:[%s3552 + $0x2e0] sm:$0xff]
  %v3646 = vld [vmem:[%s3552 + $0x2e8] sm:$0xff]
  %v3647 = vld [vmem:[%s3552 + $0x2f0] sm:$0xff]
  %v3648 = vld [vmem:[%s3552 + $0x2f8] sm:$0xff]
  %v3745 = vunpack.c.l.b16 %v3553
  %v3746 = vunpack.c.h.b16 %v3553
  %v3747 = vunpack.c.l.b16 %v3554
  %v3748 = vunpack.c.h.b16 %v3554
  %v3749 = vunpack.c.l.b16 %v3555
  %v3750 = vunpack.c.h.b16 %v3555
  %v3751 = vunpack.c.l.b16 %v3556
  %v3752 = vunpack.c.h.b16 %v3556
  %v3753 = vunpack.c.l.b16 %v3557
  %v3754 = vunpack.c.h.b16 %v3557
  %v3755 = vunpack.c.l.b16 %v3558
  %v3756 = vunpack.c.h.b16 %v3558
  %v3757 = vunpack.c.l.b16 %v3559
  %v3758 = vunpack.c.h.b16 %v3559
  %v3759 = vunpack.c.l.b16 %v3560
  %v3760 = vunpack.c.h.b16 %v3560
  %v3761 = vunpack.c.l.b16 %v3561
  %v3762 = vunpack.c.h.b16 %v3561
  %v3763 = vunpack.c.l.b16 %v3562
  %v3764 = vunpack.c.h.b16 %v3562
  %v3765 = vunpack.c.l.b16 %v3563
  %v3766 = vunpack.c.h.b16 %v3563
  %v3767 = vunpack.c.l.b16 %v3564
  %v3768 = vunpack.c.h.b16 %v3564
  %v3769 = vunpack.c.l.b16 %v3565
  %v3770 = vunpack.c.h.b16 %v3565
  %v3771 = vunpack.c.l.b16 %v3566
  %v3772 = vunpack.c.h.b16 %v3566
  %v3773 = vunpack.c.l.b16 %v3567
  %v3774 = vunpack.c.h.b16 %v3567
  %v3775 = vunpack.c.l.b16 %v3568
  %v3776 = vunpack.c.h.b16 %v3568
  %v3777 = vunpack.c.l.b16 %v3569
  %v3778 = vunpack.c.h.b16 %v3569
  %v3779 = vunpack.c.l.b16 %v3570
  %v3780 = vunpack.c.h.b16 %v3570
  %v3781 = vunpack.c.l.b16 %v3571
  %v3782 = vunpack.c.h.b16 %v3571
  %v3783 = vunpack.c.l.b16 %v3572
  %v3784 = vunpack.c.h.b16 %v3572
  %v3785 = vunpack.c.l.b16 %v3573
  %v3786 = vunpack.c.h.b16 %v3573
  %v3787 = vunpack.c.l.b16 %v3574
  %v3788 = vunpack.c.h.b16 %v3574
  %v3789 = vunpack.c.l.b16 %v3575
  %v3790 = vunpack.c.h.b16 %v3575
  %v3791 = vunpack.c.l.b16 %v3576
  %v3792 = vunpack.c.h.b16 %v3576
  %v3793 = vunpack.c.l.b16 %v3577
  %v3794 = vunpack.c.h.b16 %v3577
  %v3795 = vunpack.c.l.b16 %v3578
  %v3796 = vunpack.c.h.b16 %v3578
  %v3797 = vunpack.c.l.b16 %v3579
  %v3798 = vunpack.c.h.b16 %v3579
  %v3799 = vunpack.c.l.b16 %v3580
  %v3800 = vunpack.c.h.b16 %v3580
  %v3801 = vunpack.c.l.b16 %v3581
  %v3802 = vunpack.c.h.b16 %v3581
  %v3803 = vunpack.c.l.b16 %v3582
  %v3804 = vunpack.c.h.b16 %v3582
  %v3805 = vunpack.c.l.b16 %v3583
  %v3806 = vunpack.c.h.b16 %v3583
  %v3807 = vunpack.c.l.b16 %v3584
  %v3808 = vunpack.c.h.b16 %v3584
  %v3809 = vunpack.c.l.b16 %v3585
  %v3810 = vunpack.c.h.b16 %v3585
  %v3811 = vunpack.c.l.b16 %v3586
  %v3812 = vunpack.c.h.b16 %v3586
  %v3813 = vunpack.c.l.b16 %v3587
  %v3814 = vunpack.c.h.b16 %v3587
  %v3815 = vunpack.c.l.b16 %v3588
  %v3816 = vunpack.c.h.b16 %v3588
  %v3817 = vunpack.c.l.b16 %v3589
  %v3818 = vunpack.c.h.b16 %v3589
  %v3819 = vunpack.c.l.b16 %v3590
  %v3820 = vunpack.c.h.b16 %v3590
  %v3821 = vunpack.c.l.b16 %v3591
  %v3822 = vunpack.c.h.b16 %v3591
  %v3823 = vunpack.c.l.b16 %v3592
  %v3824 = vunpack.c.h.b16 %v3592
  %v3825 = vunpack.c.l.b16 %v3593
  %v3826 = vunpack.c.h.b16 %v3593
  %v3827 = vunpack.c.l.b16 %v3594
  %v3828 = vunpack.c.h.b16 %v3594
  %v3829 = vunpack.c.l.b16 %v3595
  %v3830 = vunpack.c.h.b16 %v3595
  %v3831 = vunpack.c.l.b16 %v3596
  %v3832 = vunpack.c.h.b16 %v3596
  %v3833 = vunpack.c.l.b16 %v3597
  %v3834 = vunpack.c.h.b16 %v3597
  %v3835 = vunpack.c.l.b16 %v3598
  %v3836 = vunpack.c.h.b16 %v3598
  %v3837 = vunpack.c.l.b16 %v3599
  %v3838 = vunpack.c.h.b16 %v3599
  %v3839 = vunpack.c.l.b16 %v3600
  %v3840 = vunpack.c.h.b16 %v3600
  %v3841 = vunpack.c.l.b16 %v3601
  %v3842 = vunpack.c.h.b16 %v3601
  %v3843 = vunpack.c.l.b16 %v3602
  %v3844 = vunpack.c.h.b16 %v3602
  %v3845 = vunpack.c.l.b16 %v3603
  %v3846 = vunpack.c.h.b16 %v3603
  %v3847 = vunpack.c.l.b16 %v3604
  %v3848 = vunpack.c.h.b16 %v3604
  %v3849 = vunpack.c.l.b16 %v3605
  %v3850 = vunpack.c.h.b16 %v3605
  %v3851 = vunpack.c.l.b16 %v3606
  %v3852 = vunpack.c.h.b16 %v3606
  %v3853 = vunpack.c.l.b16 %v3607
  %v3854 = vunpack.c.h.b16 %v3607
  %v3855 = vunpack.c.l.b16 %v3608
  %v3856 = vunpack.c.h.b16 %v3608
  %v3857 = vunpack.c.l.b16 %v3609
  %v3858 = vunpack.c.h.b16 %v3609
  %v3859 = vunpack.c.l.b16 %v3610
  %v3860 = vunpack.c.h.b16 %v3610
  %v3861 = vunpack.c.l.b16 %v3611
  %v3862 = vunpack.c.h.b16 %v3611
  %v3863 = vunpack.c.l.b16 %v3612
  %v3864 = vunpack.c.h.b16 %v3612
  %v3865 = vunpack.c.l.b16 %v3613
  %v3866 = vunpack.c.h.b16 %v3613
  %v3867 = vunpack.c.l.b16 %v3614
  %v3868 = vunpack.c.h.b16 %v3614
  %v3869 = vunpack.c.l.b16 %v3615
  %v3870 = vunpack.c.h.b16 %v3615
  %v3871 = vunpack.c.l.b16 %v3616
  %v3872 = vunpack.c.h.b16 %v3616
  %v3873 = vunpack.c.l.b16 %v3617
  %v3874 = vunpack.c.h.b16 %v3617
  %v3875 = vunpack.c.l.b16 %v3618
  %v3876 = vunpack.c.h.b16 %v3618
  %v3877 = vunpack.c.l.b16 %v3619
  %v3878 = vunpack.c.h.b16 %v3619
  %v3879 = vunpack.c.l.b16 %v3620
  %v3880 = vunpack.c.h.b16 %v3620
  %v3881 = vunpack.c.l.b16 %v3621
  %v3882 = vunpack.c.h.b16 %v3621
  %v3883 = vunpack.c.l.b16 %v3622
  %v3884 = vunpack.c.h.b16 %v3622
  %v3885 = vunpack.c.l.b16 %v3623
  %v3886 = vunpack.c.h.b16 %v3623
  %v3887 = vunpack.c.l.b16 %v3624
  %v3888 = vunpack.c.h.b16 %v3624
  %v3889 = vunpack.c.l.b16 %v3625
  %v3890 = vunpack.c.h.b16 %v3625
  %v3891 = vunpack.c.l.b16 %v3626
  %v3892 = vunpack.c.h.b16 %v3626
  %v3893 = vunpack.c.l.b16 %v3627
  %v3894 = vunpack.c.h.b16 %v3627
  %v3895 = vunpack.c.l.b16 %v3628
  %v3896 = vunpack.c.h.b16 %v3628
  %v3897 = vunpack.c.l.b16 %v3629
  %v3898 = vunpack.c.h.b16 %v3629
  %v3899 = vunpack.c.l.b16 %v3630
  %v3900 = vunpack.c.h.b16 %v3630
  %v3901 = vunpack.c.l.b16 %v3631
  %v3902 = vunpack.c.h.b16 %v3631
  %v3903 = vunpack.c.l.b16 %v3632
  %v3904 = vunpack.c.h.b16 %v3632
  %v3905 = vunpack.c.l.b16 %v3633
  %v3906 = vunpack.c.h.b16 %v3633
  %v3907 = vunpack.c.l.b16 %v3634
  %v3908 = vunpack.c.h.b16 %v3634
  %v3909 = vunpack.c.l.b16 %v3635
  %v3910 = vunpack.c.h.b16 %v3635
  %v3911 = vunpack.c.l.b16 %v3636
  %v3912 = vunpack.c.h.b16 %v3636
  %v3913 = vunpack.c.l.b16 %v3637
  %v3914 = vunpack.c.h.b16 %v3637
  %v3915 = vunpack.c.l.b16 %v3638
  %v3916 = vunpack.c.h.b16 %v3638
  %v3917 = vunpack.c.l.b16 %v3639
  %v3918 = vunpack.c.h.b16 %v3639
  %v3919 = vunpack.c.l.b16 %v3640
  %v3920 = vunpack.c.h.b16 %v3640
  %v3921 = vunpack.c.l.b16 %v3641
  %v3922 = vunpack.c.h.b16 %v3641
  %v3923 = vunpack.c.l.b16 %v3642
  %v3924 = vunpack.c.h.b16 %v3642
  %v3925 = vunpack.c.l.b16 %v3643
  %v3926 = vunpack.c.h.b16 %v3643
  %v3927 = vunpack.c.l.b16 %v3644
  %v3928 = vunpack.c.h.b16 %v3644
  %v3929 = vunpack.c.l.b16 %v3645
  %v3930 = vunpack.c.h.b16 %v3645
  %v3931 = vunpack.c.l.b16 %v3646
  %v3932 = vunpack.c.h.b16 %v3646
  %v3933 = vunpack.c.l.b16 %v3647
  %v3934 = vunpack.c.h.b16 %v3647
  %v3935 = vunpack.c.l.b16 %v3648
  %v3936 = vunpack.c.h.b16 %v3648
  %v3937 = vpack.c.b16 %v3747, %v3745
  %v3938 = vpack.c.b16 %v3748, %v3746
  %v3939 = vpack.c.b16 %v3751, %v3749
  %v3940 = vpack.c.b16 %v3752, %v3750
  %v3941 = vpack.c.b16 %v3755, %v3753
  %v3942 = vpack.c.b16 %v3756, %v3754
  %v3943 = vpack.c.b16 %v3759, %v3757
  %v3944 = vpack.c.b16 %v3760, %v3758
  %v3945 = vpack.c.b16 %v3763, %v3761
  %v3946 = vpack.c.b16 %v3764, %v3762
  %v3947 = vpack.c.b16 %v3767, %v3765
  %v3948 = vpack.c.b16 %v3768, %v3766
  %v3949 = vpack.c.b16 %v3771, %v3769
  %v3950 = vpack.c.b16 %v3772, %v3770
  %v3951 = vpack.c.b16 %v3775, %v3773
  %v3952 = vpack.c.b16 %v3776, %v3774
  %v3953 = vpack.c.b16 %v3779, %v3777
  %v3954 = vpack.c.b16 %v3780, %v3778
  %v3955 = vpack.c.b16 %v3783, %v3781
  %v3956 = vpack.c.b16 %v3784, %v3782
  %v3957 = vpack.c.b16 %v3787, %v3785
  %v3958 = vpack.c.b16 %v3788, %v3786
  %v3959 = vpack.c.b16 %v3791, %v3789
  %v3960 = vpack.c.b16 %v3792, %v3790
  %v3961 = vpack.c.b16 %v3795, %v3793
  %v3962 = vpack.c.b16 %v3796, %v3794
  %v3963 = vpack.c.b16 %v3799, %v3797
  %v3964 = vpack.c.b16 %v3800, %v3798
  %v3965 = vpack.c.b16 %v3803, %v3801
  %v3966 = vpack.c.b16 %v3804, %v3802
  %v3967 = vpack.c.b16 %v3807, %v3805
  %v3968 = vpack.c.b16 %v3808, %v3806
  %v3969 = vpack.c.b16 %v3811, %v3809
  %v3970 = vpack.c.b16 %v3812, %v3810
  %v3971 = vpack.c.b16 %v3815, %v3813
  %v3972 = vpack.c.b16 %v3816, %v3814
  %v3973 = vpack.c.b16 %v3819, %v3817
  %v3974 = vpack.c.b16 %v3820, %v3818
  %v3975 = vpack.c.b16 %v3823, %v3821
  %v3976 = vpack.c.b16 %v3824, %v3822
  %v3977 = vpack.c.b16 %v3827, %v3825
  %v3978 = vpack.c.b16 %v3828, %v3826
  %v3979 = vpack.c.b16 %v3831, %v3829
  %v3980 = vpack.c.b16 %v3832, %v3830
  %v3981 = vpack.c.b16 %v3835, %v3833
  %v3982 = vpack.c.b16 %v3836, %v3834
  %v3983 = vpack.c.b16 %v3839, %v3837
  %v3984 = vpack.c.b16 %v3840, %v3838
  %v3985 = vpack.c.b16 %v3843, %v3841
  %v3986 = vpack.c.b16 %v3844, %v3842
  %v3987 = vpack.c.b16 %v3847, %v3845
  %v3988 = vpack.c.b16 %v3848, %v3846
  %v3989 = vpack.c.b16 %v3851, %v3849
  %v3990 = vpack.c.b16 %v3852, %v3850
  %v3991 = vpack.c.b16 %v3855, %v3853
  %v3992 = vpack.c.b16 %v3856, %v3854
  %v3993 = vpack.c.b16 %v3859, %v3857
  %v3994 = vpack.c.b16 %v3860, %v3858
  %v3995 = vpack.c.b16 %v3863, %v3861
  %v3996 = vpack.c.b16 %v3864, %v3862
  %v3997 = vpack.c.b16 %v3867, %v3865
  %v3998 = vpack.c.b16 %v3868, %v3866
  %v3999 = vpack.c.b16 %v3871, %v3869
  %v4000 = vpack.c.b16 %v3872, %v3870
  %v4001 = vpack.c.b16 %v3875, %v3873
  %v4002 = vpack.c.b16 %v3876, %v3874
  %v4003 = vpack.c.b16 %v3879, %v3877
  %v4004 = vpack.c.b16 %v3880, %v3878
  %v4005 = vpack.c.b16 %v3883, %v3881
  %v4006 = vpack.c.b16 %v3884, %v3882
  %v4007 = vpack.c.b16 %v3887, %v3885
  %v4008 = vpack.c.b16 %v3888, %v3886
  %v4009 = vpack.c.b16 %v3891, %v3889
  %v4010 = vpack.c.b16 %v3892, %v3890
  %v4011 = vpack.c.b16 %v3895, %v3893
  %v4012 = vpack.c.b16 %v3896, %v3894
  %v4013 = vpack.c.b16 %v3899, %v3897
  %v4014 = vpack.c.b16 %v3900, %v3898
  %v4015 = vpack.c.b16 %v3903, %v3901
  %v4016 = vpack.c.b16 %v3904, %v3902
  %v4017 = vpack.c.b16 %v3907, %v3905
  %v4018 = vpack.c.b16 %v3908, %v3906
  %v4019 = vpack.c.b16 %v3911, %v3909
  %v4020 = vpack.c.b16 %v3912, %v3910
  %v4021 = vpack.c.b16 %v3915, %v3913
  %v4022 = vpack.c.b16 %v3916, %v3914
  %v4023 = vpack.c.b16 %v3919, %v3917
  %v4024 = vpack.c.b16 %v3920, %v3918
  %v4025 = vpack.c.b16 %v3923, %v3921
  %v4026 = vpack.c.b16 %v3924, %v3922
  %v4027 = vpack.c.b16 %v3927, %v3925
  %v4028 = vpack.c.b16 %v3928, %v3926
  %v4029 = vpack.c.b16 %v3931, %v3929
  %v4030 = vpack.c.b16 %v3932, %v3930
  %v4031 = vpack.c.b16 %v3935, %v3933
  %v4032 = vpack.c.b16 %v3936, %v3934
  %4129 = vmatprep.subr.bf16.mxu0 %v3938
  %4130 = vmatpush1.bf16.msra.mxu0 %v3937
  %4131 = vmatprep.subr.bf16.mxu0 %v3940
  %4132 = vmatpush1.bf16.msra.mxu0 %v3939
  %4133 = vmatprep.subr.bf16.mxu0 %v3942
  %4134 = vmatpush1.bf16.msra.mxu0 %v3941
  %4135 = vmatprep.subr.bf16.mxu0 %v3944
  %4136 = vmatpush1.bf16.msra.mxu0 %v3943
  %4137 = vmatprep.subr.bf16.mxu0 %v3946
  %4138 = vmatpush1.bf16.msra.mxu0 %v3945
  %4139 = vmatprep.subr.bf16.mxu0 %v3948
  %4140 = vmatpush1.bf16.msra.mxu0 %v3947
  %4141 = vmatprep.subr.bf16.mxu0 %v3950
  %4142 = vmatpush1.bf16.msra.mxu0 %v3949
  %4143 = vmatprep.subr.bf16.mxu0 %v3952
  %4144 = vmatpush1.bf16.msra.mxu0 %v3951
  %4145 = vmatprep.subr.bf16.mxu0 %v3954
  %4146 = vmatpush1.bf16.msra.mxu0 %v3953
  %4147 = vmatprep.subr.bf16.mxu0 %v3956
  %4148 = vmatpush1.bf16.msra.mxu0 %v3955
  %4149 = vmatprep.subr.bf16.mxu0 %v3958
  %4150 = vmatpush1.bf16.msra.mxu0 %v3957
  %4151 = vmatprep.subr.bf16.mxu0 %v3960
  %4152 = vmatpush1.bf16.msra.mxu0 %v3959
  %4153 = vmatprep.subr.bf16.mxu0 %v3962
  %4154 = vmatpush1.bf16.msra.mxu0 %v3961
  %4155 = vmatprep.subr.bf16.mxu0 %v3964
  %4156 = vmatpush1.bf16.msra.mxu0 %v3963
  %4157 = vmatprep.subr.bf16.mxu0 %v3966
  %4158 = vmatpush1.bf16.msra.mxu0 %v3965
  %4159 = vmatprep.subr.bf16.mxu0 %v3968
  %4160 = vmatpush1.bf16.msra.mxu0 %v3967
  %4161 = vmatprep.mubr.bf16.mxu0 %v130
  %4162 = vmatmul.mubr.bf16.gmra.mrb[0].mxu0 %v129
  %v4163 = vpop.f32.mrb[0].mxu0
  %v4164 = vadd.f32 0.0, %v4163
  %v4165 = vpop.f32.mrb[0].mxu0
  %v4166 = vadd.f32 0.0, %v4165
  %v4167 = vpop.f32.mrb[0].mxu0
  %v4168 = vpop.f32.mrb[0].mxu0
  %4169 = vdwg.mxu0
  %4170 = vmatprep.subr.bf16.mxu0 %v3970
  %4171 = vmatpush1.bf16.msra.mxu0 %v3969
  %4172 = vmatprep.subr.bf16.mxu0 %v3972
  %4173 = vmatpush1.bf16.msra.mxu0 %v3971
  %4174 = vmatprep.subr.bf16.mxu0 %v3974
  %4175 = vmatpush1.bf16.msra.mxu0 %v3973
  %4176 = vmatprep.subr.bf16.mxu0 %v3976
  %4177 = vmatpush1.bf16.msra.mxu0 %v3975
  %4178 = vmatprep.subr.bf16.mxu0 %v3978
  %4179 = vmatpush1.bf16.msra.mxu0 %v3977
  %4180 = vmatprep.subr.bf16.mxu0 %v3980
  %4181 = vmatpush1.bf16.msra.mxu0 %v3979
  %4182 = vmatprep.subr.bf16.mxu0 %v3982
  %4183 = vmatpush1.bf16.msra.mxu0 %v3981
  %4184 = vmatprep.subr.bf16.mxu0 %v3984
  %4185 = vmatpush1.bf16.msra.mxu0 %v3983
  %4186 = vmatprep.subr.bf16.mxu0 %v3986
  %4187 = vmatpush1.bf16.msra.mxu0 %v3985
  %4188 = vmatprep.subr.bf16.mxu0 %v3988
  %4189 = vmatpush1.bf16.msra.mxu0 %v3987
  %4190 = vmatprep.subr.bf16.mxu0 %v3990
  %4191 = vmatpush1.bf16.msra.mxu0 %v3989
  %4192 = vmatprep.subr.bf16.mxu0 %v3992
  %4193 = vmatpush1.bf16.msra.mxu0 %v3991
  %4194 = vmatprep.subr.bf16.mxu0 %v3994
  %4195 = vmatpush1.bf16.msra.mxu0 %v3993
  %4196 = vmatprep.subr.bf16.mxu0 %v3996
  %4197 = vmatpush1.bf16.msra.mxu0 %v3995
  %4198 = vmatprep.subr.bf16.mxu0 %v3998
  %4199 = vmatpush1.bf16.msra.mxu0 %v3997
  %4200 = vmatprep.subr.bf16.mxu0 %v4000
  %4201 = vmatpush1.bf16.msra.mxu0 %v3999
  %4202 = vmatprep.mubr.bf16.mxu0 %v132
  %4203 = vmatmul.mubr.bf16.gmra.mrb[0].mxu0 %v131
  %v4204 = vpop.f32.mrb[0].mxu0
  %v4205 = vadd.f32 %v4164, %v4204
  %v4206 = vpop.f32.mrb[0].mxu0
  %v4207 = vadd.f32 %v4166, %v4206
  %v4208 = vpop.f32.mrb[0].mxu0
  %v4209 = vpop.f32.mrb[0].mxu0
  %4210 = vdwg.mxu0
  %4211 = vmatprep.subr.bf16.mxu0 %v4002
  %4212 = vmatpush1.bf16.msra.mxu0 %v4001
  %4213 = vmatprep.subr.bf16.mxu0 %v4004
  %4214 = vmatpush1.bf16.msra.mxu0 %v4003
  %4215 = vmatprep.subr.bf16.mxu0 %v4006
  %4216 = vmatpush1.bf16.msra.mxu0 %v4005
  %4217 = vmatprep.subr.bf16.mxu0 %v4008
  %4218 = vmatpush1.bf16.msra.mxu0 %v4007
  %4219 = vmatprep.subr.bf16.mxu0 %v4010
  %4220 = vmatpush1.bf16.msra.mxu0 %v4009
  %4221 = vmatprep.subr.bf16.mxu0 %v4012
  %4222 = vmatpush1.bf16.msra.mxu0 %v4011
  %4223 = vmatprep.subr.bf16.mxu0 %v4014
  %4224 = vmatpush1.bf16.msra.mxu0 %v4013
  %4225 = vmatprep.subr.bf16.mxu0 %v4016
  %4226 = vmatpush1.bf16.msra.mxu0 %v4015
  %4227 = vmatprep.subr.bf16.mxu0 %v4018
  %4228 = vmatpush1.bf16.msra.mxu0 %v4017
  %4229 = vmatprep.subr.bf16.mxu0 %v4020
  %4230 = vmatpush1.bf16.msra.mxu0 %v4019
  %4231 = vmatprep.subr.bf16.mxu0 %v4022
  %4232 = vmatpush1.bf16.msra.mxu0 %v4021
  %4233 = vmatprep.subr.bf16.mxu0 %v4024
  %4234 = vmatpush1.bf16.msra.mxu0 %v4023
  %4235 = vmatprep.subr.bf16.mxu0 %v4026
  %4236 = vmatpush1.bf16.msra.mxu0 %v4025
  %4237 = vmatprep.subr.bf16.mxu0 %v4028
  %4238 = vmatpush1.bf16.msra.mxu0 %v4027
  %4239 = vmatprep.subr.bf16.mxu0 %v4030
  %4240 = vmatpush1.bf16.msra.mxu0 %v4029
  %4241 = vmatprep.subr.bf16.mxu0 %v4032
  %4242 = vmatpush1.bf16.msra.mxu0 %v4031
  %4243 = vmatprep.mubr.bf16.mxu0 %v134
  %4244 = vmatmul.mubr.bf16.gmra.mrb[0].mxu0 %v133
  %v4245 = vpop.f32.mrb[0].mxu0
  %v4246 = vadd.f32 %v4205, %v4245
  %v4247 = vpop.f32.mrb[0].mxu0
  %v4248 = vadd.f32 %v4207, %v4247
  %v4249 = vpop.f32.mrb[0].mxu0
  %v4250 = vpop.f32.mrb[0].mxu0
  %4251 = vdwg.mxu0
  %v4252 = vmax.f32 %v3550, %v4246
  %v4253 = vmax.f32 %v3551, %v4248
  %s4254 = scalar_lea.vmem %s1, 4608
  %v4255 = vld [vmem:[%s4254] sm:$0xff]
  %v4256 = vld [vmem:[%s4254 + $0x8] sm:$0xff]
  %v4257 = vld [vmem:[%s4254 + $0x10] sm:$0xff]
  %v4258 = vld [vmem:[%s4254 + $0x18] sm:$0xff]
  %v4259 = vld [vmem:[%s4254 + $0x20] sm:$0xff]
  %v4260 = vld [vmem:[%s4254 + $0x28] sm:$0xff]
  %v4261 = vld [vmem:[%s4254 + $0x30] sm:$0xff]
  %v4262 = vld [vmem:[%s4254 + $0x38] sm:$0xff]
  %v4263 = vld [vmem:[%s4254 + $0x40] sm:$0xff]
  %v4264 = vld [vmem:[%s4254 + $0x48] sm:$0xff]
  %v4265 = vld [vmem:[%s4254 + $0x50] sm:$0xff]
  %v4266 = vld [vmem:[%s4254 + $0x58] sm:$0xff]
  %v4267 = vld [vmem:[%s4254 + $0x60] sm:$0xff]
  %v4268 = vld [vmem:[%s4254 + $0x68] sm:$0xff]
  %v4269 = vld [vmem:[%s4254 + $0x70] sm:$0xff]
  %v4270 = vld [vmem:[%s4254 + $0x78] sm:$0xff]
  %v4271 = vld [vmem:[%s4254 + $0x80] sm:$0xff]
  %v4272 = vld [vmem:[%s4254 + $0x88] sm:$0xff]
  %v4273 = vld [vmem:[%s4254 + $0x90] sm:$0xff]
  %v4274 = vld [vmem:[%s4254 + $0x98] sm:$0xff]
  %v4275 = vld [vmem:[%s4254 + $0xa0] sm:$0xff]
  %v4276 = vld [vmem:[%s4254 + $0xa8] sm:$0xff]
  %v4277 = vld [vmem:[%s4254 + $0xb0] sm:$0xff]
  %v4278 = vld [vmem:[%s4254 + $0xb8] sm:$0xff]
  %v4279 = vld [vmem:[%s4254 + $0xc0] sm:$0xff]
  %v4280 = vld [vmem:[%s4254 + $0xc8] sm:$0xff]
  %v4281 = vld [vmem:[%s4254 + $0xd0] sm:$0xff]
  %v4282 = vld [vmem:[%s4254 + $0xd8] sm:$0xff]
  %v4283 = vld [vmem:[%s4254 + $0xe0] sm:$0xff]
  %v4284 = vld [vmem:[%s4254 + $0xe8] sm:$0xff]
  %v4285 = vld [vmem:[%s4254 + $0xf0] sm:$0xff]
  %v4286 = vld [vmem:[%s4254 + $0xf8] sm:$0xff]
  %v4287 = vld [vmem:[%s4254 + $0x100] sm:$0xff]
  %v4288 = vld [vmem:[%s4254 + $0x108] sm:$0xff]
  %v4289 = vld [vmem:[%s4254 + $0x110] sm:$0xff]
  %v4290 = vld [vmem:[%s4254 + $0x118] sm:$0xff]
  %v4291 = vld [vmem:[%s4254 + $0x120] sm:$0xff]
  %v4292 = vld [vmem:[%s4254 + $0x128] sm:$0xff]
  %v4293 = vld [vmem:[%s4254 + $0x130] sm:$0xff]
  %v4294 = vld [vmem:[%s4254 + $0x138] sm:$0xff]
  %v4295 = vld [vmem:[%s4254 + $0x140] sm:$0xff]
  %v4296 = vld [vmem:[%s4254 + $0x148] sm:$0xff]
  %v4297 = vld [vmem:[%s4254 + $0x150] sm:$0xff]
  %v4298 = vld [vmem:[%s4254 + $0x158] sm:$0xff]
  %v4299 = vld [vmem:[%s4254 + $0x160] sm:$0xff]
  %v4300 = vld [vmem:[%s4254 + $0x168] sm:$0xff]
  %v4301 = vld [vmem:[%s4254 + $0x170] sm:$0xff]
  %v4302 = vld [vmem:[%s4254 + $0x178] sm:$0xff]
  %v4303 = vld [vmem:[%s4254 + $0x180] sm:$0xff]
  %v4304 = vld [vmem:[%s4254 + $0x188] sm:$0xff]
  %v4305 = vld [vmem:[%s4254 + $0x190] sm:$0xff]
  %v4306 = vld [vmem:[%s4254 + $0x198] sm:$0xff]
  %v4307 = vld [vmem:[%s4254 + $0x1a0] sm:$0xff]
  %v4308 = vld [vmem:[%s4254 + $0x1a8] sm:$0xff]
  %v4309 = vld [vmem:[%s4254 + $0x1b0] sm:$0xff]
  %v4310 = vld [vmem:[%s4254 + $0x1b8] sm:$0xff]
  %v4311 = vld [vmem:[%s4254 + $0x1c0] sm:$0xff]
  %v4312 = vld [vmem:[%s4254 + $0x1c8] sm:$0xff]
  %v4313 = vld [vmem:[%s4254 + $0x1d0] sm:$0xff]
  %v4314 = vld [vmem:[%s4254 + $0x1d8] sm:$0xff]
  %v4315 = vld [vmem:[%s4254 + $0x1e0] sm:$0xff]
  %v4316 = vld [vmem:[%s4254 + $0x1e8] sm:$0xff]
  %v4317 = vld [vmem:[%s4254 + $0x1f0] sm:$0xff]
  %v4318 = vld [vmem:[%s4254 + $0x1f8] sm:$0xff]
  %v4319 = vld [vmem:[%s4254 + $0x200] sm:$0xff]
  %v4320 = vld [vmem:[%s4254 + $0x208] sm:$0xff]
  %v4321 = vld [vmem:[%s4254 + $0x210] sm:$0xff]
  %v4322 = vld [vmem:[%s4254 + $0x218] sm:$0xff]
  %v4323 = vld [vmem:[%s4254 + $0x220] sm:$0xff]
  %v4324 = vld [vmem:[%s4254 + $0x228] sm:$0xff]
  %v4325 = vld [vmem:[%s4254 + $0x230] sm:$0xff]
  %v4326 = vld [vmem:[%s4254 + $0x238] sm:$0xff]
  %v4327 = vld [vmem:[%s4254 + $0x240] sm:$0xff]
  %v4328 = vld [vmem:[%s4254 + $0x248] sm:$0xff]
  %v4329 = vld [vmem:[%s4254 + $0x250] sm:$0xff]
  %v4330 = vld [vmem:[%s4254 + $0x258] sm:$0xff]
  %v4331 = vld [vmem:[%s4254 + $0x260] sm:$0xff]
  %v4332 = vld [vmem:[%s4254 + $0x268] sm:$0xff]
  %v4333 = vld [vmem:[%s4254 + $0x270] sm:$0xff]
  %v4334 = vld [vmem:[%s4254 + $0x278] sm:$0xff]
  %v4335 = vld [vmem:[%s4254 + $0x280] sm:$0xff]
  %v4336 = vld [vmem:[%s4254 + $0x288] sm:$0xff]
  %v4337 = vld [vmem:[%s4254 + $0x290] sm:$0xff]
  %v4338 = vld [vmem:[%s4254 + $0x298] sm:$0xff]
  %v4339 = vld [vmem:[%s4254 + $0x2a0] sm:$0xff]
  %v4340 = vld [vmem:[%s4254 + $0x2a8] sm:$0xff]
  %v4341 = vld [vmem:[%s4254 + $0x2b0] sm:$0xff]
  %v4342 = vld [vmem:[%s4254 + $0x2b8] sm:$0xff]
  %v4343 = vld [vmem:[%s4254 + $0x2c0] sm:$0xff]
  %v4344 = vld [vmem:[%s4254 + $0x2c8] sm:$0xff]
  %v4345 = vld [vmem:[%s4254 + $0x2d0] sm:$0xff]
  %v4346 = vld [vmem:[%s4254 + $0x2d8] sm:$0xff]
  %v4347 = vld [vmem:[%s4254 + $0x2e0] sm:$0xff]
  %v4348 = vld [vmem:[%s4254 + $0x2e8] sm:$0xff]
  %v4349 = vld [vmem:[%s4254 + $0x2f0] sm:$0xff]
  %v4350 = vld [vmem:[%s4254 + $0x2f8] sm:$0xff]
  %v4447 = vunpack.c.l.b16 %v4255
  %v4448 = vunpack.c.h.b16 %v4255
  %v4449 = vunpack.c.l.b16 %v4256
  %v4450 = vunpack.c.h.b16 %v4256
  %v4451 = vunpack.c.l.b16 %v4257
  %v4452 = vunpack.c.h.b16 %v4257
  %v4453 = vunpack.c.l.b16 %v4258
  %v4454 = vunpack.c.h.b16 %v4258
  %v4455 = vunpack.c.l.b16 %v4259
  %v4456 = vunpack.c.h.b16 %v4259
  %v4457 = vunpack.c.l.b16 %v4260
  %v4458 = vunpack.c.h.b16 %v4260
  %v4459 = vunpack.c.l.b16 %v4261
  %v4460 = vunpack.c.h.b16 %v4261
  %v4461 = vunpack.c.l.b16 %v4262
  %v4462 = vunpack.c.h.b16 %v4262
  %v4463 = vunpack.c.l.b16 %v4263
  %v4464 = vunpack.c.h.b16 %v4263
  %v4465 = vunpack.c.l.b16 %v4264
  %v4466 = vunpack.c.h.b16 %v4264
  %v4467 = vunpack.c.l.b16 %v4265
  %v4468 = vunpack.c.h.b16 %v4265
  %v4469 = vunpack.c.l.b16 %v4266
  %v4470 = vunpack.c.h.b16 %v4266
  %v4471 = vunpack.c.l.b16 %v4267
  %v4472 = vunpack.c.h.b16 %v4267
  %v4473 = vunpack.c.l.b16 %v4268
  %v4474 = vunpack.c.h.b16 %v4268
  %v4475 = vunpack.c.l.b16 %v4269
  %v4476 = vunpack.c.h.b16 %v4269
  %v4477 = vunpack.c.l.b16 %v4270
  %v4478 = vunpack.c.h.b16 %v4270
  %v4479 = vunpack.c.l.b16 %v4271
  %v4480 = vunpack.c.h.b16 %v4271
  %v4481 = vunpack.c.l.b16 %v4272
  %v4482 = vunpack.c.h.b16 %v4272
  %v4483 = vunpack.c.l.b16 %v4273
  %v4484 = vunpack.c.h.b16 %v4273
  %v4485 = vunpack.c.l.b16 %v4274
  %v4486 = vunpack.c.h.b16 %v4274
  %v4487 = vunpack.c.l.b16 %v4275
  %v4488 = vunpack.c.h.b16 %v4275
  %v4489 = vunpack.c.l.b16 %v4276
  %v4490 = vunpack.c.h.b16 %v4276
  %v4491 = vunpack.c.l.b16 %v4277
  %v4492 = vunpack.c.h.b16 %v4277
  %v4493 = vunpack.c.l.b16 %v4278
  %v4494 = vunpack.c.h.b16 %v4278
  %v4495 = vunpack.c.l.b16 %v4279
  %v4496 = vunpack.c.h.b16 %v4279
  %v4497 = vunpack.c.l.b16 %v4280
  %v4498 = vunpack.c.h.b16 %v4280
  %v4499 = vunpack.c.l.b16 %v4281
  %v4500 = vunpack.c.h.b16 %v4281
  %v4501 = vunpack.c.l.b16 %v4282
  %v4502 = vunpack.c.h.b16 %v4282
  %v4503 = vunpack.c.l.b16 %v4283
  %v4504 = vunpack.c.h.b16 %v4283
  %v4505 = vunpack.c.l.b16 %v4284
  %v4506 = vunpack.c.h.b16 %v4284
  %v4507 = vunpack.c.l.b16 %v4285
  %v4508 = vunpack.c.h.b16 %v4285
  %v4509 = vunpack.c.l.b16 %v4286
  %v4510 = vunpack.c.h.b16 %v4286
  %v4511 = vunpack.c.l.b16 %v4287
  %v4512 = vunpack.c.h.b16 %v4287
  %v4513 = vunpack.c.l.b16 %v4288
  %v4514 = vunpack.c.h.b16 %v4288
  %v4515 = vunpack.c.l.b16 %v4289
  %v4516 = vunpack.c.h.b16 %v4289
  %v4517 = vunpack.c.l.b16 %v4290
  %v4518 = vunpack.c.h.b16 %v4290
  %v4519 = vunpack.c.l.b16 %v4291
  %v4520 = vunpack.c.h.b16 %v4291
  %v4521 = vunpack.c.l.b16 %v4292
  %v4522 = vunpack.c.h.b16 %v4292
  %v4523 = vunpack.c.l.b16 %v4293
  %v4524 = vunpack.c.h.b16 %v4293
  %v4525 = vunpack.c.l.b16 %v4294
  %v4526 = vunpack.c.h.b16 %v4294
  %v4527 = vunpack.c.l.b16 %v4295
  %v4528 = vunpack.c.h.b16 %v4295
  %v4529 = vunpack.c.l.b16 %v4296
  %v4530 = vunpack.c.h.b16 %v4296
  %v4531 = vunpack.c.l.b16 %v4297
  %v4532 = vunpack.c.h.b16 %v4297
  %v4533 = vunpack.c.l.b16 %v4298
  %v4534 = vunpack.c.h.b16 %v4298
  %v4535 = vunpack.c.l.b16 %v4299
  %v4536 = vunpack.c.h.b16 %v4299
  %v4537 = vunpack.c.l.b16 %v4300
  %v4538 = vunpack.c.h.b16 %v4300
  %v4539 = vunpack.c.l.b16 %v4301
  %v4540 = vunpack.c.h.b16 %v4301
  %v4541 = vunpack.c.l.b16 %v4302
  %v4542 = vunpack.c.h.b16 %v4302
  %v4543 = vunpack.c.l.b16 %v4303
  %v4544 = vunpack.c.h.b16 %v4303
  %v4545 = vunpack.c.l.b16 %v4304
  %v4546 = vunpack.c.h.b16 %v4304
  %v4547 = vunpack.c.l.b16 %v4305
  %v4548 = vunpack.c.h.b16 %v4305
  %v4549 = vunpack.c.l.b16 %v4306
  %v4550 = vunpack.c.h.b16 %v4306
  %v4551 = vunpack.c.l.b16 %v4307
  %v4552 = vunpack.c.h.b16 %v4307
  %v4553 = vunpack.c.l.b16 %v4308
  %v4554 = vunpack.c.h.b16 %v4308
  %v4555 = vunpack.c.l.b16 %v4309
  %v4556 = vunpack.c.h.b16 %v4309
  %v4557 = vunpack.c.l.b16 %v4310
  %v4558 = vunpack.c.h.b16 %v4310
  %v4559 = vunpack.c.l.b16 %v4311
  %v4560 = vunpack.c.h.b16 %v4311
  %v4561 = vunpack.c.l.b16 %v4312
  %v4562 = vunpack.c.h.b16 %v4312
  %v4563 = vunpack.c.l.b16 %v4313
  %v4564 = vunpack.c.h.b16 %v4313
  %v4565 = vunpack.c.l.b16 %v4314
  %v4566 = vunpack.c.h.b16 %v4314
  %v4567 = vunpack.c.l.b16 %v4315
  %v4568 = vunpack.c.h.b16 %v4315
  %v4569 = vunpack.c.l.b16 %v4316
  %v4570 = vunpack.c.h.b16 %v4316
  %v4571 = vunpack.c.l.b16 %v4317
  %v4572 = vunpack.c.h.b16 %v4317
  %v4573 = vunpack.c.l.b16 %v4318
  %v4574 = vunpack.c.h.b16 %v4318
  %v4575 = vunpack.c.l.b16 %v4319
  %v4576 = vunpack.c.h.b16 %v4319
  %v4577 = vunpack.c.l.b16 %v4320
  %v4578 = vunpack.c.h.b16 %v4320
  %v4579 = vunpack.c.l.b16 %v4321
  %v4580 = vunpack.c.h.b16 %v4321
  %v4581 = vunpack.c.l.b16 %v4322
  %v4582 = vunpack.c.h.b16 %v4322
  %v4583 = vunpack.c.l.b16 %v4323
  %v4584 = vunpack.c.h.b16 %v4323
  %v4585 = vunpack.c.l.b16 %v4324
  %v4586 = vunpack.c.h.b16 %v4324
  %v4587 = vunpack.c.l.b16 %v4325
  %v4588 = vunpack.c.h.b16 %v4325
  %v4589 = vunpack.c.l.b16 %v4326
  %v4590 = vunpack.c.h.b16 %v4326
  %v4591 = vunpack.c.l.b16 %v4327
  %v4592 = vunpack.c.h.b16 %v4327
  %v4593 = vunpack.c.l.b16 %v4328
  %v4594 = vunpack.c.h.b16 %v4328
  %v4595 = vunpack.c.l.b16 %v4329
  %v4596 = vunpack.c.h.b16 %v4329
  %v4597 = vunpack.c.l.b16 %v4330
  %v4598 = vunpack.c.h.b16 %v4330
  %v4599 = vunpack.c.l.b16 %v4331
  %v4600 = vunpack.c.h.b16 %v4331
  %v4601 = vunpack.c.l.b16 %v4332
  %v4602 = vunpack.c.h.b16 %v4332
  %v4603 = vunpack.c.l.b16 %v4333
  %v4604 = vunpack.c.h.b16 %v4333
  %v4605 = vunpack.c.l.b16 %v4334
  %v4606 = vunpack.c.h.b16 %v4334
  %v4607 = vunpack.c.l.b16 %v4335
  %v4608 = vunpack.c.h.b16 %v4335
  %v4609 = vunpack.c.l.b16 %v4336
  %v4610 = vunpack.c.h.b16 %v4336
  %v4611 = vunpack.c.l.b16 %v4337
  %v4612 = vunpack.c.h.b16 %v4337
  %v4613 = vunpack.c.l.b16 %v4338
  %v4614 = vunpack.c.h.b16 %v4338
  %v4615 = vunpack.c.l.b16 %v4339
  %v4616 = vunpack.c.h.b16 %v4339
  %v4617 = vunpack.c.l.b16 %v4340
  %v4618 = vunpack.c.h.b16 %v4340
  %v4619 = vunpack.c.l.b16 %v4341
  %v4620 = vunpack.c.h.b16 %v4341
  %v4621 = vunpack.c.l.b16 %v4342
  %v4622 = vunpack.c.h.b16 %v4342
  %v4623 = vunpack.c.l.b16 %v4343
  %v4624 = vunpack.c.h.b16 %v4343
  %v4625 = vunpack.c.l.b16 %v4344
  %v4626 = vunpack.c.h.b16 %v4344
  %v4627 = vunpack.c.l.b16 %v4345
  %v4628 = vunpack.c.h.b16 %v4345
  %v4629 = vunpack.c.l.b16 %v4346
  %v4630 = vunpack.c.h.b16 %v4346
  %v4631 = vunpack.c.l.b16 %v4347
  %v4632 = vunpack.c.h.b16 %v4347
  %v4633 = vunpack.c.l.b16 %v4348
  %v4634 = vunpack.c.h.b16 %v4348
  %v4635 = vunpack.c.l.b16 %v4349
  %v4636 = vunpack.c.h.b16 %v4349
  %v4637 = vunpack.c.l.b16 %v4350
  %v4638 = vunpack.c.h.b16 %v4350
  %v4639 = vpack.c.b16 %v4449, %v4447
  %v4640 = vpack.c.b16 %v4450, %v4448
  %v4641 = vpack.c.b16 %v4453, %v4451
  %v4642 = vpack.c.b16 %v4454, %v4452
  %v4643 = vpack.c.b16 %v4457, %v4455
  %v4644 = vpack.c.b16 %v4458, %v4456
  %v4645 = vpack.c.b16 %v4461, %v4459
  %v4646 = vpack.c.b16 %v4462, %v4460
  %v4647 = vpack.c.b16 %v4465, %v4463
  %v4648 = vpack.c.b16 %v4466, %v4464
  %v4649 = vpack.c.b16 %v4469, %v4467
  %v4650 = vpack.c.b16 %v4470, %v4468
  %v4651 = vpack.c.b16 %v4473, %v4471
  %v4652 = vpack.c.b16 %v4474, %v4472
  %v4653 = vpack.c.b16 %v4477, %v4475
  %v4654 = vpack.c.b16 %v4478, %v4476
  %v4655 = vpack.c.b16 %v4481, %v4479
  %v4656 = vpack.c.b16 %v4482, %v4480
  %v4657 = vpack.c.b16 %v4485, %v4483
  %v4658 = vpack.c.b16 %v4486, %v4484
  %v4659 = vpack.c.b16 %v4489, %v4487
  %v4660 = vpack.c.b16 %v4490, %v4488
  %v4661 = vpack.c.b16 %v4493, %v4491
  %v4662 = vpack.c.b16 %v4494, %v4492
  %v4663 = vpack.c.b16 %v4497, %v4495
  %v4664 = vpack.c.b16 %v4498, %v4496
  %v4665 = vpack.c.b16 %v4501, %v4499
  %v4666 = vpack.c.b16 %v4502, %v4500
  %v4667 = vpack.c.b16 %v4505, %v4503
  %v4668 = vpack.c.b16 %v4506, %v4504
  %v4669 = vpack.c.b16 %v4509, %v4507
  %v4670 = vpack.c.b16 %v4510, %v4508
  %v4671 = vpack.c.b16 %v4513, %v4511
  %v4672 = vpack.c.b16 %v4514, %v4512
  %v4673 = vpack.c.b16 %v4517, %v4515
  %v4674 = vpack.c.b16 %v4518, %v4516
  %v4675 = vpack.c.b16 %v4521, %v4519
  %v4676 = vpack.c.b16 %v4522, %v4520
  %v4677 = vpack.c.b16 %v4525, %v4523
  %v4678 = vpack.c.b16 %v4526, %v4524
  %v4679 = vpack.c.b16 %v4529, %v4527
  %v4680 = vpack.c.b16 %v4530, %v4528
  %v4681 = vpack.c.b16 %v4533, %v4531
  %v4682 = vpack.c.b16 %v4534, %v4532
  %v4683 = vpack.c.b16 %v4537, %v4535
  %v4684 = vpack.c.b16 %v4538, %v4536
  %v4685 = vpack.c.b16 %v4541, %v4539
  %v4686 = vpack.c.b16 %v4542, %v4540
  %v4687 = vpack.c.b16 %v4545, %v4543
  %v4688 = vpack.c.b16 %v4546, %v4544
  %v4689 = vpack.c.b16 %v4549, %v4547
  %v4690 = vpack.c.b16 %v4550, %v4548
  %v4691 = vpack.c.b16 %v4553, %v4551
  %v4692 = vpack.c.b16 %v4554, %v4552
  %v4693 = vpack.c.b16 %v4557, %v4555
  %v4694 = vpack.c.b16 %v4558, %v4556
  %v4695 = vpack.c.b16 %v4561, %v4559
  %v4696 = vpack.c.b16 %v4562, %v4560
  %v4697 = vpack.c.b16 %v4565, %v4563
  %v4698 = vpack.c.b16 %v4566, %v4564
  %v4699 = vpack.c.b16 %v4569, %v4567
  %v4700 = vpack.c.b16 %v4570, %v4568
  %v4701 = vpack.c.b16 %v4573, %v4571
  %v4702 = vpack.c.b16 %v4574, %v4572
  %v4703 = vpack.c.b16 %v4577, %v4575
  %v4704 = vpack.c.b16 %v4578, %v4576
  %v4705 = vpack.c.b16 %v4581, %v4579
  %v4706 = vpack.c.b16 %v4582, %v4580
  %v4707 = vpack.c.b16 %v4585, %v4583
  %v4708 = vpack.c.b16 %v4586, %v4584
  %v4709 = vpack.c.b16 %v4589, %v4587
  %v4710 = vpack.c.b16 %v4590, %v4588
  %v4711 = vpack.c.b16 %v4593, %v4591
  %v4712 = vpack.c.b16 %v4594, %v4592
  %v4713 = vpack.c.b16 %v4597, %v4595
  %v4714 = vpack.c.b16 %v4598, %v4596
  %v4715 = vpack.c.b16 %v4601, %v4599
  %v4716 = vpack.c.b16 %v4602, %v4600
  %v4717 = vpack.c.b16 %v4605, %v4603
  %v4718 = vpack.c.b16 %v4606, %v4604
  %v4719 = vpack.c.b16 %v4609, %v4607
  %v4720 = vpack.c.b16 %v4610, %v4608
  %v4721 = vpack.c.b16 %v4613, %v4611
  %v4722 = vpack.c.b16 %v4614, %v4612
  %v4723 = vpack.c.b16 %v4617, %v4615
  %v4724 = vpack.c.b16 %v4618, %v4616
  %v4725 = vpack.c.b16 %v4621, %v4619
  %v4726 = vpack.c.b16 %v4622, %v4620
  %v4727 = vpack.c.b16 %v4625, %v4623
  %v4728 = vpack.c.b16 %v4626, %v4624
  %v4729 = vpack.c.b16 %v4629, %v4627
  %v4730 = vpack.c.b16 %v4630, %v4628
  %v4731 = vpack.c.b16 %v4633, %v4631
  %v4732 = vpack.c.b16 %v4634, %v4632
  %v4733 = vpack.c.b16 %v4637, %v4635
  %v4734 = vpack.c.b16 %v4638, %v4636
  %4831 = vmatprep.subr.bf16.mxu0 %v4640
  %4832 = vmatpush1.bf16.msra.mxu0 %v4639
  %4833 = vmatprep.subr.bf16.mxu0 %v4642
  %4834 = vmatpush1.bf16.msra.mxu0 %v4641
  %4835 = vmatprep.subr.bf16.mxu0 %v4644
  %4836 = vmatpush1.bf16.msra.mxu0 %v4643
  %4837 = vmatprep.subr.bf16.mxu0 %v4646
  %4838 = vmatpush1.bf16.msra.mxu0 %v4645
  %4839 = vmatprep.subr.bf16.mxu0 %v4648
  %4840 = vmatpush1.bf16.msra.mxu0 %v4647
  %4841 = vmatprep.subr.bf16.mxu0 %v4650
  %4842 = vmatpush1.bf16.msra.mxu0 %v4649
  %4843 = vmatprep.subr.bf16.mxu0 %v4652
  %4844 = vmatpush1.bf16.msra.mxu0 %v4651
  %4845 = vmatprep.subr.bf16.mxu0 %v4654
  %4846 = vmatpush1.bf16.msra.mxu0 %v4653
  %4847 = vmatprep.subr.bf16.mxu0 %v4656
  %4848 = vmatpush1.bf16.msra.mxu0 %v4655
  %4849 = vmatprep.subr.bf16.mxu0 %v4658
  %4850 = vmatpush1.bf16.msra.mxu0 %v4657
  %4851 = vmatprep.subr.bf16.mxu0 %v4660
  %4852 = vmatpush1.bf16.msra.mxu0 %v4659
  %4853 = vmatprep.subr.bf16.mxu0 %v4662
  %4854 = vmatpush1.bf16.msra.mxu0 %v4661
  %4855 = vmatprep.subr.bf16.mxu0 %v4664
  %4856 = vmatpush1.bf16.msra.mxu0 %v4663
  %4857 = vmatprep.subr.bf16.mxu0 %v4666
  %4858 = vmatpush1.bf16.msra.mxu0 %v4665
  %4859 = vmatprep.subr.bf16.mxu0 %v4668
  %4860 = vmatpush1.bf16.msra.mxu0 %v4667
  %4861 = vmatprep.subr.bf16.mxu0 %v4670
  %4862 = vmatpush1.bf16.msra.mxu0 %v4669
  %4863 = vmatprep.mubr.bf16.mxu0 %v130
  %4864 = vmatmul.mubr.bf16.gmra.mrb[0].mxu0 %v129
  %v4865 = vpop.f32.mrb[0].mxu0
  %v4866 = vadd.f32 0.0, %v4865
  %v4867 = vpop.f32.mrb[0].mxu0
  %v4868 = vadd.f32 0.0, %v4867
  %v4869 = vpop.f32.mrb[0].mxu0
  %v4870 = vpop.f32.mrb[0].mxu0
  %4871 = vdwg.mxu0
  %4872 = vmatprep.subr.bf16.mxu0 %v4672
  %4873 = vmatpush1.bf16.msra.mxu0 %v4671
  %4874 = vmatprep.subr.bf16.mxu0 %v4674
  %4875 = vmatpush1.bf16.msra.mxu0 %v4673
  %4876 = vmatprep.subr.bf16.mxu0 %v4676
  %4877 = vmatpush1.bf16.msra.mxu0 %v4675
  %4878 = vmatprep.subr.bf16.mxu0 %v4678
  %4879 = vmatpush1.bf16.msra.mxu0 %v4677
  %4880 = vmatprep.subr.bf16.mxu0 %v4680
  %4881 = vmatpush1.bf16.msra.mxu0 %v4679
  %4882 = vmatprep.subr.bf16.mxu0 %v4682
  %4883 = vmatpush1.bf16.msra.mxu0 %v4681
  %4884 = vmatprep.subr.bf16.mxu0 %v4684
  %4885 = vmatpush1.bf16.msra.mxu0 %v4683
  %4886 = vmatprep.subr.bf16.mxu0 %v4686
  %4887 = vmatpush1.bf16.msra.mxu0 %v4685
  %4888 = vmatprep.subr.bf16.mxu0 %v4688
  %4889 = vmatpush1.bf16.msra.mxu0 %v4687
  %4890 = vmatprep.subr.bf16.mxu0 %v4690
  %4891 = vmatpush1.bf16.msra.mxu0 %v4689
  %4892 = vmatprep.subr.bf16.mxu0 %v4692
  %4893 = vmatpush1.bf16.msra.mxu0 %v4691
  %4894 = vmatprep.subr.bf16.mxu0 %v4694
  %4895 = vmatpush1.bf16.msra.mxu0 %v4693
  %4896 = vmatprep.subr.bf16.mxu0 %v4696
  %4897 = vmatpush1.bf16.msra.mxu0 %v4695
  %4898 = vmatprep.subr.bf16.mxu0 %v4698
  %4899 = vmatpush1.bf16.msra.mxu0 %v4697
  %4900 = vmatprep.subr.bf16.mxu0 %v4700
  %4901 = vmatpush1.bf16.msra.mxu0 %v4699
  %4902 = vmatprep.subr.bf16.mxu0 %v4702
  %4903 = vmatpush1.bf16.msra.mxu0 %v4701
  %4904 = vmatprep.mubr.bf16.mxu0 %v132
  %4905 = vmatmul.mubr.bf16.gmra.mrb[0].mxu0 %v131
  %v4906 = vpop.f32.mrb[0].mxu0
  %v4907 = vadd.f32 %v4866, %v4906
  %v4908 = vpop.f32.mrb[0].mxu0
  %v4909 = vadd.f32 %v4868, %v4908
  %v4910 = vpop.f32.mrb[0].mxu0
  %v4911 = vpop.f32.mrb[0].mxu0
  %4912 = vdwg.mxu0
  %4913 = vmatprep.subr.bf16.mxu0 %v4704
  %4914 = vmatpush1.bf16.msra.mxu0 %v4703
  %4915 = vmatprep.subr.bf16.mxu0 %v4706
  %4916 = vmatpush1.bf16.msra.mxu0 %v4705
  %4917 = vmatprep.subr.bf16.mxu0 %v4708
  %4918 = vmatpush1.bf16.msra.mxu0 %v4707
  %4919 = vmatprep.subr.bf16.mxu0 %v4710
  %4920 = vmatpush1.bf16.msra.mxu0 %v4709
  %4921 = vmatprep.subr.bf16.mxu0 %v4712
  %4922 = vmatpush1.bf16.msra.mxu0 %v4711
  %4923 = vmatprep.subr.bf16.mxu0 %v4714
  %4924 = vmatpush1.bf16.msra.mxu0 %v4713
  %4925 = vmatprep.subr.bf16.mxu0 %v4716
  %4926 = vmatpush1.bf16.msra.mxu0 %v4715
  %4927 = vmatprep.subr.bf16.mxu0 %v4718
  %4928 = vmatpush1.bf16.msra.mxu0 %v4717
  %4929 = vmatprep.subr.bf16.mxu0 %v4720
  %4930 = vmatpush1.bf16.msra.mxu0 %v4719
  %4931 = vmatprep.subr.bf16.mxu0 %v4722
  %4932 = vmatpush1.bf16.msra.mxu0 %v4721
  %4933 = vmatprep.subr.bf16.mxu0 %v4724
  %4934 = vmatpush1.bf16.msra.mxu0 %v4723
  %4935 = vmatprep.subr.bf16.mxu0 %v4726
  %4936 = vmatpush1.bf16.msra.mxu0 %v4725
  %4937 = vmatprep.subr.bf16.mxu0 %v4728
  %4938 = vmatpush1.bf16.msra.mxu0 %v4727
  %4939 = vmatprep.subr.bf16.mxu0 %v4730
  %4940 = vmatpush1.bf16.msra.mxu0 %v4729
  %4941 = vmatprep.subr.bf16.mxu0 %v4732
  %4942 = vmatpush1.bf16.msra.mxu0 %v4731
  %4943 = vmatprep.subr.bf16.mxu0 %v4734
  %4944 = vmatpush1.bf16.msra.mxu0 %v4733
  %4945 = vmatprep.mubr.bf16.mxu0 %v134
  %4946 = vmatmul.mubr.bf16.gmra.mrb[0].mxu0 %v133
  %v4947 = vpop.f32.mrb[0].mxu0
  %v4948 = vadd.f32 %v4907, %v4947
  %v4949 = vpop.f32.mrb[0].mxu0
  %v4950 = vadd.f32 %v4909, %v4949
  %v4951 = vpop.f32.mrb[0].mxu0
  %v4952 = vpop.f32.mrb[0].mxu0
  %4953 = vdwg.mxu0
  %v4954 = vmax.f32 %v4252, %v4948
  %v4955 = vmax.f32 %v4253, %v4950
  %s4956 = scalar_lea.vmem %s1, 5376
  %v4957 = vld [vmem:[%s4956] sm:$0xff]
  %v4958 = vld [vmem:[%s4956 + $0x8] sm:$0xff]
  %v4959 = vld [vmem:[%s4956 + $0x10] sm:$0xff]
  %v4960 = vld [vmem:[%s4956 + $0x18] sm:$0xff]
  %v4961 = vld [vmem:[%s4956 + $0x20] sm:$0xff]
  %v4962 = vld [vmem:[%s4956 + $0x28] sm:$0xff]
  %v4963 = vld [vmem:[%s4956 + $0x30] sm:$0xff]
  %v4964 = vld [vmem:[%s4956 + $0x38] sm:$0xff]
  %v4965 = vld [vmem:[%s4956 + $0x40] sm:$0xff]
  %v4966 = vld [vmem:[%s4956 + $0x48] sm:$0xff]
  %v4967 = vld [vmem:[%s4956 + $0x50] sm:$0xff]
  %v4968 = vld [vmem:[%s4956 + $0x58] sm:$0xff]
  %v4969 = vld [vmem:[%s4956 + $0x60] sm:$0xff]
  %v4970 = vld [vmem:[%s4956 + $0x68] sm:$0xff]
  %v4971 = vld [vmem:[%s4956 + $0x70] sm:$0xff]
  %v4972 = vld [vmem:[%s4956 + $0x78] sm:$0xff]
  %v4973 = vld [vmem:[%s4956 + $0x80] sm:$0xff]
  %v4974 = vld [vmem:[%s4956 + $0x88] sm:$0xff]
  %v4975 = vld [vmem:[%s4956 + $0x90] sm:$0xff]
  %v4976 = vld [vmem:[%s4956 + $0x98] sm:$0xff]
  %v4977 = vld [vmem:[%s4956 + $0xa0] sm:$0xff]
  %v4978 = vld [vmem:[%s4956 + $0xa8] sm:$0xff]
  %v4979 = vld [vmem:[%s4956 + $0xb0] sm:$0xff]
  %v4980 = vld [vmem:[%s4956 + $0xb8] sm:$0xff]
  %v4981 = vld [vmem:[%s4956 + $0xc0] sm:$0xff]
  %v4982 = vld [vmem:[%s4956 + $0xc8] sm:$0xff]
  %v4983 = vld [vmem:[%s4956 + $0xd0] sm:$0xff]
  %v4984 = vld [vmem:[%s4956 + $0xd8] sm:$0xff]
  %v4985 = vld [vmem:[%s4956 + $0xe0] sm:$0xff]
  %v4986 = vld [vmem:[%s4956 + $0xe8] sm:$0xff]
  %v4987 = vld [vmem:[%s4956 + $0xf0] sm:$0xff]
  %v4988 = vld [vmem:[%s4956 + $0xf8] sm:$0xff]
  %v4989 = vld [vmem:[%s4956 + $0x100] sm:$0xff]
  %v4990 = vld [vmem:[%s4956 + $0x108] sm:$0xff]
  %v4991 = vld [vmem:[%s4956 + $0x110] sm:$0xff]
  %v4992 = vld [vmem:[%s4956 + $0x118] sm:$0xff]
  %v4993 = vld [vmem:[%s4956 + $0x120] sm:$0xff]
  %v4994 = vld [vmem:[%s4956 + $0x128] sm:$0xff]
  %v4995 = vld [vmem:[%s4956 + $0x130] sm:$0xff]
  %v4996 = vld [vmem:[%s4956 + $0x138] sm:$0xff]
  %v4997 = vld [vmem:[%s4956 + $0x140] sm:$0xff]
  %v4998 = vld [vmem:[%s4956 + $0x148] sm:$0xff]
  %v4999 = vld [vmem:[%s4956 + $0x150] sm:$0xff]
  %v5000 = vld [vmem:[%s4956 + $0x158] sm:$0xff]
  %v5001 = vld [vmem:[%s4956 + $0x160] sm:$0xff]
  %v5002 = vld [vmem:[%s4956 + $0x168] sm:$0xff]
  %v5003 = vld [vmem:[%s4956 + $0x170] sm:$0xff]
  %v5004 = vld [vmem:[%s4956 + $0x178] sm:$0xff]
  %v5005 = vld [vmem:[%s4956 + $0x180] sm:$0xff]
  %v5006 = vld [vmem:[%s4956 + $0x188] sm:$0xff]
  %v5007 = vld [vmem:[%s4956 + $0x190] sm:$0xff]
  %v5008 = vld [vmem:[%s4956 + $0x198] sm:$0xff]
  %v5009 = vld [vmem:[%s4956 + $0x1a0] sm:$0xff]
  %v5010 = vld [vmem:[%s4956 + $0x1a8] sm:$0xff]
  %v5011 = vld [vmem:[%s4956 + $0x1b0] sm:$0xff]
  %v5012 = vld [vmem:[%s4956 + $0x1b8] sm:$0xff]
  %v5013 = vld [vmem:[%s4956 + $0x1c0] sm:$0xff]
  %v5014 = vld [vmem:[%s4956 + $0x1c8] sm:$0xff]
  %v5015 = vld [vmem:[%s4956 + $0x1d0] sm:$0xff]
  %v5016 = vld [vmem:[%s4956 + $0x1d8] sm:$0xff]
  %v5017 = vld [vmem:[%s4956 + $0x1e0] sm:$0xff]
  %v5018 = vld [vmem:[%s4956 + $0x1e8] sm:$0xff]
  %v5019 = vld [vmem:[%s4956 + $0x1f0] sm:$0xff]
  %v5020 = vld [vmem:[%s4956 + $0x1f8] sm:$0xff]
  %v5021 = vld [vmem:[%s4956 + $0x200] sm:$0xff]
  %v5022 = vld [vmem:[%s4956 + $0x208] sm:$0xff]
  %v5023 = vld [vmem:[%s4956 + $0x210] sm:$0xff]
  %v5024 = vld [vmem:[%s4956 + $0x218] sm:$0xff]
  %v5025 = vld [vmem:[%s4956 + $0x220] sm:$0xff]
  %v5026 = vld [vmem:[%s4956 + $0x228] sm:$0xff]
  %v5027 = vld [vmem:[%s4956 + $0x230] sm:$0xff]
  %v5028 = vld [vmem:[%s4956 + $0x238] sm:$0xff]
  %v5029 = vld [vmem:[%s4956 + $0x240] sm:$0xff]
  %v5030 = vld [vmem:[%s4956 + $0x248] sm:$0xff]
  %v5031 = vld [vmem:[%s4956 + $0x250] sm:$0xff]
  %v5032 = vld [vmem:[%s4956 + $0x258] sm:$0xff]
  %v5033 = vld [vmem:[%s4956 + $0x260] sm:$0xff]
  %v5034 = vld [vmem:[%s4956 + $0x268] sm:$0xff]
  %v5035 = vld [vmem:[%s4956 + $0x270] sm:$0xff]
  %v5036 = vld [vmem:[%s4956 + $0x278] sm:$0xff]
  %v5037 = vld [vmem:[%s4956 + $0x280] sm:$0xff]
  %v5038 = vld [vmem:[%s4956 + $0x288] sm:$0xff]
  %v5039 = vld [vmem:[%s4956 + $0x290] sm:$0xff]
  %v5040 = vld [vmem:[%s4956 + $0x298] sm:$0xff]
  %v5041 = vld [vmem:[%s4956 + $0x2a0] sm:$0xff]
  %v5042 = vld [vmem:[%s4956 + $0x2a8] sm:$0xff]
  %v5043 = vld [vmem:[%s4956 + $0x2b0] sm:$0xff]
  %v5044 = vld [vmem:[%s4956 + $0x2b8] sm:$0xff]
  %v5045 = vld [vmem:[%s4956 + $0x2c0] sm:$0xff]
  %v5046 = vld [vmem:[%s4956 + $0x2c8] sm:$0xff]
  %v5047 = vld [vmem:[%s4956 + $0x2d0] sm:$0xff]
  %v5048 = vld [vmem:[%s4956 + $0x2d8] sm:$0xff]
  %v5049 = vld [vmem:[%s4956 + $0x2e0] sm:$0xff]
  %v5050 = vld [vmem:[%s4956 + $0x2e8] sm:$0xff]
  %v5051 = vld [vmem:[%s4956 + $0x2f0] sm:$0xff]
  %v5052 = vld [vmem:[%s4956 + $0x2f8] sm:$0xff]
  %v5149 = vunpack.c.l.b16 %v4957
  %v5150 = vunpack.c.h.b16 %v4957
  %v5151 = vunpack.c.l.b16 %v4958
  %v5152 = vunpack.c.h.b16 %v4958
  %v5153 = vunpack.c.l.b16 %v4959
  %v5154 = vunpack.c.h.b16 %v4959
  %v5155 = vunpack.c.l.b16 %v4960
  %v5156 = vunpack.c.h.b16 %v4960
  %v5157 = vunpack.c.l.b16 %v4961
  %v5158 = vunpack.c.h.b16 %v4961
  %v5159 = vunpack.c.l.b16 %v4962
  %v5160 = vunpack.c.h.b16 %v4962
  %v5161 = vunpack.c.l.b16 %v4963
  %v5162 = vunpack.c.h.b16 %v4963
  %v5163 = vunpack.c.l.b16 %v4964
  %v5164 = vunpack.c.h.b16 %v4964
  %v5165 = vunpack.c.l.b16 %v4965
  %v5166 = vunpack.c.h.b16 %v4965
  %v5167 = vunpack.c.l.b16 %v4966
  %v5168 = vunpack.c.h.b16 %v4966
  %v5169 = vunpack.c.l.b16 %v4967
  %v5170 = vunpack.c.h.b16 %v4967
  %v5171 = vunpack.c.l.b16 %v4968
  %v5172 = vunpack.c.h.b16 %v4968
  %v5173 = vunpack.c.l.b16 %v4969
  %v5174 = vunpack.c.h.b16 %v4969
  %v5175 = vunpack.c.l.b16 %v4970
  %v5176 = vunpack.c.h.b16 %v4970
  %v5177 = vunpack.c.l.b16 %v4971
  %v5178 = vunpack.c.h.b16 %v4971
  %v5179 = vunpack.c.l.b16 %v4972
  %v5180 = vunpack.c.h.b16 %v4972
  %v5181 = vunpack.c.l.b16 %v4973
  %v5182 = vunpack.c.h.b16 %v4973
  %v5183 = vunpack.c.l.b16 %v4974
  %v5184 = vunpack.c.h.b16 %v4974
  %v5185 = vunpack.c.l.b16 %v4975
  %v5186 = vunpack.c.h.b16 %v4975
  %v5187 = vunpack.c.l.b16 %v4976
  %v5188 = vunpack.c.h.b16 %v4976
  %v5189 = vunpack.c.l.b16 %v4977
  %v5190 = vunpack.c.h.b16 %v4977
  %v5191 = vunpack.c.l.b16 %v4978
  %v5192 = vunpack.c.h.b16 %v4978
  %v5193 = vunpack.c.l.b16 %v4979
  %v5194 = vunpack.c.h.b16 %v4979
  %v5195 = vunpack.c.l.b16 %v4980
  %v5196 = vunpack.c.h.b16 %v4980
  %v5197 = vunpack.c.l.b16 %v4981
  %v5198 = vunpack.c.h.b16 %v4981
  %v5199 = vunpack.c.l.b16 %v4982
  %v5200 = vunpack.c.h.b16 %v4982
  %v5201 = vunpack.c.l.b16 %v4983
  %v5202 = vunpack.c.h.b16 %v4983
  %v5203 = vunpack.c.l.b16 %v4984
  %v5204 = vunpack.c.h.b16 %v4984
  %v5205 = vunpack.c.l.b16 %v4985
  %v5206 = vunpack.c.h.b16 %v4985
  %v5207 = vunpack.c.l.b16 %v4986
  %v5208 = vunpack.c.h.b16 %v4986
  %v5209 = vunpack.c.l.b16 %v4987
  %v5210 = vunpack.c.h.b16 %v4987
  %v5211 = vunpack.c.l.b16 %v4988
  %v5212 = vunpack.c.h.b16 %v4988
  %v5213 = vunpack.c.l.b16 %v4989
  %v5214 = vunpack.c.h.b16 %v4989
  %v5215 = vunpack.c.l.b16 %v4990
  %v5216 = vunpack.c.h.b16 %v4990
  %v5217 = vunpack.c.l.b16 %v4991
  %v5218 = vunpack.c.h.b16 %v4991
  %v5219 = vunpack.c.l.b16 %v4992
  %v5220 = vunpack.c.h.b16 %v4992
  %v5221 = vunpack.c.l.b16 %v4993
  %v5222 = vunpack.c.h.b16 %v4993
  %v5223 = vunpack.c.l.b16 %v4994
  %v5224 = vunpack.c.h.b16 %v4994
  %v5225 = vunpack.c.l.b16 %v4995
  %v5226 = vunpack.c.h.b16 %v4995
  %v5227 = vunpack.c.l.b16 %v4996
  %v5228 = vunpack.c.h.b16 %v4996
  %v5229 = vunpack.c.l.b16 %v4997
  %v5230 = vunpack.c.h.b16 %v4997
  %v5231 = vunpack.c.l.b16 %v4998
  %v5232 = vunpack.c.h.b16 %v4998
  %v5233 = vunpack.c.l.b16 %v4999
  %v5234 = vunpack.c.h.b16 %v4999
  %v5235 = vunpack.c.l.b16 %v5000
  %v5236 = vunpack.c.h.b16 %v5000
  %v5237 = vunpack.c.l.b16 %v5001
  %v5238 = vunpack.c.h.b16 %v5001
  %v5239 = vunpack.c.l.b16 %v5002
  %v5240 = vunpack.c.h.b16 %v5002
  %v5241 = vunpack.c.l.b16 %v5003
  %v5242 = vunpack.c.h.b16 %v5003
  %v5243 = vunpack.c.l.b16 %v5004
  %v5244 = vunpack.c.h.b16 %v5004
  %v5245 = vunpack.c.l.b16 %v5005
  %v5246 = vunpack.c.h.b16 %v5005
  %v5247 = vunpack.c.l.b16 %v5006
  %v5248 = vunpack.c.h.b16 %v5006
  %v5249 = vunpack.c.l.b16 %v5007
  %v5250 = vunpack.c.h.b16 %v5007
  %v5251 = vunpack.c.l.b16 %v5008
  %v5252 = vunpack.c.h.b16 %v5008
  %v5253 = vunpack.c.l.b16 %v5009
  %v5254 = vunpack.c.h.b16 %v5009
  %v5255 = vunpack.c.l.b16 %v5010
  %v5256 = vunpack.c.h.b16 %v5010
  %v5257 = vunpack.c.l.b16 %v5011
  %v5258 = vunpack.c.h.b16 %v5011
  %v5259 = vunpack.c.l.b16 %v5012
  %v5260 = vunpack.c.h.b16 %v5012
  %v5261 = vunpack.c.l.b16 %v5013
  %v5262 = vunpack.c.h.b16 %v5013
  %v5263 = vunpack.c.l.b16 %v5014
  %v5264 = vunpack.c.h.b16 %v5014
  %v5265 = vunpack.c.l.b16 %v5015
  %v5266 = vunpack.c.h.b16 %v5015
  %v5267 = vunpack.c.l.b16 %v5016
  %v5268 = vunpack.c.h.b16 %v5016
  %v5269 = vunpack.c.l.b16 %v5017
  %v5270 = vunpack.c.h.b16 %v5017
  %v5271 = vunpack.c.l.b16 %v5018
  %v5272 = vunpack.c.h.b16 %v5018
  %v5273 = vunpack.c.l.b16 %v5019
  %v5274 = vunpack.c.h.b16 %v5019
  %v5275 = vunpack.c.l.b16 %v5020
  %v5276 = vunpack.c.h.b16 %v5020
  %v5277 = vunpack.c.l.b16 %v5021
  %v5278 = vunpack.c.h.b16 %v5021
  %v5279 = vunpack.c.l.b16 %v5022
  %v5280 = vunpack.c.h.b16 %v5022
  %v5281 = vunpack.c.l.b16 %v5023
  %v5282 = vunpack.c.h.b16 %v5023
  %v5283 = vunpack.c.l.b16 %v5024
  %v5284 = vunpack.c.h.b16 %v5024
  %v5285 = vunpack.c.l.b16 %v5025
  %v5286 = vunpack.c.h.b16 %v5025
  %v5287 = vunpack.c.l.b16 %v5026
  %v5288 = vunpack.c.h.b16 %v5026
  %v5289 = vunpack.c.l.b16 %v5027
  %v5290 = vunpack.c.h.b16 %v5027
  %v5291 = vunpack.c.l.b16 %v5028
  %v5292 = vunpack.c.h.b16 %v5028
  %v5293 = vunpack.c.l.b16 %v5029
  %v5294 = vunpack.c.h.b16 %v5029
  %v5295 = vunpack.c.l.b16 %v5030
  %v5296 = vunpack.c.h.b16 %v5030
  %v5297 = vunpack.c.l.b16 %v5031
  %v5298 = vunpack.c.h.b16 %v5031
  %v5299 = vunpack.c.l.b16 %v5032
  %v5300 = vunpack.c.h.b16 %v5032
  %v5301 = vunpack.c.l.b16 %v5033
  %v5302 = vunpack.c.h.b16 %v5033
  %v5303 = vunpack.c.l.b16 %v5034
  %v5304 = vunpack.c.h.b16 %v5034
  %v5305 = vunpack.c.l.b16 %v5035
  %v5306 = vunpack.c.h.b16 %v5035
  %v5307 = vunpack.c.l.b16 %v5036
  %v5308 = vunpack.c.h.b16 %v5036
  %v5309 = vunpack.c.l.b16 %v5037
  %v5310 = vunpack.c.h.b16 %v5037
  %v5311 = vunpack.c.l.b16 %v5038
  %v5312 = vunpack.c.h.b16 %v5038
  %v5313 = vunpack.c.l.b16 %v5039
  %v5314 = vunpack.c.h.b16 %v5039
  %v5315 = vunpack.c.l.b16 %v5040
  %v5316 = vunpack.c.h.b16 %v5040
  %v5317 = vunpack.c.l.b16 %v5041
  %v5318 = vunpack.c.h.b16 %v5041
  %v5319 = vunpack.c.l.b16 %v5042
  %v5320 = vunpack.c.h.b16 %v5042
  %v5321 = vunpack.c.l.b16 %v5043
  %v5322 = vunpack.c.h.b16 %v5043
  %v5323 = vunpack.c.l.b16 %v5044
  %v5324 = vunpack.c.h.b16 %v5044
  %v5325 = vunpack.c.l.b16 %v5045
  %v5326 = vunpack.c.h.b16 %v5045
  %v5327 = vunpack.c.l.b16 %v5046
  %v5328 = vunpack.c.h.b16 %v5046
  %v5329 = vunpack.c.l.b16 %v5047
  %v5330 = vunpack.c.h.b16 %v5047
  %v5331 = vunpack.c.l.b16 %v5048
  %v5332 = vunpack.c.h.b16 %v5048
  %v5333 = vunpack.c.l.b16 %v5049
  %v5334 = vunpack.c.h.b16 %v5049
  %v5335 = vunpack.c.l.b16 %v5050
  %v5336 = vunpack.c.h.b16 %v5050
  %v5337 = vunpack.c.l.b16 %v5051
  %v5338 = vunpack.c.h.b16 %v5051
  %v5339 = vunpack.c.l.b16 %v5052
  %v5340 = vunpack.c.h.b16 %v5052
  %v5341 = vpack.c.b16 %v5151, %v5149
  %v5342 = vpack.c.b16 %v5152, %v5150
  %v5343 = vpack.c.b16 %v5155, %v5153
  %v5344 = vpack.c.b16 %v5156, %v5154
  %v5345 = vpack.c.b16 %v5159, %v5157
  %v5346 = vpack.c.b16 %v5160, %v5158
  %v5347 = vpack.c.b16 %v5163, %v5161
  %v5348 = vpack.c.b16 %v5164, %v5162
  %v5349 = vpack.c.b16 %v5167, %v5165
  %v5350 = vpack.c.b16 %v5168, %v5166
  %v5351 = vpack.c.b16 %v5171, %v5169
  %v5352 = vpack.c.b16 %v5172, %v5170
  %v5353 = vpack.c.b16 %v5175, %v5173
  %v5354 = vpack.c.b16 %v5176, %v5174
  %v5355 = vpack.c.b16 %v5179, %v5177
  %v5356 = vpack.c.b16 %v5180, %v5178
  %v5357 = vpack.c.b16 %v5183, %v5181
  %v5358 = vpack.c.b16 %v5184, %v5182
  %v5359 = vpack.c.b16 %v5187, %v5185
  %v5360 = vpack.c.b16 %v5188, %v5186
  %v5361 = vpack.c.b16 %v5191, %v5189
  %v5362 = vpack.c.b16 %v5192, %v5190
  %v5363 = vpack.c.b16 %v5195, %v5193
  %v5364 = vpack.c.b16 %v5196, %v5194
  %v5365 = vpack.c.b16 %v5199, %v5197
  %v5366 = vpack.c.b16 %v5200, %v5198
  %v5367 = vpack.c.b16 %v5203, %v5201
  %v5368 = vpack.c.b16 %v5204, %v5202
  %v5369 = vpack.c.b16 %v5207, %v5205
  %v5370 = vpack.c.b16 %v5208, %v5206
  %v5371 = vpack.c.b16 %v5211, %v5209
  %v5372 = vpack.c.b16 %v5212, %v5210
  %v5373 = vpack.c.b16 %v5215, %v5213
  %v5374 = vpack.c.b16 %v5216, %v5214
  %v5375 = vpack.c.b16 %v5219, %v5217
  %v5376 = vpack.c.b16 %v5220, %v5218
  %v5377 = vpack.c.b16 %v5223, %v5221
  %v5378 = vpack.c.b16 %v5224, %v5222
  %v5379 = vpack.c.b16 %v5227, %v5225
  %v5380 = vpack.c.b16 %v5228, %v5226
  %v5381 = vpack.c.b16 %v5231, %v5229
  %v5382 = vpack.c.b16 %v5232, %v5230
  %v5383 = vpack.c.b16 %v5235, %v5233
  %v5384 = vpack.c.b16 %v5236, %v5234
  %v5385 = vpack.c.b16 %v5239, %v5237
  %v5386 = vpack.c.b16 %v5240, %v5238
  %v5387 = vpack.c.b16 %v5243, %v5241
  %v5388 = vpack.c.b16 %v5244, %v5242
  %v5389 = vpack.c.b16 %v5247, %v5245
  %v5390 = vpack.c.b16 %v5248, %v5246
  %v5391 = vpack.c.b16 %v5251, %v5249
  %v5392 = vpack.c.b16 %v5252, %v5250
  %v5393 = vpack.c.b16 %v5255, %v5253
  %v5394 = vpack.c.b16 %v5256, %v5254
  %v5395 = vpack.c.b16 %v5259, %v5257
  %v5396 = vpack.c.b16 %v5260, %v5258
  %v5397 = vpack.c.b16 %v5263, %v5261
  %v5398 = vpack.c.b16 %v5264, %v5262
  %v5399 = vpack.c.b16 %v5267, %v5265
  %v5400 = vpack.c.b16 %v5268, %v5266
  %v5401 = vpack.c.b16 %v5271, %v5269
  %v5402 = vpack.c.b16 %v5272, %v5270
  %v5403 = vpack.c.b16 %v5275, %v5273
  %v5404 = vpack.c.b16 %v5276, %v5274
  %v5405 = vpack.c.b16 %v5279, %v5277
  %v5406 = vpack.c.b16 %v5280, %v5278
  %v5407 = vpack.c.b16 %v5283, %v5281
  %v5408 = vpack.c.b16 %v5284, %v5282
  %v5409 = vpack.c.b16 %v5287, %v5285
  %v5410 = vpack.c.b16 %v5288, %v5286
  %v5411 = vpack.c.b16 %v5291, %v5289
  %v5412 = vpack.c.b16 %v5292, %v5290
  %v5413 = vpack.c.b16 %v5295, %v5293
  %v5414 = vpack.c.b16 %v5296, %v5294
  %v5415 = vpack.c.b16 %v5299, %v5297
  %v5416 = vpack.c.b16 %v5300, %v5298
  %v5417 = vpack.c.b16 %v5303, %v5301
  %v5418 = vpack.c.b16 %v5304, %v5302
  %v5419 = vpack.c.b16 %v5307, %v5305
  %v5420 = vpack.c.b16 %v5308, %v5306
  %v5421 = vpack.c.b16 %v5311, %v5309
  %v5422 = vpack.c.b16 %v5312, %v5310
  %v5423 = vpack.c.b16 %v5315, %v5313
  %v5424 = vpack.c.b16 %v5316, %v5314
  %v5425 = vpack.c.b16 %v5319, %v5317
  %v5426 = vpack.c.b16 %v5320, %v5318
  %v5427 = vpack.c.b16 %v5323, %v5321
  %v5428 = vpack.c.b16 %v5324, %v5322
  %v5429 = vpack.c.b16 %v5327, %v5325
  %v5430 = vpack.c.b16 %v5328, %v5326
  %v5431 = vpack.c.b16 %v5331, %v5329
  %v5432 = vpack.c.b16 %v5332, %v5330
  %v5433 = vpack.c.b16 %v5335, %v5333
  %v5434 = vpack.c.b16 %v5336, %v5334
  %v5435 = vpack.c.b16 %v5339, %v5337
  %v5436 = vpack.c.b16 %v5340, %v5338
  %5533 = vmatprep.subr.bf16.mxu0 %v5342
  %5534 = vmatpush1.bf16.msra.mxu0 %v5341
  %5535 = vmatprep.subr.bf16.mxu0 %v5344
  %5536 = vmatpush1.bf16.msra.mxu0 %v5343
  %5537 = vmatprep.subr.bf16.mxu0 %v5346
  %5538 = vmatpush1.bf16.msra.mxu0 %v5345
  %5539 = vmatprep.subr.bf16.mxu0 %v5348
  %5540 = vmatpush1.bf16.msra.mxu0 %v5347
  %5541 = vmatprep.subr.bf16.mxu0 %v5350
  %5542 = vmatpush1.bf16.msra.mxu0 %v5349
  %5543 = vmatprep.subr.bf16.mxu0 %v5352
  %5544 = vmatpush1.bf16.msra.mxu0 %v5351
  %5545 = vmatprep.subr.bf16.mxu0 %v5354
  %5546 = vmatpush1.bf16.msra.mxu0 %v5353
  %5547 = vmatprep.subr.bf16.mxu0 %v5356
  %5548 = vmatpush1.bf16.msra.mxu0 %v5355
  %5549 = vmatprep.subr.bf16.mxu0 %v5358
  %5550 = vmatpush1.bf16.msra.mxu0 %v5357
  %5551 = vmatprep.subr.bf16.mxu0 %v5360
  %5552 = vmatpush1.bf16.msra.mxu0 %v5359
  %5553 = vmatprep.subr.bf16.mxu0 %v5362
  %5554 = vmatpush1.bf16.msra.mxu0 %v5361
  %5555 = vmatprep.subr.bf16.mxu0 %v5364
  %5556 = vmatpush1.bf16.msra.mxu0 %v5363
  %5557 = vmatprep.subr.bf16.mxu0 %v5366
  %5558 = vmatpush1.bf16.msra.mxu0 %v5365
  %5559 = vmatprep.subr.bf16.mxu0 %v5368
  %5560 = vmatpush1.bf16.msra.mxu0 %v5367
  %5561 = vmatprep.subr.bf16.mxu0 %v5370
  %5562 = vmatpush1.bf16.msra.mxu0 %v5369
  %5563 = vmatprep.subr.bf16.mxu0 %v5372
  %5564 = vmatpush1.bf16.msra.mxu0 %v5371
  %5565 = vmatprep.mubr.bf16.mxu0 %v130
  %5566 = vmatmul.mubr.bf16.gmra.mrb[0].mxu0 %v129
  %v5567 = vpop.f32.mrb[0].mxu0
  %v5568 = vadd.f32 0.0, %v5567
  %v5569 = vpop.f32.mrb[0].mxu0
  %v5570 = vadd.f32 0.0, %v5569
  %v5571 = vpop.f32.mrb[0].mxu0
  %v5572 = vpop.f32.mrb[0].mxu0
  %5573 = vdwg.mxu0
  %5574 = vmatprep.subr.bf16.mxu0 %v5374
  %5575 = vmatpush1.bf16.msra.mxu0 %v5373
  %5576 = vmatprep.subr.bf16.mxu0 %v5376
  %5577 = vmatpush1.bf16.msra.mxu0 %v5375
  %5578 = vmatprep.subr.bf16.mxu0 %v5378
  %5579 = vmatpush1.bf16.msra.mxu0 %v5377
  %5580 = vmatprep.subr.bf16.mxu0 %v5380
  %5581 = vmatpush1.bf16.msra.mxu0 %v5379
  %5582 = vmatprep.subr.bf16.mxu0 %v5382
  %5583 = vmatpush1.bf16.msra.mxu0 %v5381
  %5584 = vmatprep.subr.bf16.mxu0 %v5384
  %5585 = vmatpush1.bf16.msra.mxu0 %v5383
  %5586 = vmatprep.subr.bf16.mxu0 %v5386
  %5587 = vmatpush1.bf16.msra.mxu0 %v5385
  %5588 = vmatprep.subr.bf16.mxu0 %v5388
  %5589 = vmatpush1.bf16.msra.mxu0 %v5387
  %5590 = vmatprep.subr.bf16.mxu0 %v5390
  %5591 = vmatpush1.bf16.msra.mxu0 %v5389
  %5592 = vmatprep.subr.bf16.mxu0 %v5392
  %5593 = vmatpush1.bf16.msra.mxu0 %v5391
  %5594 = vmatprep.subr.bf16.mxu0 %v5394
  %5595 = vmatpush1.bf16.msra.mxu0 %v5393
  %5596 = vmatprep.subr.bf16.mxu0 %v5396
  %5597 = vmatpush1.bf16.msra.mxu0 %v5395
  %5598 = vmatprep.subr.bf16.mxu0 %v5398
  %5599 = vmatpush1.bf16.msra.mxu0 %v5397
  %5600 = vmatprep.subr.bf16.mxu0 %v5400
  %5601 = vmatpush1.bf16.msra.mxu0 %v5399
  %5602 = vmatprep.subr.bf16.mxu0 %v5402
  %5603 = vmatpush1.bf16.msra.mxu0 %v5401
  %5604 = vmatprep.subr.bf16.mxu0 %v5404
  %5605 = vmatpush1.bf16.msra.mxu0 %v5403
  %5606 = vmatprep.mubr.bf16.mxu0 %v132
  %5607 = vmatmul.mubr.bf16.gmra.mrb[0].mxu0 %v131
  %v5608 = vpop.f32.mrb[0].mxu0
  %v5609 = vadd.f32 %v5568, %v5608
  %v5610 = vpop.f32.mrb[0].mxu0
  %v5611 = vadd.f32 %v5570, %v5610
  %v5612 = vpop.f32.mrb[0].mxu0
  %v5613 = vpop.f32.mrb[0].mxu0
  %5614 = vdwg.mxu0
  %5615 = vmatprep.subr.bf16.mxu0 %v5406
  %5616 = vmatpush1.bf16.msra.mxu0 %v5405
  %5617 = vmatprep.subr.bf16.mxu0 %v5408
  %5618 = vmatpush1.bf16.msra.mxu0 %v5407
  %5619 = vmatprep.subr.bf16.mxu0 %v5410
  %5620 = vmatpush1.bf16.msra.mxu0 %v5409
  %5621 = vmatprep.subr.bf16.mxu0 %v5412
  %5622 = vmatpush1.bf16.msra.mxu0 %v5411
  %5623 = vmatprep.subr.bf16.mxu0 %v5414
  %5624 = vmatpush1.bf16.msra.mxu0 %v5413
  %5625 = vmatprep.subr.bf16.mxu0 %v5416
  %5626 = vmatpush1.bf16.msra.mxu0 %v5415
  %5627 = vmatprep.subr.bf16.mxu0 %v5418
  %5628 = vmatpush1.bf16.msra.mxu0 %v5417
  %5629 = vmatprep.subr.bf16.mxu0 %v5420
  %5630 = vmatpush1.bf16.msra.mxu0 %v5419
  %5631 = vmatprep.subr.bf16.mxu0 %v5422
  %5632 = vmatpush1.bf16.msra.mxu0 %v5421
  %5633 = vmatprep.subr.bf16.mxu0 %v5424
  %5634 = vmatpush1.bf16.msra.mxu0 %v5423
  %5635 = vmatprep.subr.bf16.mxu0 %v5426
  %5636 = vmatpush1.bf16.msra.mxu0 %v5425
  %5637 = vmatprep.subr.bf16.mxu0 %v5428
  %5638 = vmatpush1.bf16.msra.mxu0 %v5427
  %5639 = vmatprep.subr.bf16.mxu0 %v5430
  %5640 = vmatpush1.bf16.msra.mxu0 %v5429
  %5641 = vmatprep.subr.bf16.mxu0 %v5432
  %5642 = vmatpush1.bf16.msra.mxu0 %v5431
  %5643 = vmatprep.subr.bf16.mxu0 %v5434
  %5644 = vmatpush1.bf16.msra.mxu0 %v5433
  %5645 = vmatprep.subr.bf16.mxu0 %v5436
  %5646 = vmatpush1.bf16.msra.mxu0 %v5435
  %5647 = vmatprep.mubr.bf16.mxu0 %v134
  %5648 = vmatmul.mubr.bf16.gmra.mrb[0].mxu0 %v133
  %v5649 = vpop.f32.mrb[0].mxu0
  %v5650 = vadd.f32 %v5609, %v5649
  %v5651 = vpop.f32.mrb[0].mxu0
  %v5652 = vadd.f32 %v5611, %v5651
  %v5653 = vpop.f32.mrb[0].mxu0
  %v5654 = vpop.f32.mrb[0].mxu0
  %5655 = vdwg.mxu0
  %v5656 = vmax.f32 %v4954, %v5650
  %v5657 = vmax.f32 %v4955, %v5652
  %s5658 = scalar_lea.vmem %s1, 6144
  %v5659 = vld [vmem:[%s5658] sm:$0xff]
  %v5660 = vld [vmem:[%s5658 + $0x8] sm:$0xff]
  %v5661 = vld [vmem:[%s5658 + $0x10] sm:$0xff]
  %v5662 = vld [vmem:[%s5658 + $0x18] sm:$0xff]
  %v5663 = vld [vmem:[%s5658 + $0x20] sm:$0xff]
  %v5664 = vld [vmem:[%s5658 + $0x28] sm:$0xff]
  %v5665 = vld [vmem:[%s5658 + $0x30] sm:$0xff]
  %v5666 = vld [vmem:[%s5658 + $0x38] sm:$0xff]
  %v5667 = vld [vmem:[%s5658 + $0x40] sm:$0xff]
  %v5668 = vld [vmem:[%s5658 + $0x48] sm:$0xff]
  %v5669 = vld [vmem:[%s5658 + $0x50] sm:$0xff]
  %v5670 = vld [vmem:[%s5658 + $0x58] sm:$0xff]
  %v5671 = vld [vmem:[%s5658 + $0x60] sm:$0xff]
  %v5672 = vld [vmem:[%s5658 + $0x68] sm:$0xff]
  %v5673 = vld [vmem:[%s5658 + $0x70] sm:$0xff]
  %v5674 = vld [vmem:[%s5658 + $0x78] sm:$0xff]
  %v5675 = vld [vmem:[%s5658 + $0x80] sm:$0xff]
  %v5676 = vld [vmem:[%s5658 + $0x88] sm:$0xff]
  %v5677 = vld [vmem:[%s5658 + $0x90] sm:$0xff]
  %v5678 = vld [vmem:[%s5658 + $0x98] sm:$0xff]
  %v5679 = vld [vmem:[%s5658 + $0xa0] sm:$0xff]
  %v5680 = vld [vmem:[%s5658 + $0xa8] sm:$0xff]
  %v5681 = vld [vmem:[%s5658 + $0xb0] sm:$0xff]
  %v5682 = vld [vmem:[%s5658 + $0xb8] sm:$0xff]
  %v5683 = vld [vmem:[%s5658 + $0xc0] sm:$0xff]
  %v5684 = vld [vmem:[%s5658 + $0xc8] sm:$0xff]
  %v5685 = vld [vmem:[%s5658 + $0xd0] sm:$0xff]
  %v5686 = vld [vmem:[%s5658 + $0xd8] sm:$0xff]
  %v5687 = vld [vmem:[%s5658 + $0xe0] sm:$0xff]
  %v5688 = vld [vmem:[%s5658 + $0xe8] sm:$0xff]
  %v5689 = vld [vmem:[%s5658 + $0xf0] sm:$0xff]
  %v5690 = vld [vmem:[%s5658 + $0xf8] sm:$0xff]
  %v5691 = vld [vmem:[%s5658 + $0x100] sm:$0xff]
  %v5692 = vld [vmem:[%s5658 + $0x108] sm:$0xff]
  %v5693 = vld [vmem:[%s5658 + $0x110] sm:$0xff]
  %v5694 = vld [vmem:[%s5658 + $0x118] sm:$0xff]
  %v5695 = vld [vmem:[%s5658 + $0x120] sm:$0xff]
  %v5696 = vld [vmem:[%s5658 + $0x128] sm:$0xff]
  %v5697 = vld [vmem:[%s5658 + $0x130] sm:$0xff]
  %v5698 = vld [vmem:[%s5658 + $0x138] sm:$0xff]
  %v5699 = vld [vmem:[%s5658 + $0x140] sm:$0xff]
  %v5700 = vld [vmem:[%s5658 + $0x148] sm:$0xff]
  %v5701 = vld [vmem:[%s5658 + $0x150] sm:$0xff]
  %v5702 = vld [vmem:[%s5658 + $0x158] sm:$0xff]
  %v5703 = vld [vmem:[%s5658 + $0x160] sm:$0xff]
  %v5704 = vld [vmem:[%s5658 + $0x168] sm:$0xff]
  %v5705 = vld [vmem:[%s5658 + $0x170] sm:$0xff]
  %v5706 = vld [vmem:[%s5658 + $0x178] sm:$0xff]
  %v5707 = vld [vmem:[%s5658 + $0x180] sm:$0xff]
  %v5708 = vld [vmem:[%s5658 + $0x188] sm:$0xff]
  %v5709 = vld [vmem:[%s5658 + $0x190] sm:$0xff]
  %v5710 = vld [vmem:[%s5658 + $0x198] sm:$0xff]
  %v5711 = vld [vmem:[%s5658 + $0x1a0] sm:$0xff]
  %v5712 = vld [vmem:[%s5658 + $0x1a8] sm:$0xff]
  %v5713 = vld [vmem:[%s5658 + $0x1b0] sm:$0xff]
  %v5714 = vld [vmem:[%s5658 + $0x1b8] sm:$0xff]
  %v5715 = vld [vmem:[%s5658 + $0x1c0] sm:$0xff]
  %v5716 = vld [vmem:[%s5658 + $0x1c8] sm:$0xff]
  %v5717 = vld [vmem:[%s5658 + $0x1d0] sm:$0xff]
  %v5718 = vld [vmem:[%s5658 + $0x1d8] sm:$0xff]
  %v5719 = vld [vmem:[%s5658 + $0x1e0] sm:$0xff]
  %v5720 = vld [vmem:[%s5658 + $0x1e8] sm:$0xff]
  %v5721 = vld [vmem:[%s5658 + $0x1f0] sm:$0xff]
  %v5722 = vld [vmem:[%s5658 + $0x1f8] sm:$0xff]
  %v5723 = vld [vmem:[%s5658 + $0x200] sm:$0xff]
  %v5724 = vld [vmem:[%s5658 + $0x208] sm:$0xff]
  %v5725 = vld [vmem:[%s5658 + $0x210] sm:$0xff]
  %v5726 = vld [vmem:[%s5658 + $0x218] sm:$0xff]
  %v5727 = vld [vmem:[%s5658 + $0x220] sm:$0xff]
  %v5728 = vld [vmem:[%s5658 + $0x228] sm:$0xff]
  %v5729 = vld [vmem:[%s5658 + $0x230] sm:$0xff]
  %v5730 = vld [vmem:[%s5658 + $0x238] sm:$0xff]
  %v5731 = vld [vmem:[%s5658 + $0x240] sm:$0xff]
  %v5732 = vld [vmem:[%s5658 + $0x248] sm:$0xff]
  %v5733 = vld [vmem:[%s5658 + $0x250] sm:$0xff]
  %v5734 = vld [vmem:[%s5658 + $0x258] sm:$0xff]
  %v5735 = vld [vmem:[%s5658 + $0x260] sm:$0xff]
  %v5736 = vld [vmem:[%s5658 + $0x268] sm:$0xff]
  %v5737 = vld [vmem:[%s5658 + $0x270] sm:$0xff]
  %v5738 = vld [vmem:[%s5658 + $0x278] sm:$0xff]
  %v5739 = vld [vmem:[%s5658 + $0x280] sm:$0xff]
  %v5740 = vld [vmem:[%s5658 + $0x288] sm:$0xff]
  %v5741 = vld [vmem:[%s5658 + $0x290] sm:$0xff]
  %v5742 = vld [vmem:[%s5658 + $0x298] sm:$0xff]
  %v5743 = vld [vmem:[%s5658 + $0x2a0] sm:$0xff]
  %v5744 = vld [vmem:[%s5658 + $0x2a8] sm:$0xff]
  %v5745 = vld [vmem:[%s5658 + $0x2b0] sm:$0xff]
  %v5746 = vld [vmem:[%s5658 + $0x2b8] sm:$0xff]
  %v5747 = vld [vmem:[%s5658 + $0x2c0] sm:$0xff]
  %v5748 = vld [vmem:[%s5658 + $0x2c8] sm:$0xff]
  %v5749 = vld [vmem:[%s5658 + $0x2d0] sm:$0xff]
  %v5750 = vld [vmem:[%s5658 + $0x2d8] sm:$0xff]
  %v5751 = vld [vmem:[%s5658 + $0x2e0] sm:$0xff]
  %v5752 = vld [vmem:[%s5658 + $0x2e8] sm:$0xff]
  %v5753 = vld [vmem:[%s5658 + $0x2f0] sm:$0xff]
  %v5754 = vld [vmem:[%s5658 + $0x2f8] sm:$0xff]
  %v5851 = vunpack.c.l.b16 %v5659
  %v5852 = vunpack.c.h.b16 %v5659
  %v5853 = vunpack.c.l.b16 %v5660
  %v5854 = vunpack.c.h.b16 %v5660
  %v5855 = vunpack.c.l.b16 %v5661
  %v5856 = vunpack.c.h.b16 %v5661
  %v5857 = vunpack.c.l.b16 %v5662
  %v5858 = vunpack.c.h.b16 %v5662
  %v5859 = vunpack.c.l.b16 %v5663
  %v5860 = vunpack.c.h.b16 %v5663
  %v5861 = vunpack.c.l.b16 %v5664
  %v5862 = vunpack.c.h.b16 %v5664
  %v5863 = vunpack.c.l.b16 %v5665
  %v5864 = vunpack.c.h.b16 %v5665
  %v5865 = vunpack.c.l.b16 %v5666
  %v5866 = vunpack.c.h.b16 %v5666
  %v5867 = vunpack.c.l.b16 %v5667
  %v5868 = vunpack.c.h.b16 %v5667
  %v5869 = vunpack.c.l.b16 %v5668
  %v5870 = vunpack.c.h.b16 %v5668
  %v5871 = vunpack.c.l.b16 %v5669
  %v5872 = vunpack.c.h.b16 %v5669
  %v5873 = vunpack.c.l.b16 %v5670
  %v5874 = vunpack.c.h.b16 %v5670
  %v5875 = vunpack.c.l.b16 %v5671
  %v5876 = vunpack.c.h.b16 %v5671
  %v5877 = vunpack.c.l.b16 %v5672
  %v5878 = vunpack.c.h.b16 %v5672
  %v5879 = vunpack.c.l.b16 %v5673
  %v5880 = vunpack.c.h.b16 %v5673
  %v5881 = vunpack.c.l.b16 %v5674
  %v5882 = vunpack.c.h.b16 %v5674
  %v5883 = vunpack.c.l.b16 %v5675
  %v5884 = vunpack.c.h.b16 %v5675
  %v5885 = vunpack.c.l.b16 %v5676
  %v5886 = vunpack.c.h.b16 %v5676
  %v5887 = vunpack.c.l.b16 %v5677
  %v5888 = vunpack.c.h.b16 %v5677
  %v5889 = vunpack.c.l.b16 %v5678
  %v5890 = vunpack.c.h.b16 %v5678
  %v5891 = vunpack.c.l.b16 %v5679
  %v5892 = vunpack.c.h.b16 %v5679
  %v5893 = vunpack.c.l.b16 %v5680
  %v5894 = vunpack.c.h.b16 %v5680
  %v5895 = vunpack.c.l.b16 %v5681
  %v5896 = vunpack.c.h.b16 %v5681
  %v5897 = vunpack.c.l.b16 %v5682
  %v5898 = vunpack.c.h.b16 %v5682
  %v5899 = vunpack.c.l.b16 %v5683
  %v5900 = vunpack.c.h.b16 %v5683
  %v5901 = vunpack.c.l.b16 %v5684
  %v5902 = vunpack.c.h.b16 %v5684
  %v5903 = vunpack.c.l.b16 %v5685
  %v5904 = vunpack.c.h.b16 %v5685
  %v5905 = vunpack.c.l.b16 %v5686
  %v5906 = vunpack.c.h.b16 %v5686
  %v5907 = vunpack.c.l.b16 %v5687
  %v5908 = vunpack.c.h.b16 %v5687
  %v5909 = vunpack.c.l.b16 %v5688
  %v5910 = vunpack.c.h.b16 %v5688
  %v5911 = vunpack.c.l.b16 %v5689
  %v5912 = vunpack.c.h.b16 %v5689
  %v5913 = vunpack.c.l.b16 %v5690
  %v5914 = vunpack.c.h.b16 %v5690
  %v5915 = vunpack.c.l.b16 %v5691
  %v5916 = vunpack.c.h.b16 %v5691
  %v5917 = vunpack.c.l.b16 %v5692
  %v5918 = vunpack.c.h.b16 %v5692
  %v5919 = vunpack.c.l.b16 %v5693
  %v5920 = vunpack.c.h.b16 %v5693
  %v5921 = vunpack.c.l.b16 %v5694
  %v5922 = vunpack.c.h.b16 %v5694
  %v5923 = vunpack.c.l.b16 %v5695
  %v5924 = vunpack.c.h.b16 %v5695
  %v5925 = vunpack.c.l.b16 %v5696
  %v5926 = vunpack.c.h.b16 %v5696
  %v5927 = vunpack.c.l.b16 %v5697
  %v5928 = vunpack.c.h.b16 %v5697
  %v5929 = vunpack.c.l.b16 %v5698
  %v5930 = vunpack.c.h.b16 %v5698
  %v5931 = vunpack.c.l.b16 %v5699
  %v5932 = vunpack.c.h.b16 %v5699
  %v5933 = vunpack.c.l.b16 %v5700
  %v5934 = vunpack.c.h.b16 %v5700
  %v5935 = vunpack.c.l.b16 %v5701
  %v5936 = vunpack.c.h.b16 %v5701
  %v5937 = vunpack.c.l.b16 %v5702
  %v5938 = vunpack.c.h.b16 %v5702
  %v5939 = vunpack.c.l.b16 %v5703
  %v5940 = vunpack.c.h.b16 %v5703
  %v5941 = vunpack.c.l.b16 %v5704
  %v5942 = vunpack.c.h.b16 %v5704
  %v5943 = vunpack.c.l.b16 %v5705
  %v5944 = vunpack.c.h.b16 %v5705
  %v5945 = vunpack.c.l.b16 %v5706
  %v5946 = vunpack.c.h.b16 %v5706
  %v5947 = vunpack.c.l.b16 %v5707
  %v5948 = vunpack.c.h.b16 %v5707
  %v5949 = vunpack.c.l.b16 %v5708
  %v5950 = vunpack.c.h.b16 %v5708
  %v5951 = vunpack.c.l.b16 %v5709
  %v5952 = vunpack.c.h.b16 %v5709
  %v5953 = vunpack.c.l.b16 %v5710
  %v5954 = vunpack.c.h.b16 %v5710
  %v5955 = vunpack.c.l.b16 %v5711
  %v5956 = vunpack.c.h.b16 %v5711
  %v5957 = vunpack.c.l.b16 %v5712
  %v5958 = vunpack.c.h.b16 %v5712
  %v5959 = vunpack.c.l.b16 %v5713
  %v5960 = vunpack.c.h.b16 %v5713
  %v5961 = vunpack.c.l.b16 %v5714
  %v5962 = vunpack.c.h.b16 %v5714
  %v5963 = vunpack.c.l.b16 %v5715
  %v5964 = vunpack.c.h.b16 %v5715
  %v5965 = vunpack.c.l.b16 %v5716
  %v5966 = vunpack.c.h.b16 %v5716
  %v5967 = vunpack.c.l.b16 %v5717
  %v5968 = vunpack.c.h.b16 %v5717
  %v5969 = vunpack.c.l.b16 %v5718
  %v5970 = vunpack.c.h.b16 %v5718
  %v5971 = vunpack.c.l.b16 %v5719
  %v5972 = vunpack.c.h.b16 %v5719
  %v5973 = vunpack.c.l.b16 %v5720
  %v5974 = vunpack.c.h.b16 %v5720
  %v5975 = vunpack.c.l.b16 %v5721
  %v5976 = vunpack.c.h.b16 %v5721
  %v5977 = vunpack.c.l.b16 %v5722
  %v5978 = vunpack.c.h.b16 %v5722
  %v5979 = vunpack.c.l.b16 %v5723
  %v5980 = vunpack.c.h.b16 %v5723
  %v5981 = vunpack.c.l.b16 %v5724
  %v5982 = vunpack.c.h.b16 %v5724
  %v5983 = vunpack.c.l.b16 %v5725
  %v5984 = vunpack.c.h.b16 %v5725
  %v5985 = vunpack.c.l.b16 %v5726
  %v5986 = vunpack.c.h.b16 %v5726
  %v5987 = vunpack.c.l.b16 %v5727
  %v5988 = vunpack.c.h.b16 %v5727
  %v5989 = vunpack.c.l.b16 %v5728
  %v5990 = vunpack.c.h.b16 %v5728
  %v5991 = vunpack.c.l.b16 %v5729
  %v5992 = vunpack.c.h.b16 %v5729
  %v5993 = vunpack.c.l.b16 %v5730
  %v5994 = vunpack.c.h.b16 %v5730
  %v5995 = vunpack.c.l.b16 %v5731
  %v5996 = vunpack.c.h.b16 %v5731
  %v5997 = vunpack.c.l.b16 %v5732
  %v5998 = vunpack.c.h.b16 %v5732
  %v5999 = vunpack.c.l.b16 %v5733
  %v6000 = vunpack.c.h.b16 %v5733
  %v6001 = vunpack.c.l.b16 %v5734
  %v6002 = vunpack.c.h.b16 %v5734
  %v6003 = vunpack.c.l.b16 %v5735
  %v6004 = vunpack.c.h.b16 %v5735
  %v6005 = vunpack.c.l.b16 %v5736
  %v6006 = vunpack.c.h.b16 %v5736
  %v6007 = vunpack.c.l.b16 %v5737
  %v6008 = vunpack.c.h.b16 %v5737
  %v6009 = vunpack.c.l.b16 %v5738
  %v6010 = vunpack.c.h.b16 %v5738
  %v6011 = vunpack.c.l.b16 %v5739
  %v6012 = vunpack.c.h.b16 %v5739
  %v6013 = vunpack.c.l.b16 %v5740
  %v6014 = vunpack.c.h.b16 %v5740
  %v6015 = vunpack.c.l.b16 %v5741
  %v6016 = vunpack.c.h.b16 %v5741
  %v6017 = vunpack.c.l.b16 %v5742
  %v6018 = vunpack.c.h.b16 %v5742
  %v6019 = vunpack.c.l.b16 %v5743
  %v6020 = vunpack.c.h.b16 %v5743
  %v6021 = vunpack.c.l.b16 %v5744
  %v6022 = vunpack.c.h.b16 %v5744
  %v6023 = vunpack.c.l.b16 %v5745
  %v6024 = vunpack.c.h.b16 %v5745
  %v6025 = vunpack.c.l.b16 %v5746
  %v6026 = vunpack.c.h.b16 %v5746
  %v6027 = vunpack.c.l.b16 %v5747
  %v6028 = vunpack.c.h.b16 %v5747
  %v6029 = vunpack.c.l.b16 %v5748
  %v6030 = vunpack.c.h.b16 %v5748
  %v6031 = vunpack.c.l.b16 %v5749
  %v6032 = vunpack.c.h.b16 %v5749
  %v6033 = vunpack.c.l.b16 %v5750
  %v6034 = vunpack.c.h.b16 %v5750
  %v6035 = vunpack.c.l.b16 %v5751
  %v6036 = vunpack.c.h.b16 %v5751
  %v6037 = vunpack.c.l.b16 %v5752
  %v6038 = vunpack.c.h.b16 %v5752
  %v6039 = vunpack.c.l.b16 %v5753
  %v6040 = vunpack.c.h.b16 %v5753
  %v6041 = vunpack.c.l.b16 %v5754
  %v6042 = vunpack.c.h.b16 %v5754
  %v6043 = vpack.c.b16 %v5853, %v5851
  %v6044 = vpack.c.b16 %v5854, %v5852
  %v6045 = vpack.c.b16 %v5857, %v5855
  %v6046 = vpack.c.b16 %v5858, %v5856
  %v6047 = vpack.c.b16 %v5861, %v5859
  %v6048 = vpack.c.b16 %v5862, %v5860
  %v6049 = vpack.c.b16 %v5865, %v5863
  %v6050 = vpack.c.b16 %v5866, %v5864
  %v6051 = vpack.c.b16 %v5869, %v5867
  %v6052 = vpack.c.b16 %v5870, %v5868
  %v6053 = vpack.c.b16 %v5873, %v5871
  %v6054 = vpack.c.b16 %v5874, %v5872
  %v6055 = vpack.c.b16 %v5877, %v5875
  %v6056 = vpack.c.b16 %v5878, %v5876
  %v6057 = vpack.c.b16 %v5881, %v5879
  %v6058 = vpack.c.b16 %v5882, %v5880
  %v6059 = vpack.c.b16 %v5885, %v5883
  %v6060 = vpack.c.b16 %v5886, %v5884
  %v6061 = vpack.c.b16 %v5889, %v5887
  %v6062 = vpack.c.b16 %v5890, %v5888
  %v6063 = vpack.c.b16 %v5893, %v5891
  %v6064 = vpack.c.b16 %v5894, %v5892
  %v6065 = vpack.c.b16 %v5897, %v5895
  %v6066 = vpack.c.b16 %v5898, %v5896
  %v6067 = vpack.c.b16 %v5901, %v5899
  %v6068 = vpack.c.b16 %v5902, %v5900
  %v6069 = vpack.c.b16 %v5905, %v5903
  %v6070 = vpack.c.b16 %v5906, %v5904
  %v6071 = vpack.c.b16 %v5909, %v5907
  %v6072 = vpack.c.b16 %v5910, %v5908
  %v6073 = vpack.c.b16 %v5913, %v5911
  %v6074 = vpack.c.b16 %v5914, %v5912
  %v6075 = vpack.c.b16 %v5917, %v5915
  %v6076 = vpack.c.b16 %v5918, %v5916
  %v6077 = vpack.c.b16 %v5921, %v5919
  %v6078 = vpack.c.b16 %v5922, %v5920
  %v6079 = vpack.c.b16 %v5925, %v5923
  %v6080 = vpack.c.b16 %v5926, %v5924
  %v6081 = vpack.c.b16 %v5929, %v5927
  %v6082 = vpack.c.b16 %v5930, %v5928
  %v6083 = vpack.c.b16 %v5933, %v5931
  %v6084 = vpack.c.b16 %v5934, %v5932
  %v6085 = vpack.c.b16 %v5937, %v5935
  %v6086 = vpack.c.b16 %v5938, %v5936
  %v6087 = vpack.c.b16 %v5941, %v5939
  %v6088 = vpack.c.b16 %v5942, %v5940
  %v6089 = vpack.c.b16 %v5945, %v5943
  %v6090 = vpack.c.b16 %v5946, %v5944
  %v6091 = vpack.c.b16 %v5949, %v5947
  %v6092 = vpack.c.b16 %v5950, %v5948
  %v6093 = vpack.c.b16 %v5953, %v5951
  %v6094 = vpack.c.b16 %v5954, %v5952
  %v6095 = vpack.c.b16 %v5957, %v5955
  %v6096 = vpack.c.b16 %v5958, %v5956
  %v6097 = vpack.c.b16 %v5961, %v5959
  %v6098 = vpack.c.b16 %v5962, %v5960
  %v6099 = vpack.c.b16 %v5965, %v5963
  %v6100 = vpack.c.b16 %v5966, %v5964
  %v6101 = vpack.c.b16 %v5969, %v5967
  %v6102 = vpack.c.b16 %v5970, %v5968
  %v6103 = vpack.c.b16 %v5973, %v5971
  %v6104 = vpack.c.b16 %v5974, %v5972
  %v6105 = vpack.c.b16 %v5977, %v5975
  %v6106 = vpack.c.b16 %v5978, %v5976
  %v6107 = vpack.c.b16 %v5981, %v5979
  %v6108 = vpack.c.b16 %v5982, %v5980
  %v6109 = vpack.c.b16 %v5985, %v5983
  %v6110 = vpack.c.b16 %v5986, %v5984
  %v6111 = vpack.c.b16 %v5989, %v5987
  %v6112 = vpack.c.b16 %v5990, %v5988
  %v6113 = vpack.c.b16 %v5993, %v5991
  %v6114 = vpack.c.b16 %v5994, %v5992
  %v6115 = vpack.c.b16 %v5997, %v5995
  %v6116 = vpack.c.b16 %v5998, %v5996
  %v6117 = vpack.c.b16 %v6001, %v5999
  %v6118 = vpack.c.b16 %v6002, %v6000
  %v6119 = vpack.c.b16 %v6005, %v6003
  %v6120 = vpack.c.b16 %v6006, %v6004
  %v6121 = vpack.c.b16 %v6009, %v6007
  %v6122 = vpack.c.b16 %v6010, %v6008
  %v6123 = vpack.c.b16 %v6013, %v6011
  %v6124 = vpack.c.b16 %v6014, %v6012
  %v6125 = vpack.c.b16 %v6017, %v6015
  %v6126 = vpack.c.b16 %v6018, %v6016
  %v6127 = vpack.c.b16 %v6021, %v6019
  %v6128 = vpack.c.b16 %v6022, %v6020
  %v6129 = vpack.c.b16 %v6025, %v6023
  %v6130 = vpack.c.b16 %v6026, %v6024
  %v6131 = vpack.c.b16 %v6029, %v6027
  %v6132 = vpack.c.b16 %v6030, %v6028
  %v6133 = vpack.c.b16 %v6033, %v6031
  %v6134 = vpack.c.b16 %v6034, %v6032
  %v6135 = vpack.c.b16 %v6037, %v6035
  %v6136 = vpack.c.b16 %v6038, %v6036
  %v6137 = vpack.c.b16 %v6041, %v6039
  %v6138 = vpack.c.b16 %v6042, %v6040
  %6235 = vmatprep.subr.bf16.mxu0 %v6044
  %6236 = vmatpush1.bf16.msra.mxu0 %v6043
  %6237 = vmatprep.subr.bf16.mxu0 %v6046
  %6238 = vmatpush1.bf16.msra.mxu0 %v6045
  %6239 = vmatprep.subr.bf16.mxu0 %v6048
  %6240 = vmatpush1.bf16.msra.mxu0 %v6047
  %6241 = vmatprep.subr.bf16.mxu0 %v6050
  %6242 = vmatpush1.bf16.msra.mxu0 %v6049
  %6243 = vmatprep.subr.bf16.mxu0 %v6052
  %6244 = vmatpush1.bf16.msra.mxu0 %v6051
  %6245 = vmatprep.subr.bf16.mxu0 %v6054
  %6246 = vmatpush1.bf16.msra.mxu0 %v6053
  %6247 = vmatprep.subr.bf16.mxu0 %v6056
  %6248 = vmatpush1.bf16.msra.mxu0 %v6055
  %6249 = vmatprep.subr.bf16.mxu0 %v6058
  %6250 = vmatpush1.bf16.msra.mxu0 %v6057
  %6251 = vmatprep.subr.bf16.mxu0 %v6060
  %6252 = vmatpush1.bf16.msra.mxu0 %v6059
  %6253 = vmatprep.subr.bf16.mxu0 %v6062
  %6254 = vmatpush1.bf16.msra.mxu0 %v6061
  %6255 = vmatprep.subr.bf16.mxu0 %v6064
  %6256 = vmatpush1.bf16.msra.mxu0 %v6063
  %6257 = vmatprep.subr.bf16.mxu0 %v6066
  %6258 = vmatpush1.bf16.msra.mxu0 %v6065
  %6259 = vmatprep.subr.bf16.mxu0 %v6068
  %6260 = vmatpush1.bf16.msra.mxu0 %v6067
  %6261 = vmatprep.subr.bf16.mxu0 %v6070
  %6262 = vmatpush1.bf16.msra.mxu0 %v6069
  %6263 = vmatprep.subr.bf16.mxu0 %v6072
  %6264 = vmatpush1.bf16.msra.mxu0 %v6071
  %6265 = vmatprep.subr.bf16.mxu0 %v6074
  %6266 = vmatpush1.bf16.msra.mxu0 %v6073
  %6267 = vmatprep.mubr.bf16.mxu0 %v130
  %6268 = vmatmul.mubr.bf16.gmra.mrb[0].mxu0 %v129
  %v6269 = vpop.f32.mrb[0].mxu0
  %v6270 = vadd.f32 0.0, %v6269
  %v6271 = vpop.f32.mrb[0].mxu0
  %v6272 = vadd.f32 0.0, %v6271
  %v6273 = vpop.f32.mrb[0].mxu0
  %v6274 = vpop.f32.mrb[0].mxu0
  %6275 = vdwg.mxu0
  %6276 = vmatprep.subr.bf16.mxu0 %v6076
  %6277 = vmatpush1.bf16.msra.mxu0 %v6075
  %6278 = vmatprep.subr.bf16.mxu0 %v6078
  %6279 = vmatpush1.bf16.msra.mxu0 %v6077
  %6280 = vmatprep.subr.bf16.mxu0 %v6080
  %6281 = vmatpush1.bf16.msra.mxu0 %v6079
  %6282 = vmatprep.subr.bf16.mxu0 %v6082
  %6283 = vmatpush1.bf16.msra.mxu0 %v6081
  %6284 = vmatprep.subr.bf16.mxu0 %v6084
  %6285 = vmatpush1.bf16.msra.mxu0 %v6083
  %6286 = vmatprep.subr.bf16.mxu0 %v6086
  %6287 = vmatpush1.bf16.msra.mxu0 %v6085
  %6288 = vmatprep.subr.bf16.mxu0 %v6088
  %6289 = vmatpush1.bf16.msra.mxu0 %v6087
  %6290 = vmatprep.subr.bf16.mxu0 %v6090
  %6291 = vmatpush1.bf16.msra.mxu0 %v6089
  %6292 = vmatprep.subr.bf16.mxu0 %v6092
  %6293 = vmatpush1.bf16.msra.mxu0 %v6091
  %6294 = vmatprep.subr.bf16.mxu0 %v6094
  %6295 = vmatpush1.bf16.msra.mxu0 %v6093
  %6296 = vmatprep.subr.bf16.mxu0 %v6096
  %6297 = vmatpush1.bf16.msra.mxu0 %v6095
  %6298 = vmatprep.subr.bf16.mxu0 %v6098
  %6299 = vmatpush1.bf16.msra.mxu0 %v6097
  %6300 = vmatprep.subr.bf16.mxu0 %v6100
  %6301 = vmatpush1.bf16.msra.mxu0 %v6099
  %6302 = vmatprep.subr.bf16.mxu0 %v6102
  %6303 = vmatpush1.bf16.msra.mxu0 %v6101
  %6304 = vmatprep.subr.bf16.mxu0 %v6104
  %6305 = vmatpush1.bf16.msra.mxu0 %v6103
  %6306 = vmatprep.subr.bf16.mxu0 %v6106
  %6307 = vmatpush1.bf16.msra.mxu0 %v6105
  %6308 = vmatprep.mubr.bf16.mxu0 %v132
  %6309 = vmatmul.mubr.bf16.gmra.mrb[0].mxu0 %v131
  %v6310 = vpop.f32.mrb[0].mxu0
  %v6311 = vadd.f32 %v6270, %v6310
  %v6312 = vpop.f32.mrb[0].mxu0
  %v6313 = vadd.f32 %v6272, %v6312
  %v6314 = vpop.f32.mrb[0].mxu0
  %v6315 = vpop.f32.mrb[0].mxu0
  %6316 = vdwg.mxu0
  %6317 = vmatprep.subr.bf16.mxu0 %v6108
  %6318 = vmatpush1.bf16.msra.mxu0 %v6107
  %6319 = vmatprep.subr.bf16.mxu0 %v6110
  %6320 = vmatpush1.bf16.msra.mxu0 %v6109
  %6321 = vmatprep.subr.bf16.mxu0 %v6112
  %6322 = vmatpush1.bf16.msra.mxu0 %v6111
  %6323 = vmatprep.subr.bf16.mxu0 %v6114
  %6324 = vmatpush1.bf16.msra.mxu0 %v6113
  %6325 = vmatprep.subr.bf16.mxu0 %v6116
  %6326 = vmatpush1.bf16.msra.mxu0 %v6115
  %6327 = vmatprep.subr.bf16.mxu0 %v6118
  %6328 = vmatpush1.bf16.msra.mxu0 %v6117
  %6329 = vmatprep.subr.bf16.mxu0 %v6120
  %6330 = vmatpush1.bf16.msra.mxu0 %v6119
  %6331 = vmatprep.subr.bf16.mxu0 %v6122
  %6332 = vmatpush1.bf16.msra.mxu0 %v6121
  %6333 = vmatprep.subr.bf16.mxu0 %v6124
  %6334 = vmatpush1.bf16.msra.mxu0 %v6123
  %6335 = vmatprep.subr.bf16.mxu0 %v6126
  %6336 = vmatpush1.bf16.msra.mxu0 %v6125
  %6337 = vmatprep.subr.bf16.mxu0 %v6128
  %6338 = vmatpush1.bf16.msra.mxu0 %v6127
  %6339 = vmatprep.subr.bf16.mxu0 %v6130
  %6340 = vmatpush1.bf16.msra.mxu0 %v6129
  %6341 = vmatprep.subr.bf16.mxu0 %v6132
  %6342 = vmatpush1.bf16.msra.mxu0 %v6131
  %6343 = vmatprep.subr.bf16.mxu0 %v6134
  %6344 = vmatpush1.bf16.msra.mxu0 %v6133
  %6345 = vmatprep.subr.bf16.mxu0 %v6136
  %6346 = vmatpush1.bf16.msra.mxu0 %v6135
  %6347 = vmatprep.subr.bf16.mxu0 %v6138
  %6348 = vmatpush1.bf16.msra.mxu0 %v6137
  %6349 = vmatprep.mubr.bf16.mxu0 %v134
  %6350 = vmatmul.mubr.bf16.gmra.mrb[0].mxu0 %v133
  %v6351 = vpop.f32.mrb[0].mxu0
  %v6352 = vadd.f32 %v6311, %v6351
  %v6353 = vpop.f32.mrb[0].mxu0
  %v6354 = vadd.f32 %v6313, %v6353
  %v6355 = vpop.f32.mrb[0].mxu0
  %v6356 = vpop.f32.mrb[0].mxu0
  %6357 = vdwg.mxu0
  %v6358 = vmax.f32 %v5656, %v6352
  %v6359 = vmax.f32 %v5657, %v6354
  %v6360 = vld [vmem:[%s2] sm:$0x3]
  %v6362 = vlaneseq
  %v6363 = vshrl.u32 %v6362, 7
  %v6364 = vsub.s32 0, %v6363
  %v6365 = vrot.slane %v6360, %v6364
  %v6366 = vlaneseq
  %v6367 = vshrl.u32 %v6366, 7
  %v6368 = vsub.s32 1, %v6367
  %v6369 = vrot.slane %v6360, %v6368
  %v6372 = vadd.f32 %v6358, %v6365
  %v6373 = vadd.f32 %v6359, %v6369
  %v6374 = vmax.f32 %v6372, 0.0
  %v6375 = vmax.f32 %v6373, 0.0
  %v6376 = vpack.c.bf16 %v6374, %v6374
  %v6377 = vpack.c.bf16 %v6375, %v6375
  %v6378 = vld [vmem:[%s3] sm:$0xf]
  %v6379 = vld [vmem:[%s3 + $0x4] sm:$0xf]
  %v6380 = vld [vmem:[%s3 + $0x8] sm:$0xf]
  %v6381 = vld [vmem:[%s3 + $0xc] sm:$0xf]
  %v6382 = vld [vmem:[%s3 + $0x10] sm:$0xf]
  %v6383 = vld [vmem:[%s3 + $0x14] sm:$0xf]
  %v6384 = vld [vmem:[%s3 + $0x18] sm:$0xf]
  %v6385 = vld [vmem:[%s3 + $0x1c] sm:$0xf]
  %v6386 = vld [vmem:[%s3 + $0x20] sm:$0xf]
  %v6387 = vld [vmem:[%s3 + $0x24] sm:$0xf]
  %v6388 = vld [vmem:[%s3 + $0x28] sm:$0xf]
  %v6389 = vld [vmem:[%s3 + $0x2c] sm:$0xf]
  %v6390 = vld [vmem:[%s3 + $0x30] sm:$0xf]
  %v6391 = vld [vmem:[%s3 + $0x34] sm:$0xf]
  %v6392 = vld [vmem:[%s3 + $0x38] sm:$0xf]
  %v6393 = vld [vmem:[%s3 + $0x3c] sm:$0xf]
  %v6394 = vld [vmem:[%s3 + $0x40] sm:$0xf]
  %v6395 = vld [vmem:[%s3 + $0x44] sm:$0xf]
  %v6396 = vld [vmem:[%s3 + $0x48] sm:$0xf]
  %v6397 = vld [vmem:[%s3 + $0x4c] sm:$0xf]
  %v6398 = vld [vmem:[%s3 + $0x50] sm:$0xf]
  %v6399 = vld [vmem:[%s3 + $0x54] sm:$0xf]
  %v6400 = vld [vmem:[%s3 + $0x58] sm:$0xf]
  %v6401 = vld [vmem:[%s3 + $0x5c] sm:$0xf]
  %v6402 = vld [vmem:[%s4] sm:$0x1]
  %v6404 = vlaneseq
  %v6405 = vshrl.u32 %v6404, 7
  %v6406 = vsub.s32 0, %v6405
  %v6407 = vrot.slane %v6402, %v6406
  %v6433 = vunpack.c.l.b16 %v6378
  %v6434 = vunpack.c.l.b16 %v6379
  %v6435 = vunpack.c.l.b16 %v6380
  %v6436 = vunpack.c.l.b16 %v6381
  %v6437 = vunpack.c.l.b16 %v6382
  %v6438 = vunpack.c.l.b16 %v6383
  %v6439 = vunpack.c.l.b16 %v6384
  %v6440 = vunpack.c.l.b16 %v6385
  %v6441 = vunpack.c.l.b16 %v6386
  %v6442 = vunpack.c.l.b16 %v6387
  %v6443 = vunpack.c.l.b16 %v6388
  %v6444 = vunpack.c.l.b16 %v6389
  %v6445 = vunpack.c.l.b16 %v6390
  %v6446 = vunpack.c.l.b16 %v6391
  %v6447 = vunpack.c.l.b16 %v6392
  %v6448 = vunpack.c.l.b16 %v6393
  %v6449 = vunpack.c.l.b16 %v6394
  %v6450 = vunpack.c.l.b16 %v6395
  %v6451 = vunpack.c.l.b16 %v6396
  %v6452 = vunpack.c.l.b16 %v6397
  %v6453 = vunpack.c.l.b16 %v6398
  %v6454 = vunpack.c.l.b16 %v6399
  %v6455 = vunpack.c.l.b16 %v6400
  %v6456 = vunpack.c.l.b16 %v6401
  %v6457 = vpack.c.b16 %v6434, %v6433
  %v6458 = vpack.c.b16 %v6436, %v6435
  %v6459 = vpack.c.b16 %v6438, %v6437
  %v6460 = vpack.c.b16 %v6440, %v6439
  %v6461 = vpack.c.b16 %v6442, %v6441
  %v6462 = vpack.c.b16 %v6444, %v6443
  %v6463 = vpack.c.b16 %v6446, %v6445
  %v6464 = vpack.c.b16 %v6448, %v6447
  %v6465 = vpack.c.b16 %v6450, %v6449
  %v6466 = vpack.c.b16 %v6452, %v6451
  %v6467 = vpack.c.b16 %v6454, %v6453
  %v6468 = vpack.c.b16 %v6456, %v6455
  %vm6481 = vcmask 523264
  %v6483 = vsel %vm6481, %v6377, 0
  %6485 = vmatprep.subr.bf16.mxu0 0
  %6486 = vmatpush1.bf16.msra.mxu0 %v6457
  %6487 = vmatprep.subr.bf16.mxu0 0
  %6488 = vmatpush1.bf16.msra.mxu0 %v6458
  %6489 = vmatprep.subr.bf16.mxu0 0
  %6490 = vmatpush1.bf16.msra.mxu0 %v6459
  %6491 = vmatprep.subr.bf16.mxu0 0
  %6492 = vmatpush1.bf16.msra.mxu0 %v6460
  %6493 = vmatprep.subr.bf16.mxu0 0
  %6494 = vmatpush1.bf16.msra.mxu0 %v6461
  %6495 = vmatprep.subr.bf16.mxu0 0
  %6496 = vmatpush1.bf16.msra.mxu0 %v6462
  %6497 = vmatprep.subr.bf16.mxu0 0
  %6498 = vmatpush1.bf16.msra.mxu0 %v6463
  %6499 = vmatprep.subr.bf16.mxu0 0
  %6500 = vmatpush1.bf16.msra.mxu0 %v6464
  %6501 = vmatprep.subr.bf16.mxu0 0
  %6502 = vmatpush1.bf16.msra.mxu0 %v6465
  %6503 = vmatprep.subr.bf16.mxu0 0
  %6504 = vmatpush1.bf16.msra.mxu0 %v6466
  %6505 = vmatprep.subr.bf16.mxu0 0
  %6506 = vmatpush1.bf16.msra.mxu0 %v6467
  %6507 = vmatprep.subr.bf16.mxu0 0
  %6508 = vmatpush1.bf16.msra.mxu0 %v6468
  %6509 = vmatprep.subr.bf16.mxu0 0
  %6510 = vmatpush1.bf16.msra.mxu0 0
  %6511 = vmatprep.subr.bf16.mxu0 0
  %6512 = vmatpush1.bf16.msra.mxu0 0
  %6513 = vmatprep.subr.bf16.mxu0 0
  %6514 = vmatpush1.bf16.msra.mxu0 0
  %6515 = vmatprep.subr.bf16.mxu0 0
  %6516 = vmatpush1.bf16.msra.mxu0 0
  %6517 = vmatprep.mubr.bf16.mxu0 %v6483
  %6518 = vmatmul.mubr.bf16.gmra.mrb[0].mxu0 %v6376
  %v6519 = vpop.f32.mrb[0].mxu0
  %v6520 = vadd.f32 %v6407, %v6519
  %v6521 = vpop.f32.mrb[0].mxu0
  %v6522 = vpop.f32.mrb[0].mxu0
  %v6523 = vpop.f32.mrb[0].mxu0
  %6524 = vdwg.mxu0
  %vm6525 = vcmask 80896
  %v6526 = vsel %vm6525, %v6520, -inf
  %6527 = vmax.xlane.f32.xlu0 %v6526
  %v6528 = vpop.xlane.xlu0 %6527
  %v6529 = vsub.f32 %v6520, %v6528
  %v6530 = vmul.f32 %v6529, 1.442695
  %v6531 = vpow.pop %v6530
  %v6532 = vsel %vm6525, %v6531, 0.0
  %6533 = vadd.xlane.f32.xlu0 %v6532
  %v6534 = vpop.xlane.xlu0 %6533
  %v6535 = vlog2.pop %v6534
  %v6536 = vmul.f32 %v6535, 0.6931472
  %v6537 = vsub.f32 %v6529, %v6536
  %6538 = vst.msk [vmem:[%s5] sm:$0xff] %vm6525, %v6537
  // Predicated region
  $region22: #{convnet_forward.1} parent=0 // pred_check
    _
  $region23: #{convnet_forward.1} parent=0 // pred_check_branch
    %6540 = sbr.rel (0) target = $region25
  $region24: #{convnet_forward.1} parent=0 // pred_region
    _
  $region25: #{convnet_forward.1} parent=0 // pred_fallthru
    _
  // Predicated region
  $region26: #{convnet_forward.1} parent=0 // pred_check
    _
  $region27: #{convnet_forward.1} parent=0 // pred_check_branch
    %6542 = sbr.rel (0) target = $region29
  $region28: #{convnet_forward.1} parent=0 // pred_region
    _
  $region29: #{convnet_forward.1} parent=0 // pred_fallthru
    _

</llo_original>
